<compile_context>
chip_gen: v6e
topology: v6e:2x2x1
jax: 0.10.0
libtpu: 0.0.40
codegen_flags: <defaults>
</compile_context>

<pallas_src>
import functools

import jax
import jax.numpy as jnp
from jax import lax
from jax.experimental import pallas as pl
from jax.experimental.pallas import tpu as pltpu


def _ceil_div(a, b):
    return -(-a // b)


def _round_up(n, m):
    return _ceil_div(n, m) * m


# ----------------------------------------------------------------------------
# Fused kernel: LSTM stack (time loop inside) + attention + FC head.
# Gate order follows PyTorch: i, f, g, o packed contiguously along lanes.
# All activations are time-major: (T, bb, ...).
# ----------------------------------------------------------------------------
def _fused_kernel(num_layers, H, T, x_ref, *refs):
    """refs layout:
       [wih_0, whh_0, b_0, ..., wih_{L-1}, whh_{L-1}, b_{L-1},   # LSTM weights
        w1, b1, w2, b2, wf1, bf1, wf2, bf2,                      # head weights
        pred_ref, attn_ref,                                      # outputs
        seq_ref, xg_ref]                                         # VMEM scratch
    """
    n = 3 * num_layers
    lstm_refs = refs[:n]
    (w1_ref, b1_ref, w2_ref, b2_ref,
     wf1_ref, bf1_ref, wf2_ref, bf2_ref) = refs[n:n + 8]
    pred_ref, attn_ref = refs[n + 8], refs[n + 9]
    seq_ref, xg_ref = refs[n + 10], refs[n + 11]

    bb = x_ref.shape[1]                      # batch rows in this block (%8==0)
    G = 4 * H
    packed_gates = G <= 128                  # all 4 gates fit one lane block

    # ------------------ LSTM stack: recurrence fully in-kernel ---------------
    for layer in range(num_layers):
        wih = lstm_refs[3 * layer][...]      # (din, 4H)
        whh = lstm_refs[3 * layer + 1][...]  # (H,   4H)
        b = lstm_refs[3 * layer + 2][...]    # (1,   4H)

        inp = x_ref[...] if layer == 0 else seq_ref[...]     # (T, bb, din)
        din = inp.shape[-1]

        # Hoisted input->gate projection: one big 2-D matmul over bb*T rows
        # (leading-dim collapse only; bb is a multiple of 8 so this is a
        # tile-aligned, movement-free reshape).
        inp2d = inp.reshape(T * bb, din)
        xg2d = jnp.dot(inp2d, wih, preferred_element_type=jnp.float32) + b
        xg_ref[...] = xg2d.reshape(T, bb, G)

        h = jnp.zeros((bb, H), jnp.float32)
        c = jnp.zeros((bb, H), jnp.float32)

        def step(t, h, c, whh=whh):
            # One 2-D MXU matmul on the recurrence critical path.
            gates = xg_ref[t] + jnp.dot(h, whh,
                                        preferred_element_type=jnp.float32)
            if packed_gates:
                # 2 EUP passes over the packed 128-lane gate block, then
                # lane-slice (compiler-generated shifts on the XLU slot).
                sg = jax.nn.sigmoid(gates)
                tg = jnp.tanh(gates)
                i_g = sg[:, 0 * H:1 * H]
                f_g = sg[:, 1 * H:2 * H]
                g_g = tg[:, 2 * H:3 * H]
                o_g = sg[:, 3 * H:4 * H]
            else:
                i_g = jax.nn.sigmoid(gates[:, 0 * H:1 * H])
                f_g = jax.nn.sigmoid(gates[:, 1 * H:2 * H])
                g_g = jnp.tanh(gates[:, 2 * H:3 * H])
                o_g = jax.nn.sigmoid(gates[:, 3 * H:4 * H])
            c_new = f_g * c + i_g * g_g
            h_new = o_g * jnp.tanh(c_new)
            seq_ref[t] = h_new               # full sublane-aligned (bb, H) slab
            return h_new, c_new

        if T <= 16:                          # static unroll for short sequences
            for t in range(T):
                h, c = step(t, h, c)
        else:                                # bounded live ranges for long T
            def body(t, carry):
                return step(t, *carry)
            h, c = lax.fori_loop(0, T, body, (h, c), unroll=4)
        # TODO(synk): v5e — consider pltpu.matmul_push_rhs to keep whh
        # MXU-resident across the time loop (measure first).

    # ------------------ attention + FC head ----------------------------------
    s3 = seq_ref[...]                        # (T, bb, H)
    s2 = s3.reshape(T * bb, H)

    a1 = jnp.tanh(jnp.dot(s2, w1_ref[...],
                          preferred_element_type=jnp.float32) + b1_ref[...])
    scores = (jnp.dot(a1, w2_ref[...],       # (H, 1) column -> MXU matmul
                      preferred_element_type=jnp.float32)
              + b2_ref[...]).reshape(T, bb, 1)

    # softmax over time (exact normalization; runs once per call)
    m = jnp.max(scores, axis=0, keepdims=True)
    e = jnp.exp(scores - m)
    attn = e / jnp.sum(e, axis=0, keepdims=True)             # (T, bb, 1)

    context = jnp.sum(attn * s3, axis=0)                     # (bb, H)

    # fc head: Linear -> ReLU -> (Dropout=identity) -> Linear
    y = jnp.maximum(
        jnp.dot(context, wf1_ref[...],
                preferred_element_type=jnp.float32) + bf1_ref[...], 0.0)
    pred = jnp.dot(y, wf2_ref[...],
                   preferred_element_type=jnp.float32) + bf2_ref[...]

    pred_ref[...] = pred
    attn_ref[...] = attn


# ----------------------------------------------------------------------------
# Wrapper
# ----------------------------------------------------------------------------
@jax.jit
def stock_price_lstm_forward(x, packed):
    """x: (B, T, input_dim) f32; packed: output of pack_params.
    Returns (prediction (B, output_dim), attention_weights (B, T, 1))."""
    B, T, din = x.shape
    lstm = packed['lstm']                    # list of (wih, whh, b)
    head = packed['head']                    # 8 head weight arrays
    num_layers = len(lstm)
    H = lstm[0][1].shape[0]                  # whh: (H, 4H)
    G = lstm[0][1].shape[1]
    out_dim = head[6].shape[1]               # wf2: (H//2, O)

    # --- batch blocking: largest block (multiple of 8) that fits a VMEM
    # budget for the batch-dependent buffers (x block + xg + seq + outputs).
    bytes_per_row = 4 * (T * (G + H + din) + out_dim + T)
    budget = 16 * 1024 * 1024                # conservative across v5e/v6e/v7x
    cap = max(8, min(256, (budget // bytes_per_row) // 8 * 8))
    nb = _ceil_div(B, cap)                   # >1 block => "parallel" grid axis
    bb = _round_up(_ceil_div(B, nb), 8)      # multiple of 8: tile-aligned
    B_pad = bb * nb

    # Time-major layout so every per-step store is a contiguous (bb, H) slab.
    x_t = jnp.transpose(x, (1, 0, 2))        # (T, B, din)
    if B_pad != B:
        x_t = jnp.pad(x_t, ((0, 0), (0, B_pad - B), (0, 0)))

    flat_w = [w for layer in lstm for w in layer] + list(head)

    in_specs = [pl.BlockSpec((T, bb, din), lambda i: (0, i, 0))]
    in_specs += [pl.BlockSpec(w.shape, lambda i: (0, 0)) for w in flat_w]

    kernel = functools.partial(_fused_kernel, num_layers, H, T)
    pred_pad, attn_pad = pl.pallas_call(
        kernel,
        grid=(nb,),
        in_specs=in_specs,
        out_specs=(pl.BlockSpec((bb, out_dim), lambda i: (i, 0)),
                   pl.BlockSpec((T, bb, 1), lambda i: (0, i, 0))),
        out_shape=(jax.ShapeDtypeStruct((B_pad, out_dim), jnp.float32),
                   jax.ShapeDtypeStruct((T, B_pad, 1), jnp.float32)),
        scratch_shapes=[pltpu.VMEM((T, bb, H), jnp.float32),   # seq
                        pltpu.VMEM((T, bb, G), jnp.float32)],  # hoisted gates
        compiler_params=pltpu.CompilerParams(
            dimension_semantics=("parallel",)),
    )(x_t, *flat_w)

    pred = pred_pad[:B]
    attn = jnp.transpose(attn_pad, (1, 0, 2))[:B]              # (B, T, 1)
    return pred, attn


# ----------------------------------------------------------------------------
# Parameters in PyTorch layout, plus packing into the kernel layout.
# ----------------------------------------------------------------------------
def make_params(key, input_dim, hidden_dim, num_layers, output_dim):
    """Parameters with PyTorch nn.LSTM / nn.Linear weight conventions."""
    keys = iter(jax.random.split(key, 8 * num_layers + 16))

    def unif(shape, bound):
        return jax.random.uniform(next(keys), shape, jnp.float32, -bound, bound)

    k = 1.0 / float(hidden_dim) ** 0.5
    lstm = []
    for layer in range(num_layers):
        din = input_dim if layer == 0 else hidden_dim
        lstm.append(dict(
            w_ih=unif((4 * hidden_dim, din), k),
            w_hh=unif((4 * hidden_dim, hidden_dim), k),
            b_ih=unif((4 * hidden_dim,), k),
            b_hh=unif((4 * hidden_dim,), k)))

    attn = dict(w1=unif((hidden_dim, hidden_dim), k),
                b1=unif((hidden_dim,), k),
                w2=unif((1, hidden_dim), k),
                b2=unif((1,), k))

    half = hidden_dim // 2
    k2 = 1.0 / float(half) ** 0.5
    fc = dict(w1=unif((half, hidden_dim), k),
              b1=unif((half,), k),
              w2=unif((output_dim, half), k2),
              b2=unif((output_dim,), k2))
    return dict(lstm=lstm, attn=attn, fc=fc)


def pack_params(params):
    """Re-lay PyTorch params into the kernel layout: weights transposed to
    (in, out); LSTM biases fused (b_ih + b_hh); gates stay in the natural
    contiguous PyTorch order i,f,g,o (one 128-lane block when 4*H <= 128)."""
    lstm = []
    for layer in params['lstm']:
        lstm.append((layer['w_ih'].T,                         # (din, 4H)
                     layer['w_hh'].T,                         # (H,   4H)
                     (layer['b_ih'] + layer['b_hh'])[None, :]))  # (1, 4H)

    a, f = params['attn'], params['fc']
    head = (
        a['w1'].T,           # (H, H)
        a['b1'][None, :],    # (1, H)
        a['w2'].T,           # (H, 1)
        a['b2'][None, :],    # (1, 1)
        f['w1'].T,           # (H, H//2)
        f['b1'][None, :],    # (1, H//2)
        f['w2'].T,           # (H//2, O)
        f['b2'][None, :],    # (1, O)
    )
    return dict(lstm=lstm, head=head)


# ----------------------------------------------------------------------------
# Pure-JAX reference (PyTorch semantics) for correctness check.
# ----------------------------------------------------------------------------
def reference_forward(x, params):
    B, T, _ = x.shape
    seq = x
    for layer in params['lstm']:
        H = layer['w_hh'].shape[1]
        wih_t, whh_t = layer['w_ih'].T, layer['w_hh'].T
        b = layer['b_ih'] + layer['b_hh']
        h = jnp.zeros((B, H), jnp.float32)
        c = jnp.zeros((B, H), jnp.float32)
        outs = []
        for t in range(T):
            g = seq[:, t, :] @ wih_t + h @ whh_t + b
            i = jax.nn.sigmoid(g[:, 0:H])
            f = jax.nn.sigmoid(g[:, H:2 * H])
            gg = jnp.tanh(g[:, 2 * H:3 * H])
            o = jax.nn.sigmoid(g[:, 3 * H:4 * H])
            c = f * c + i * gg
            h = o * jnp.tanh(c)
            outs.append(h)
        seq = jnp.stack(outs, axis=1)
    a, f = params['attn'], params['fc']
    hh = jnp.tanh(seq @ a['w1'].T + a['b1'])
    scores = hh @ a['w2'].T + a['b2']
    attn = jax.nn.softmax(scores, axis=1)
    context = jnp.sum(attn * seq, axis=1)
    y = jnp.maximum(context @ f['w1'].T + f['b1'], 0.0)
    pred = y @ f['w2'].T + f['b2']
    return pred, attn


if __name__ == "__main__":
    B, T = 2, 8
    input_dim, hidden_dim, num_layers, output_dim = 4, 32, 2, 1

    key = jax.random.PRNGKey(0)
    kx, kp = jax.random.split(key)
    x = jax.random.normal(kx, (B, T, input_dim), jnp.float32)
    params = make_params(kp, input_dim, hidden_dim, num_layers, output_dim)
    packed = pack_params(params)

    pred, attn = jax.block_until_ready(stock_price_lstm_forward(x, packed))

    ref_pred, ref_attn = reference_forward(x, params)
    assert pred.shape == (B, output_dim)
    assert attn.shape == (B, T, 1)
    assert jnp.allclose(pred, ref_pred, rtol=2e-3, atol=1e-4)
    assert jnp.allclose(attn, ref_attn, rtol=2e-3, atol=1e-4)

    print("KERNEL_OK")
</pallas_src>

<mosaic_0001>
module attributes {stable_mosaic.version = 11 : i64} {
  func.func @_fused_kernel(%arg0: i32, %arg1: memref<8x8x4xf32, #tpu.memory_space<vmem>>, %arg2: memref<4x128xf32, #tpu.memory_space<vmem>>, %arg3: memref<32x128xf32, #tpu.memory_space<vmem>>, %arg4: memref<1x128xf32, #tpu.memory_space<vmem>>, %arg5: memref<32x128xf32, #tpu.memory_space<vmem>>, %arg6: memref<32x128xf32, #tpu.memory_space<vmem>>, %arg7: memref<1x128xf32, #tpu.memory_space<vmem>>, %arg8: memref<32x32xf32, #tpu.memory_space<vmem>>, %arg9: memref<1x32xf32, #tpu.memory_space<vmem>>, %arg10: memref<32x1xf32, #tpu.memory_space<vmem>>, %arg11: memref<1x1xf32, #tpu.memory_space<vmem>>, %arg12: memref<32x16xf32, #tpu.memory_space<vmem>>, %arg13: memref<1x16xf32, #tpu.memory_space<vmem>>, %arg14: memref<16x1xf32, #tpu.memory_space<vmem>>, %arg15: memref<1x1xf32, #tpu.memory_space<vmem>>, %arg16: memref<8x1xf32, #tpu.memory_space<vmem>>, %arg17: memref<8x8x1xf32, #tpu.memory_space<vmem>>, %arg18: memref<8x8x32xf32, #tpu.memory_space<vmem>>, %arg19: memref<8x8x128xf32, #tpu.memory_space<vmem>>) attributes {dimension_semantics = [#tpu.dimension_semantics<parallel>], iteration_bounds = array<i64: 1>, scalar_prefetch = 0 : i64, scratch_operands = 2 : i64, tpu.core_type = #tpu.core_type<tc>, window_params = [{transform_indices = @transform_0, window_bounds = array<i64: 8, 8, 4>}, {pipeline_mode = #tpu.pipeline_mode<synchronous>, transform_indices = @transform_1, window_bounds = array<i64: 4, 128>}, {pipeline_mode = #tpu.pipeline_mode<synchronous>, transform_indices = @transform_2, window_bounds = array<i64: 32, 128>}, {pipeline_mode = #tpu.pipeline_mode<synchronous>, transform_indices = @transform_3, window_bounds = array<i64: 1, 128>}, {pipeline_mode = #tpu.pipeline_mode<synchronous>, transform_indices = @transform_4, window_bounds = array<i64: 32, 128>}, {pipeline_mode = #tpu.pipeline_mode<synchronous>, transform_indices = @transform_5, window_bounds = array<i64: 32, 128>}, {pipeline_mode = #tpu.pipeline_mode<synchronous>, transform_indices = @transform_6, window_bounds = array<i64: 1, 128>}, {pipeline_mode = #tpu.pipeline_mode<synchronous>, transform_indices = @transform_7, window_bounds = array<i64: 32, 32>}, {pipeline_mode = #tpu.pipeline_mode<synchronous>, transform_indices = @transform_8, window_bounds = array<i64: 1, 32>}, {pipeline_mode = #tpu.pipeline_mode<synchronous>, transform_indices = @transform_9, window_bounds = array<i64: 32, 1>}, {pipeline_mode = #tpu.pipeline_mode<synchronous>, transform_indices = @transform_10, window_bounds = array<i64: 1, 1>}, {pipeline_mode = #tpu.pipeline_mode<synchronous>, transform_indices = @transform_11, window_bounds = array<i64: 32, 16>}, {pipeline_mode = #tpu.pipeline_mode<synchronous>, transform_indices = @transform_12, window_bounds = array<i64: 1, 16>}, {pipeline_mode = #tpu.pipeline_mode<synchronous>, transform_indices = @transform_13, window_bounds = array<i64: 16, 1>}, {pipeline_mode = #tpu.pipeline_mode<synchronous>, transform_indices = @transform_14, window_bounds = array<i64: 1, 1>}, {transform_indices = @transform_15, window_bounds = array<i64: 8, 1>}, {transform_indices = @transform_16, window_bounds = array<i64: 8, 8, 1>}]} {
    %c0 = arith.constant 0 : index
    %c0_0 = arith.constant 0 : index
    %0 = vector.load %arg2[%c0, %c0_0] : memref<4x128xf32, #tpu.memory_space<vmem>>, vector<4x128xf32>
    %c0_1 = arith.constant 0 : index
    %c0_2 = arith.constant 0 : index
    %1 = vector.load %arg3[%c0_1, %c0_2] : memref<32x128xf32, #tpu.memory_space<vmem>>, vector<32x128xf32>
    %c0_3 = arith.constant 0 : index
    %c0_4 = arith.constant 0 : index
    %2 = vector.load %arg4[%c0_3, %c0_4] : memref<1x128xf32, #tpu.memory_space<vmem>>, vector<1x128xf32>
    %c0_5 = arith.constant 0 : index
    %c0_6 = arith.constant 0 : index
    %c0_7 = arith.constant 0 : index
    %3 = vector.load %arg1[%c0_5, %c0_6, %c0_7] : memref<8x8x4xf32, #tpu.memory_space<vmem>>, vector<8x8x4xf32>
    %4 = vector.shape_cast %3 : vector<8x8x4xf32> to vector<64x4xf32>
    %cst = arith.constant dense<0.000000e+00> : vector<64x128xf32>
    %5 = tpu.matmul %4, %0, %cst {dimension_numbers = #tpu.dot_dimension_numbers<[1], [0], [0], [1], [0, 0, 1, 1], [], []>} : vector<64x4xf32>, vector<4x128xf32>, vector<64x128xf32> -> vector<64x128xf32>
    %6 = vector.broadcast %2 : vector<1x128xf32> to vector<64x128xf32>
    %7 = arith.addf %5, %6 : vector<64x128xf32>
    %8 = vector.shape_cast %7 : vector<64x128xf32> to vector<8x8x128xf32>
    %c0_8 = arith.constant 0 : index
    %c0_9 = arith.constant 0 : index
    %c0_10 = arith.constant 0 : index
    %9 = vector.load %arg19[%c0_8, %c0_9, %c0_10] : memref<8x8x128xf32, #tpu.memory_space<vmem>>, vector<8x8x128xf32>
    tpu.vector_store %arg19[%c0_8, %c0_9, %c0_10], %8 {strides = array<i32>} : memref<8x8x128xf32, #tpu.memory_space<vmem>>, vector<8x8x128xf32>,
    %cst_11 = arith.constant 0.000000e+00 : f32
    %10 = vector.broadcast %cst_11 : f32 to vector<8x32xf32>
    %cst_12 = arith.constant 0.000000e+00 : f32
    %11 = vector.broadcast %cst_12 : f32 to vector<8x32xf32>
    %c0_13 = arith.constant 0 : index
    %c0_14 = arith.constant 0 : index
    %c0_15 = arith.constant 0 : index
    %12 = vector.load %arg19[%c0_13, %c0_14, %c0_15] : memref<8x8x128xf32, #tpu.memory_space<vmem>>, vector<1x8x128xf32>
    %13 = vector.shape_cast %12 : vector<1x8x128xf32> to vector<8x128xf32>
    %cst_16 = arith.constant dense<0.000000e+00> : vector<8x128xf32>
    %14 = tpu.matmul %10, %1, %cst_16 {dimension_numbers = #tpu.dot_dimension_numbers<[1], [0], [0], [1], [0, 0, 1, 1], [], []>} : vector<8x32xf32>, vector<32x128xf32>, vector<8x128xf32> -> vector<8x128xf32>
    %15 = arith.addf %13, %14 : vector<8x128xf32>
    %16 = arith.negf %15 : vector<8x128xf32>
    %17 = math.exp %16 : vector<8x128xf32>
    %cst_17 = arith.constant 1.000000e+00 : f32
    %18 = vector.broadcast %cst_17 : f32 to vector<8x128xf32>
    %19 = arith.addf %18, %17 : vector<8x128xf32>
    %20 = arith.divf %18, %19 : vector<8x128xf32>
    %21 = math.tanh %15 : vector<8x128xf32>
    %22 = vector.extract_strided_slice %20 {offsets = [0, 0], sizes = [8, 32], strides = [1, 1]} : vector<8x128xf32> to vector<8x32xf32>
    %23 = vector.extract_strided_slice %20 {offsets = [0, 32], sizes = [8, 32], strides = [1, 1]} : vector<8x128xf32> to vector<8x32xf32>
    %24 = vector.extract_strided_slice %21 {offsets = [0, 64], sizes = [8, 32], strides = [1, 1]} : vector<8x128xf32> to vector<8x32xf32>
    %25 = vector.extract_strided_slice %20 {offsets = [0, 96], sizes = [8, 32], strides = [1, 1]} : vector<8x128xf32> to vector<8x32xf32>
    %26 = arith.mulf %23, %11 : vector<8x32xf32>
    %27 = arith.mulf %22, %24 : vector<8x32xf32>
    %28 = arith.addf %26, %27 : vector<8x32xf32>
    %29 = math.tanh %28 : vector<8x32xf32>
    %30 = arith.mulf %25, %29 : vector<8x32xf32>
    %c0_18 = arith.constant 0 : index
    %c0_19 = arith.constant 0 : index
    %c0_20 = arith.constant 0 : index
    %31 = vector.load %arg18[%c0_18, %c0_19, %c0_20] : memref<8x8x32xf32, #tpu.memory_space<vmem>>, vector<1x8x32xf32>
    %32 = vector.shape_cast %31 : vector<1x8x32xf32> to vector<8x32xf32>
    %33 = vector.shape_cast %30 : vector<8x32xf32> to vector<1x8x32xf32>
    tpu.vector_store %arg18[%c0_18, %c0_19, %c0_20], %33 {strides = array<i32>} : memref<8x8x32xf32, #tpu.memory_space<vmem>>, vector<1x8x32xf32>,
    %c1 = arith.constant 1 : index
    %c0_21 = arith.constant 0 : index
    %c0_22 = arith.constant 0 : index
    %34 = vector.load %arg19[%c1, %c0_21, %c0_22] : memref<8x8x128xf32, #tpu.memory_space<vmem>>, vector<1x8x128xf32>
    %35 = vector.shape_cast %34 : vector<1x8x128xf32> to vector<8x128xf32>
    %cst_23 = arith.constant dense<0.000000e+00> : vector<8x128xf32>
    %36 = tpu.matmul %30, %1, %cst_23 {dimension_numbers = #tpu.dot_dimension_numbers<[1], [0], [0], [1], [0, 0, 1, 1], [], []>} : vector<8x32xf32>, vector<32x128xf32>, vector<8x128xf32> -> vector<8x128xf32>
    %37 = arith.addf %35, %36 : vector<8x128xf32>
    %38 = arith.negf %37 : vector<8x128xf32>
    %39 = math.exp %38 : vector<8x128xf32>
    %cst_24 = arith.constant 1.000000e+00 : f32
    %40 = vector.broadcast %cst_24 : f32 to vector<8x128xf32>
    %41 = arith.addf %40, %39 : vector<8x128xf32>
    %42 = arith.divf %40, %41 : vector<8x128xf32>
    %43 = math.tanh %37 : vector<8x128xf32>
    %44 = vector.extract_strided_slice %42 {offsets = [0, 0], sizes = [8, 32], strides = [1, 1]} : vector<8x128xf32> to vector<8x32xf32>
    %45 = vector.extract_strided_slice %42 {offsets = [0, 32], sizes = [8, 32], strides = [1, 1]} : vector<8x128xf32> to vector<8x32xf32>
    %46 = vector.extract_strided_slice %43 {offsets = [0, 64], sizes = [8, 32], strides = [1, 1]} : vector<8x128xf32> to vector<8x32xf32>
    %47 = vector.extract_strided_slice %42 {offsets = [0, 96], sizes = [8, 32], strides = [1, 1]} : vector<8x128xf32> to vector<8x32xf32>
    %48 = arith.mulf %45, %28 : vector<8x32xf32>
    %49 = arith.mulf %44, %46 : vector<8x32xf32>
    %50 = arith.addf %48, %49 : vector<8x32xf32>
    %51 = math.tanh %50 : vector<8x32xf32>
    %52 = arith.mulf %47, %51 : vector<8x32xf32>
    %c1_25 = arith.constant 1 : index
    %c0_26 = arith.constant 0 : index
    %c0_27 = arith.constant 0 : index
    %53 = vector.load %arg18[%c1_25, %c0_26, %c0_27] : memref<8x8x32xf32, #tpu.memory_space<vmem>>, vector<1x8x32xf32>
    %54 = vector.shape_cast %53 : vector<1x8x32xf32> to vector<8x32xf32>
    %55 = vector.shape_cast %52 : vector<8x32xf32> to vector<1x8x32xf32>
    tpu.vector_store %arg18[%c1_25, %c0_26, %c0_27], %55 {strides = array<i32>} : memref<8x8x32xf32, #tpu.memory_space<vmem>>, vector<1x8x32xf32>,
    %c2 = arith.constant 2 : index
    %c0_28 = arith.constant 0 : index
    %c0_29 = arith.constant 0 : index
    %56 = vector.load %arg19[%c2, %c0_28, %c0_29] : memref<8x8x128xf32, #tpu.memory_space<vmem>>, vector<1x8x128xf32>
    %57 = vector.shape_cast %56 : vector<1x8x128xf32> to vector<8x128xf32>
    %cst_30 = arith.constant dense<0.000000e+00> : vector<8x128xf32>
    %58 = tpu.matmul %52, %1, %cst_30 {dimension_numbers = #tpu.dot_dimension_numbers<[1], [0], [0], [1], [0, 0, 1, 1], [], []>} : vector<8x32xf32>, vector<32x128xf32>, vector<8x128xf32> -> vector<8x128xf32>
    %59 = arith.addf %57, %58 : vector<8x128xf32>
    %60 = arith.negf %59 : vector<8x128xf32>
    %61 = math.exp %60 : vector<8x128xf32>
    %cst_31 = arith.constant 1.000000e+00 : f32
    %62 = vector.broadcast %cst_31 : f32 to vector<8x128xf32>
    %63 = arith.addf %62, %61 : vector<8x128xf32>
    %64 = arith.divf %62, %63 : vector<8x128xf32>
    %65 = math.tanh %59 : vector<8x128xf32>
    %66 = vector.extract_strided_slice %64 {offsets = [0, 0], sizes = [8, 32], strides = [1, 1]} : vector<8x128xf32> to vector<8x32xf32>
    %67 = vector.extract_strided_slice %64 {offsets = [0, 32], sizes = [8, 32], strides = [1, 1]} : vector<8x128xf32> to vector<8x32xf32>
    %68 = vector.extract_strided_slice %65 {offsets = [0, 64], sizes = [8, 32], strides = [1, 1]} : vector<8x128xf32> to vector<8x32xf32>
    %69 = vector.extract_strided_slice %64 {offsets = [0, 96], sizes = [8, 32], strides = [1, 1]} : vector<8x128xf32> to vector<8x32xf32>
    %70 = arith.mulf %67, %50 : vector<8x32xf32>
    %71 = arith.mulf %66, %68 : vector<8x32xf32>
    %72 = arith.addf %70, %71 : vector<8x32xf32>
    %73 = math.tanh %72 : vector<8x32xf32>
    %74 = arith.mulf %69, %73 : vector<8x32xf32>
    %c2_32 = arith.constant 2 : index
    %c0_33 = arith.constant 0 : index
    %c0_34 = arith.constant 0 : index
    %75 = vector.load %arg18[%c2_32, %c0_33, %c0_34] : memref<8x8x32xf32, #tpu.memory_space<vmem>>, vector<1x8x32xf32>
    %76 = vector.shape_cast %75 : vector<1x8x32xf32> to vector<8x32xf32>
    %77 = vector.shape_cast %74 : vector<8x32xf32> to vector<1x8x32xf32>
    tpu.vector_store %arg18[%c2_32, %c0_33, %c0_34], %77 {strides = array<i32>} : memref<8x8x32xf32, #tpu.memory_space<vmem>>, vector<1x8x32xf32>,
    %c3 = arith.constant 3 : index
    %c0_35 = arith.constant 0 : index
    %c0_36 = arith.constant 0 : index
    %78 = vector.load %arg19[%c3, %c0_35, %c0_36] : memref<8x8x128xf32, #tpu.memory_space<vmem>>, vector<1x8x128xf32>
    %79 = vector.shape_cast %78 : vector<1x8x128xf32> to vector<8x128xf32>
    %cst_37 = arith.constant dense<0.000000e+00> : vector<8x128xf32>
    %80 = tpu.matmul %74, %1, %cst_37 {dimension_numbers = #tpu.dot_dimension_numbers<[1], [0], [0], [1], [0, 0, 1, 1], [], []>} : vector<8x32xf32>, vector<32x128xf32>, vector<8x128xf32> -> vector<8x128xf32>
    %81 = arith.addf %79, %80 : vector<8x128xf32>
    %82 = arith.negf %81 : vector<8x128xf32>
    %83 = math.exp %82 : vector<8x128xf32>
    %cst_38 = arith.constant 1.000000e+00 : f32
    %84 = vector.broadcast %cst_38 : f32 to vector<8x128xf32>
    %85 = arith.addf %84, %83 : vector<8x128xf32>
    %86 = arith.divf %84, %85 : vector<8x128xf32>
    %87 = math.tanh %81 : vector<8x128xf32>
    %88 = vector.extract_strided_slice %86 {offsets = [0, 0], sizes = [8, 32], strides = [1, 1]} : vector<8x128xf32> to vector<8x32xf32>
    %89 = vector.extract_strided_slice %86 {offsets = [0, 32], sizes = [8, 32], strides = [1, 1]} : vector<8x128xf32> to vector<8x32xf32>
    %90 = vector.extract_strided_slice %87 {offsets = [0, 64], sizes = [8, 32], strides = [1, 1]} : vector<8x128xf32> to vector<8x32xf32>
    %91 = vector.extract_strided_slice %86 {offsets = [0, 96], sizes = [8, 32], strides = [1, 1]} : vector<8x128xf32> to vector<8x32xf32>
    %92 = arith.mulf %89, %72 : vector<8x32xf32>
    %93 = arith.mulf %88, %90 : vector<8x32xf32>
    %94 = arith.addf %92, %93 : vector<8x32xf32>
    %95 = math.tanh %94 : vector<8x32xf32>
    %96 = arith.mulf %91, %95 : vector<8x32xf32>
    %c3_39 = arith.constant 3 : index
    %c0_40 = arith.constant 0 : index
    %c0_41 = arith.constant 0 : index
    %97 = vector.load %arg18[%c3_39, %c0_40, %c0_41] : memref<8x8x32xf32, #tpu.memory_space<vmem>>, vector<1x8x32xf32>
    %98 = vector.shape_cast %97 : vector<1x8x32xf32> to vector<8x32xf32>
    %99 = vector.shape_cast %96 : vector<8x32xf32> to vector<1x8x32xf32>
    tpu.vector_store %arg18[%c3_39, %c0_40, %c0_41], %99 {strides = array<i32>} : memref<8x8x32xf32, #tpu.memory_space<vmem>>, vector<1x8x32xf32>,
    %c4 = arith.constant 4 : index
    %c0_42 = arith.constant 0 : index
    %c0_43 = arith.constant 0 : index
    %100 = vector.load %arg19[%c4, %c0_42, %c0_43] : memref<8x8x128xf32, #tpu.memory_space<vmem>>, vector<1x8x128xf32>
    %101 = vector.shape_cast %100 : vector<1x8x128xf32> to vector<8x128xf32>
    %cst_44 = arith.constant dense<0.000000e+00> : vector<8x128xf32>
    %102 = tpu.matmul %96, %1, %cst_44 {dimension_numbers = #tpu.dot_dimension_numbers<[1], [0], [0], [1], [0, 0, 1, 1], [], []>} : vector<8x32xf32>, vector<32x128xf32>, vector<8x128xf32> -> vector<8x128xf32>
    %103 = arith.addf %101, %102 : vector<8x128xf32>
    %104 = arith.negf %103 : vector<8x128xf32>
    %105 = math.exp %104 : vector<8x128xf32>
    %cst_45 = arith.constant 1.000000e+00 : f32
    %106 = vector.broadcast %cst_45 : f32 to vector<8x128xf32>
    %107 = arith.addf %106, %105 : vector<8x128xf32>
    %108 = arith.divf %106, %107 : vector<8x128xf32>
    %109 = math.tanh %103 : vector<8x128xf32>
    %110 = vector.extract_strided_slice %108 {offsets = [0, 0], sizes = [8, 32], strides = [1, 1]} : vector<8x128xf32> to vector<8x32xf32>
    %111 = vector.extract_strided_slice %108 {offsets = [0, 32], sizes = [8, 32], strides = [1, 1]} : vector<8x128xf32> to vector<8x32xf32>
    %112 = vector.extract_strided_slice %109 {offsets = [0, 64], sizes = [8, 32], strides = [1, 1]} : vector<8x128xf32> to vector<8x32xf32>
    %113 = vector.extract_strided_slice %108 {offsets = [0, 96], sizes = [8, 32], strides = [1, 1]} : vector<8x128xf32> to vector<8x32xf32>
    %114 = arith.mulf %111, %94 : vector<8x32xf32>
    %115 = arith.mulf %110, %112 : vector<8x32xf32>
    %116 = arith.addf %114, %115 : vector<8x32xf32>
    %117 = math.tanh %116 : vector<8x32xf32>
    %118 = arith.mulf %113, %117 : vector<8x32xf32>
    %c4_46 = arith.constant 4 : index
    %c0_47 = arith.constant 0 : index
    %c0_48 = arith.constant 0 : index
    %119 = vector.load %arg18[%c4_46, %c0_47, %c0_48] : memref<8x8x32xf32, #tpu.memory_space<vmem>>, vector<1x8x32xf32>
    %120 = vector.shape_cast %119 : vector<1x8x32xf32> to vector<8x32xf32>
    %121 = vector.shape_cast %118 : vector<8x32xf32> to vector<1x8x32xf32>
    tpu.vector_store %arg18[%c4_46, %c0_47, %c0_48], %121 {strides = array<i32>} : memref<8x8x32xf32, #tpu.memory_space<vmem>>, vector<1x8x32xf32>,
    %c5 = arith.constant 5 : index
    %c0_49 = arith.constant 0 : index
    %c0_50 = arith.constant 0 : index
    %122 = vector.load %arg19[%c5, %c0_49, %c0_50] : memref<8x8x128xf32, #tpu.memory_space<vmem>>, vector<1x8x128xf32>
    %123 = vector.shape_cast %122 : vector<1x8x128xf32> to vector<8x128xf32>
    %cst_51 = arith.constant dense<0.000000e+00> : vector<8x128xf32>
    %124 = tpu.matmul %118, %1, %cst_51 {dimension_numbers = #tpu.dot_dimension_numbers<[1], [0], [0], [1], [0, 0, 1, 1], [], []>} : vector<8x32xf32>, vector<32x128xf32>, vector<8x128xf32> -> vector<8x128xf32>
    %125 = arith.addf %123, %124 : vector<8x128xf32>
    %126 = arith.negf %125 : vector<8x128xf32>
    %127 = math.exp %126 : vector<8x128xf32>
    %cst_52 = arith.constant 1.000000e+00 : f32
    %128 = vector.broadcast %cst_52 : f32 to vector<8x128xf32>
    %129 = arith.addf %128, %127 : vector<8x128xf32>
    %130 = arith.divf %128, %129 : vector<8x128xf32>
    %131 = math.tanh %125 : vector<8x128xf32>
    %132 = vector.extract_strided_slice %130 {offsets = [0, 0], sizes = [8, 32], strides = [1, 1]} : vector<8x128xf32> to vector<8x32xf32>
    %133 = vector.extract_strided_slice %130 {offsets = [0, 32], sizes = [8, 32], strides = [1, 1]} : vector<8x128xf32> to vector<8x32xf32>
    %134 = vector.extract_strided_slice %131 {offsets = [0, 64], sizes = [8, 32], strides = [1, 1]} : vector<8x128xf32> to vector<8x32xf32>
    %135 = vector.extract_strided_slice %130 {offsets = [0, 96], sizes = [8, 32], strides = [1, 1]} : vector<8x128xf32> to vector<8x32xf32>
    %136 = arith.mulf %133, %116 : vector<8x32xf32>
    %137 = arith.mulf %132, %134 : vector<8x32xf32>
    %138 = arith.addf %136, %137 : vector<8x32xf32>
    %139 = math.tanh %138 : vector<8x32xf32>
    %140 = arith.mulf %135, %139 : vector<8x32xf32>
    %c5_53 = arith.constant 5 : index
    %c0_54 = arith.constant 0 : index
    %c0_55 = arith.constant 0 : index
    %141 = vector.load %arg18[%c5_53, %c0_54, %c0_55] : memref<8x8x32xf32, #tpu.memory_space<vmem>>, vector<1x8x32xf32>
    %142 = vector.shape_cast %141 : vector<1x8x32xf32> to vector<8x32xf32>
    %143 = vector.shape_cast %140 : vector<8x32xf32> to vector<1x8x32xf32>
    tpu.vector_store %arg18[%c5_53, %c0_54, %c0_55], %143 {strides = array<i32>} : memref<8x8x32xf32, #tpu.memory_space<vmem>>, vector<1x8x32xf32>,
    %c6 = arith.constant 6 : index
    %c0_56 = arith.constant 0 : index
    %c0_57 = arith.constant 0 : index
    %144 = vector.load %arg19[%c6, %c0_56, %c0_57] : memref<8x8x128xf32, #tpu.memory_space<vmem>>, vector<1x8x128xf32>
    %145 = vector.shape_cast %144 : vector<1x8x128xf32> to vector<8x128xf32>
    %cst_58 = arith.constant dense<0.000000e+00> : vector<8x128xf32>
    %146 = tpu.matmul %140, %1, %cst_58 {dimension_numbers = #tpu.dot_dimension_numbers<[1], [0], [0], [1], [0, 0, 1, 1], [], []>} : vector<8x32xf32>, vector<32x128xf32>, vector<8x128xf32> -> vector<8x128xf32>
    %147 = arith.addf %145, %146 : vector<8x128xf32>
    %148 = arith.negf %147 : vector<8x128xf32>
    %149 = math.exp %148 : vector<8x128xf32>
    %cst_59 = arith.constant 1.000000e+00 : f32
    %150 = vector.broadcast %cst_59 : f32 to vector<8x128xf32>
    %151 = arith.addf %150, %149 : vector<8x128xf32>
    %152 = arith.divf %150, %151 : vector<8x128xf32>
    %153 = math.tanh %147 : vector<8x128xf32>
    %154 = vector.extract_strided_slice %152 {offsets = [0, 0], sizes = [8, 32], strides = [1, 1]} : vector<8x128xf32> to vector<8x32xf32>
    %155 = vector.extract_strided_slice %152 {offsets = [0, 32], sizes = [8, 32], strides = [1, 1]} : vector<8x128xf32> to vector<8x32xf32>
    %156 = vector.extract_strided_slice %153 {offsets = [0, 64], sizes = [8, 32], strides = [1, 1]} : vector<8x128xf32> to vector<8x32xf32>
    %157 = vector.extract_strided_slice %152 {offsets = [0, 96], sizes = [8, 32], strides = [1, 1]} : vector<8x128xf32> to vector<8x32xf32>
    %158 = arith.mulf %155, %138 : vector<8x32xf32>
    %159 = arith.mulf %154, %156 : vector<8x32xf32>
    %160 = arith.addf %158, %159 : vector<8x32xf32>
    %161 = math.tanh %160 : vector<8x32xf32>
    %162 = arith.mulf %157, %161 : vector<8x32xf32>
    %c6_60 = arith.constant 6 : index
    %c0_61 = arith.constant 0 : index
    %c0_62 = arith.constant 0 : index
    %163 = vector.load %arg18[%c6_60, %c0_61, %c0_62] : memref<8x8x32xf32, #tpu.memory_space<vmem>>, vector<1x8x32xf32>
    %164 = vector.shape_cast %163 : vector<1x8x32xf32> to vector<8x32xf32>
    %165 = vector.shape_cast %162 : vector<8x32xf32> to vector<1x8x32xf32>
    tpu.vector_store %arg18[%c6_60, %c0_61, %c0_62], %165 {strides = array<i32>} : memref<8x8x32xf32, #tpu.memory_space<vmem>>, vector<1x8x32xf32>,
    %c7 = arith.constant 7 : index
    %c0_63 = arith.constant 0 : index
    %c0_64 = arith.constant 0 : index
    %166 = vector.load %arg19[%c7, %c0_63, %c0_64] : memref<8x8x128xf32, #tpu.memory_space<vmem>>, vector<1x8x128xf32>
    %167 = vector.shape_cast %166 : vector<1x8x128xf32> to vector<8x128xf32>
    %cst_65 = arith.constant dense<0.000000e+00> : vector<8x128xf32>
    %168 = tpu.matmul %162, %1, %cst_65 {dimension_numbers = #tpu.dot_dimension_numbers<[1], [0], [0], [1], [0, 0, 1, 1], [], []>} : vector<8x32xf32>, vector<32x128xf32>, vector<8x128xf32> -> vector<8x128xf32>
    %169 = arith.addf %167, %168 : vector<8x128xf32>
    %170 = arith.negf %169 : vector<8x128xf32>
    %171 = math.exp %170 : vector<8x128xf32>
    %cst_66 = arith.constant 1.000000e+00 : f32
    %172 = vector.broadcast %cst_66 : f32 to vector<8x128xf32>
    %173 = arith.addf %172, %171 : vector<8x128xf32>
    %174 = arith.divf %172, %173 : vector<8x128xf32>
    %175 = math.tanh %169 : vector<8x128xf32>
    %176 = vector.extract_strided_slice %174 {offsets = [0, 0], sizes = [8, 32], strides = [1, 1]} : vector<8x128xf32> to vector<8x32xf32>
    %177 = vector.extract_strided_slice %174 {offsets = [0, 32], sizes = [8, 32], strides = [1, 1]} : vector<8x128xf32> to vector<8x32xf32>
    %178 = vector.extract_strided_slice %175 {offsets = [0, 64], sizes = [8, 32], strides = [1, 1]} : vector<8x128xf32> to vector<8x32xf32>
    %179 = vector.extract_strided_slice %174 {offsets = [0, 96], sizes = [8, 32], strides = [1, 1]} : vector<8x128xf32> to vector<8x32xf32>
    %180 = arith.mulf %177, %160 : vector<8x32xf32>
    %181 = arith.mulf %176, %178 : vector<8x32xf32>
    %182 = arith.addf %180, %181 : vector<8x32xf32>
    %183 = math.tanh %182 : vector<8x32xf32>
    %184 = arith.mulf %179, %183 : vector<8x32xf32>
    %c7_67 = arith.constant 7 : index
    %c0_68 = arith.constant 0 : index
    %c0_69 = arith.constant 0 : index
    %185 = vector.load %arg18[%c7_67, %c0_68, %c0_69] : memref<8x8x32xf32, #tpu.memory_space<vmem>>, vector<1x8x32xf32>
    %186 = vector.shape_cast %185 : vector<1x8x32xf32> to vector<8x32xf32>
    %187 = vector.shape_cast %184 : vector<8x32xf32> to vector<1x8x32xf32>
    tpu.vector_store %arg18[%c7_67, %c0_68, %c0_69], %187 {strides = array<i32>} : memref<8x8x32xf32, #tpu.memory_space<vmem>>, vector<1x8x32xf32>,
    %c0_70 = arith.constant 0 : index
    %c0_71 = arith.constant 0 : index
    %188 = vector.load %arg5[%c0_70, %c0_71] : memref<32x128xf32, #tpu.memory_space<vmem>>, vector<32x128xf32>
    %c0_72 = arith.constant 0 : index
    %c0_73 = arith.constant 0 : index
    %189 = vector.load %arg6[%c0_72, %c0_73] : memref<32x128xf32, #tpu.memory_space<vmem>>, vector<32x128xf32>
    %c0_74 = arith.constant 0 : index
    %c0_75 = arith.constant 0 : index
    %190 = vector.load %arg7[%c0_74, %c0_75] : memref<1x128xf32, #tpu.memory_space<vmem>>, vector<1x128xf32>
    %c0_76 = arith.constant 0 : index
    %c0_77 = arith.constant 0 : index
    %c0_78 = arith.constant 0 : index
    %191 = vector.load %arg18[%c0_76, %c0_77, %c0_78] : memref<8x8x32xf32, #tpu.memory_space<vmem>>, vector<8x8x32xf32>
    %192 = vector.shape_cast %191 : vector<8x8x32xf32> to vector<64x32xf32>
    %cst_79 = arith.constant dense<0.000000e+00> : vector<64x128xf32>
    %193 = tpu.matmul %192, %188, %cst_79 {dimension_numbers = #tpu.dot_dimension_numbers<[1], [0], [0], [1], [0, 0, 1, 1], [], []>} : vector<64x32xf32>, vector<32x128xf32>, vector<64x128xf32> -> vector<64x128xf32>
    %194 = vector.broadcast %190 : vector<1x128xf32> to vector<64x128xf32>
    %195 = arith.addf %193, %194 : vector<64x128xf32>
    %196 = vector.shape_cast %195 : vector<64x128xf32> to vector<8x8x128xf32>
    %c0_80 = arith.constant 0 : index
    %c0_81 = arith.constant 0 : index
    %c0_82 = arith.constant 0 : index
    %197 = vector.load %arg19[%c0_80, %c0_81, %c0_82] : memref<8x8x128xf32, #tpu.memory_space<vmem>>, vector<8x8x128xf32>
    tpu.vector_store %arg19[%c0_80, %c0_81, %c0_82], %196 {strides = array<i32>} : memref<8x8x128xf32, #tpu.memory_space<vmem>>, vector<8x8x128xf32>,
    %cst_83 = arith.constant 0.000000e+00 : f32
    %198 = vector.broadcast %cst_83 : f32 to vector<8x32xf32>
    %cst_84 = arith.constant 0.000000e+00 : f32
    %199 = vector.broadcast %cst_84 : f32 to vector<8x32xf32>
    %c0_85 = arith.constant 0 : index
    %c0_86 = arith.constant 0 : index
    %c0_87 = arith.constant 0 : index
    %200 = vector.load %arg19[%c0_85, %c0_86, %c0_87] : memref<8x8x128xf32, #tpu.memory_space<vmem>>, vector<1x8x128xf32>
    %201 = vector.shape_cast %200 : vector<1x8x128xf32> to vector<8x128xf32>
    %cst_88 = arith.constant dense<0.000000e+00> : vector<8x128xf32>
    %202 = tpu.matmul %198, %189, %cst_88 {dimension_numbers = #tpu.dot_dimension_numbers<[1], [0], [0], [1], [0, 0, 1, 1], [], []>} : vector<8x32xf32>, vector<32x128xf32>, vector<8x128xf32> -> vector<8x128xf32>
    %203 = arith.addf %201, %202 : vector<8x128xf32>
    %204 = arith.negf %203 : vector<8x128xf32>
    %205 = math.exp %204 : vector<8x128xf32>
    %cst_89 = arith.constant 1.000000e+00 : f32
    %206 = vector.broadcast %cst_89 : f32 to vector<8x128xf32>
    %207 = arith.addf %206, %205 : vector<8x128xf32>
    %208 = arith.divf %206, %207 : vector<8x128xf32>
    %209 = math.tanh %203 : vector<8x128xf32>
    %210 = vector.extract_strided_slice %208 {offsets = [0, 0], sizes = [8, 32], strides = [1, 1]} : vector<8x128xf32> to vector<8x32xf32>
    %211 = vector.extract_strided_slice %208 {offsets = [0, 32], sizes = [8, 32], strides = [1, 1]} : vector<8x128xf32> to vector<8x32xf32>
    %212 = vector.extract_strided_slice %209 {offsets = [0, 64], sizes = [8, 32], strides = [1, 1]} : vector<8x128xf32> to vector<8x32xf32>
    %213 = vector.extract_strided_slice %208 {offsets = [0, 96], sizes = [8, 32], strides = [1, 1]} : vector<8x128xf32> to vector<8x32xf32>
    %214 = arith.mulf %211, %199 : vector<8x32xf32>
    %215 = arith.mulf %210, %212 : vector<8x32xf32>
    %216 = arith.addf %214, %215 : vector<8x32xf32>
    %217 = math.tanh %216 : vector<8x32xf32>
    %218 = arith.mulf %213, %217 : vector<8x32xf32>
    %c0_90 = arith.constant 0 : index
    %c0_91 = arith.constant 0 : index
    %c0_92 = arith.constant 0 : index
    %219 = vector.load %arg18[%c0_90, %c0_91, %c0_92] : memref<8x8x32xf32, #tpu.memory_space<vmem>>, vector<1x8x32xf32>
    %220 = vector.shape_cast %219 : vector<1x8x32xf32> to vector<8x32xf32>
    %221 = vector.shape_cast %218 : vector<8x32xf32> to vector<1x8x32xf32>
    tpu.vector_store %arg18[%c0_90, %c0_91, %c0_92], %221 {strides = array<i32>} : memref<8x8x32xf32, #tpu.memory_space<vmem>>, vector<1x8x32xf32>,
    %c1_93 = arith.constant 1 : index
    %c0_94 = arith.constant 0 : index
    %c0_95 = arith.constant 0 : index
    %222 = vector.load %arg19[%c1_93, %c0_94, %c0_95] : memref<8x8x128xf32, #tpu.memory_space<vmem>>, vector<1x8x128xf32>
    %223 = vector.shape_cast %222 : vector<1x8x128xf32> to vector<8x128xf32>
    %cst_96 = arith.constant dense<0.000000e+00> : vector<8x128xf32>
    %224 = tpu.matmul %218, %189, %cst_96 {dimension_numbers = #tpu.dot_dimension_numbers<[1], [0], [0], [1], [0, 0, 1, 1], [], []>} : vector<8x32xf32>, vector<32x128xf32>, vector<8x128xf32> -> vector<8x128xf32>
    %225 = arith.addf %223, %224 : vector<8x128xf32>
    %226 = arith.negf %225 : vector<8x128xf32>
    %227 = math.exp %226 : vector<8x128xf32>
    %cst_97 = arith.constant 1.000000e+00 : f32
    %228 = vector.broadcast %cst_97 : f32 to vector<8x128xf32>
    %229 = arith.addf %228, %227 : vector<8x128xf32>
    %230 = arith.divf %228, %229 : vector<8x128xf32>
    %231 = math.tanh %225 : vector<8x128xf32>
    %232 = vector.extract_strided_slice %230 {offsets = [0, 0], sizes = [8, 32], strides = [1, 1]} : vector<8x128xf32> to vector<8x32xf32>
    %233 = vector.extract_strided_slice %230 {offsets = [0, 32], sizes = [8, 32], strides = [1, 1]} : vector<8x128xf32> to vector<8x32xf32>
    %234 = vector.extract_strided_slice %231 {offsets = [0, 64], sizes = [8, 32], strides = [1, 1]} : vector<8x128xf32> to vector<8x32xf32>
    %235 = vector.extract_strided_slice %230 {offsets = [0, 96], sizes = [8, 32], strides = [1, 1]} : vector<8x128xf32> to vector<8x32xf32>
    %236 = arith.mulf %233, %216 : vector<8x32xf32>
    %237 = arith.mulf %232, %234 : vector<8x32xf32>
    %238 = arith.addf %236, %237 : vector<8x32xf32>
    %239 = math.tanh %238 : vector<8x32xf32>
    %240 = arith.mulf %235, %239 : vector<8x32xf32>
    %c1_98 = arith.constant 1 : index
    %c0_99 = arith.constant 0 : index
    %c0_100 = arith.constant 0 : index
    %241 = vector.load %arg18[%c1_98, %c0_99, %c0_100] : memref<8x8x32xf32, #tpu.memory_space<vmem>>, vector<1x8x32xf32>
    %242 = vector.shape_cast %241 : vector<1x8x32xf32> to vector<8x32xf32>
    %243 = vector.shape_cast %240 : vector<8x32xf32> to vector<1x8x32xf32>
    tpu.vector_store %arg18[%c1_98, %c0_99, %c0_100], %243 {strides = array<i32>} : memref<8x8x32xf32, #tpu.memory_space<vmem>>, vector<1x8x32xf32>,
    %c2_101 = arith.constant 2 : index
    %c0_102 = arith.constant 0 : index
    %c0_103 = arith.constant 0 : index
    %244 = vector.load %arg19[%c2_101, %c0_102, %c0_103] : memref<8x8x128xf32, #tpu.memory_space<vmem>>, vector<1x8x128xf32>
    %245 = vector.shape_cast %244 : vector<1x8x128xf32> to vector<8x128xf32>
    %cst_104 = arith.constant dense<0.000000e+00> : vector<8x128xf32>
    %246 = tpu.matmul %240, %189, %cst_104 {dimension_numbers = #tpu.dot_dimension_numbers<[1], [0], [0], [1], [0, 0, 1, 1], [], []>} : vector<8x32xf32>, vector<32x128xf32>, vector<8x128xf32> -> vector<8x128xf32>
    %247 = arith.addf %245, %246 : vector<8x128xf32>
    %248 = arith.negf %247 : vector<8x128xf32>
    %249 = math.exp %248 : vector<8x128xf32>
    %cst_105 = arith.constant 1.000000e+00 : f32
    %250 = vector.broadcast %cst_105 : f32 to vector<8x128xf32>
    %251 = arith.addf %250, %249 : vector<8x128xf32>
    %252 = arith.divf %250, %251 : vector<8x128xf32>
    %253 = math.tanh %247 : vector<8x128xf32>
    %254 = vector.extract_strided_slice %252 {offsets = [0, 0], sizes = [8, 32], strides = [1, 1]} : vector<8x128xf32> to vector<8x32xf32>
    %255 = vector.extract_strided_slice %252 {offsets = [0, 32], sizes = [8, 32], strides = [1, 1]} : vector<8x128xf32> to vector<8x32xf32>
    %256 = vector.extract_strided_slice %253 {offsets = [0, 64], sizes = [8, 32], strides = [1, 1]} : vector<8x128xf32> to vector<8x32xf32>
    %257 = vector.extract_strided_slice %252 {offsets = [0, 96], sizes = [8, 32], strides = [1, 1]} : vector<8x128xf32> to vector<8x32xf32>
    %258 = arith.mulf %255, %238 : vector<8x32xf32>
    %259 = arith.mulf %254, %256 : vector<8x32xf32>
    %260 = arith.addf %258, %259 : vector<8x32xf32>
    %261 = math.tanh %260 : vector<8x32xf32>
    %262 = arith.mulf %257, %261 : vector<8x32xf32>
    %c2_106 = arith.constant 2 : index
    %c0_107 = arith.constant 0 : index
    %c0_108 = arith.constant 0 : index
    %263 = vector.load %arg18[%c2_106, %c0_107, %c0_108] : memref<8x8x32xf32, #tpu.memory_space<vmem>>, vector<1x8x32xf32>
    %264 = vector.shape_cast %263 : vector<1x8x32xf32> to vector<8x32xf32>
    %265 = vector.shape_cast %262 : vector<8x32xf32> to vector<1x8x32xf32>
    tpu.vector_store %arg18[%c2_106, %c0_107, %c0_108], %265 {strides = array<i32>} : memref<8x8x32xf32, #tpu.memory_space<vmem>>, vector<1x8x32xf32>,
    %c3_109 = arith.constant 3 : index
    %c0_110 = arith.constant 0 : index
    %c0_111 = arith.constant 0 : index
    %266 = vector.load %arg19[%c3_109, %c0_110, %c0_111] : memref<8x8x128xf32, #tpu.memory_space<vmem>>, vector<1x8x128xf32>
    %267 = vector.shape_cast %266 : vector<1x8x128xf32> to vector<8x128xf32>
    %cst_112 = arith.constant dense<0.000000e+00> : vector<8x128xf32>
    %268 = tpu.matmul %262, %189, %cst_112 {dimension_numbers = #tpu.dot_dimension_numbers<[1], [0], [0], [1], [0, 0, 1, 1], [], []>} : vector<8x32xf32>, vector<32x128xf32>, vector<8x128xf32> -> vector<8x128xf32>
    %269 = arith.addf %267, %268 : vector<8x128xf32>
    %270 = arith.negf %269 : vector<8x128xf32>
    %271 = math.exp %270 : vector<8x128xf32>
    %cst_113 = arith.constant 1.000000e+00 : f32
    %272 = vector.broadcast %cst_113 : f32 to vector<8x128xf32>
    %273 = arith.addf %272, %271 : vector<8x128xf32>
    %274 = arith.divf %272, %273 : vector<8x128xf32>
    %275 = math.tanh %269 : vector<8x128xf32>
    %276 = vector.extract_strided_slice %274 {offsets = [0, 0], sizes = [8, 32], strides = [1, 1]} : vector<8x128xf32> to vector<8x32xf32>
    %277 = vector.extract_strided_slice %274 {offsets = [0, 32], sizes = [8, 32], strides = [1, 1]} : vector<8x128xf32> to vector<8x32xf32>
    %278 = vector.extract_strided_slice %275 {offsets = [0, 64], sizes = [8, 32], strides = [1, 1]} : vector<8x128xf32> to vector<8x32xf32>
    %279 = vector.extract_strided_slice %274 {offsets = [0, 96], sizes = [8, 32], strides = [1, 1]} : vector<8x128xf32> to vector<8x32xf32>
    %280 = arith.mulf %277, %260 : vector<8x32xf32>
    %281 = arith.mulf %276, %278 : vector<8x32xf32>
    %282 = arith.addf %280, %281 : vector<8x32xf32>
    %283 = math.tanh %282 : vector<8x32xf32>
    %284 = arith.mulf %279, %283 : vector<8x32xf32>
    %c3_114 = arith.constant 3 : index
    %c0_115 = arith.constant 0 : index
    %c0_116 = arith.constant 0 : index
    %285 = vector.load %arg18[%c3_114, %c0_115, %c0_116] : memref<8x8x32xf32, #tpu.memory_space<vmem>>, vector<1x8x32xf32>
    %286 = vector.shape_cast %285 : vector<1x8x32xf32> to vector<8x32xf32>
    %287 = vector.shape_cast %284 : vector<8x32xf32> to vector<1x8x32xf32>
    tpu.vector_store %arg18[%c3_114, %c0_115, %c0_116], %287 {strides = array<i32>} : memref<8x8x32xf32, #tpu.memory_space<vmem>>, vector<1x8x32xf32>,
    %c4_117 = arith.constant 4 : index
    %c0_118 = arith.constant 0 : index
    %c0_119 = arith.constant 0 : index
    %288 = vector.load %arg19[%c4_117, %c0_118, %c0_119] : memref<8x8x128xf32, #tpu.memory_space<vmem>>, vector<1x8x128xf32>
    %289 = vector.shape_cast %288 : vector<1x8x128xf32> to vector<8x128xf32>
    %cst_120 = arith.constant dense<0.000000e+00> : vector<8x128xf32>
    %290 = tpu.matmul %284, %189, %cst_120 {dimension_numbers = #tpu.dot_dimension_numbers<[1], [0], [0], [1], [0, 0, 1, 1], [], []>} : vector<8x32xf32>, vector<32x128xf32>, vector<8x128xf32> -> vector<8x128xf32>
    %291 = arith.addf %289, %290 : vector<8x128xf32>
    %292 = arith.negf %291 : vector<8x128xf32>
    %293 = math.exp %292 : vector<8x128xf32>
    %cst_121 = arith.constant 1.000000e+00 : f32
    %294 = vector.broadcast %cst_121 : f32 to vector<8x128xf32>
    %295 = arith.addf %294, %293 : vector<8x128xf32>
    %296 = arith.divf %294, %295 : vector<8x128xf32>
    %297 = math.tanh %291 : vector<8x128xf32>
    %298 = vector.extract_strided_slice %296 {offsets = [0, 0], sizes = [8, 32], strides = [1, 1]} : vector<8x128xf32> to vector<8x32xf32>
    %299 = vector.extract_strided_slice %296 {offsets = [0, 32], sizes = [8, 32], strides = [1, 1]} : vector<8x128xf32> to vector<8x32xf32>
    %300 = vector.extract_strided_slice %297 {offsets = [0, 64], sizes = [8, 32], strides = [1, 1]} : vector<8x128xf32> to vector<8x32xf32>
    %301 = vector.extract_strided_slice %296 {offsets = [0, 96], sizes = [8, 32], strides = [1, 1]} : vector<8x128xf32> to vector<8x32xf32>
    %302 = arith.mulf %299, %282 : vector<8x32xf32>
    %303 = arith.mulf %298, %300 : vector<8x32xf32>
    %304 = arith.addf %302, %303 : vector<8x32xf32>
    %305 = math.tanh %304 : vector<8x32xf32>
    %306 = arith.mulf %301, %305 : vector<8x32xf32>
    %c4_122 = arith.constant 4 : index
    %c0_123 = arith.constant 0 : index
    %c0_124 = arith.constant 0 : index
    %307 = vector.load %arg18[%c4_122, %c0_123, %c0_124] : memref<8x8x32xf32, #tpu.memory_space<vmem>>, vector<1x8x32xf32>
    %308 = vector.shape_cast %307 : vector<1x8x32xf32> to vector<8x32xf32>
    %309 = vector.shape_cast %306 : vector<8x32xf32> to vector<1x8x32xf32>
    tpu.vector_store %arg18[%c4_122, %c0_123, %c0_124], %309 {strides = array<i32>} : memref<8x8x32xf32, #tpu.memory_space<vmem>>, vector<1x8x32xf32>,
    %c5_125 = arith.constant 5 : index
    %c0_126 = arith.constant 0 : index
    %c0_127 = arith.constant 0 : index
    %310 = vector.load %arg19[%c5_125, %c0_126, %c0_127] : memref<8x8x128xf32, #tpu.memory_space<vmem>>, vector<1x8x128xf32>
    %311 = vector.shape_cast %310 : vector<1x8x128xf32> to vector<8x128xf32>
    %cst_128 = arith.constant dense<0.000000e+00> : vector<8x128xf32>
    %312 = tpu.matmul %306, %189, %cst_128 {dimension_numbers = #tpu.dot_dimension_numbers<[1], [0], [0], [1], [0, 0, 1, 1], [], []>} : vector<8x32xf32>, vector<32x128xf32>, vector<8x128xf32> -> vector<8x128xf32>
    %313 = arith.addf %311, %312 : vector<8x128xf32>
    %314 = arith.negf %313 : vector<8x128xf32>
    %315 = math.exp %314 : vector<8x128xf32>
    %cst_129 = arith.constant 1.000000e+00 : f32
    %316 = vector.broadcast %cst_129 : f32 to vector<8x128xf32>
    %317 = arith.addf %316, %315 : vector<8x128xf32>
    %318 = arith.divf %316, %317 : vector<8x128xf32>
    %319 = math.tanh %313 : vector<8x128xf32>
    %320 = vector.extract_strided_slice %318 {offsets = [0, 0], sizes = [8, 32], strides = [1, 1]} : vector<8x128xf32> to vector<8x32xf32>
    %321 = vector.extract_strided_slice %318 {offsets = [0, 32], sizes = [8, 32], strides = [1, 1]} : vector<8x128xf32> to vector<8x32xf32>
    %322 = vector.extract_strided_slice %319 {offsets = [0, 64], sizes = [8, 32], strides = [1, 1]} : vector<8x128xf32> to vector<8x32xf32>
    %323 = vector.extract_strided_slice %318 {offsets = [0, 96], sizes = [8, 32], strides = [1, 1]} : vector<8x128xf32> to vector<8x32xf32>
    %324 = arith.mulf %321, %304 : vector<8x32xf32>
    %325 = arith.mulf %320, %322 : vector<8x32xf32>
    %326 = arith.addf %324, %325 : vector<8x32xf32>
    %327 = math.tanh %326 : vector<8x32xf32>
    %328 = arith.mulf %323, %327 : vector<8x32xf32>
    %c5_130 = arith.constant 5 : index
    %c0_131 = arith.constant 0 : index
    %c0_132 = arith.constant 0 : index
    %329 = vector.load %arg18[%c5_130, %c0_131, %c0_132] : memref<8x8x32xf32, #tpu.memory_space<vmem>>, vector<1x8x32xf32>
    %330 = vector.shape_cast %329 : vector<1x8x32xf32> to vector<8x32xf32>
    %331 = vector.shape_cast %328 : vector<8x32xf32> to vector<1x8x32xf32>
    tpu.vector_store %arg18[%c5_130, %c0_131, %c0_132], %331 {strides = array<i32>} : memref<8x8x32xf32, #tpu.memory_space<vmem>>, vector<1x8x32xf32>,
    %c6_133 = arith.constant 6 : index
    %c0_134 = arith.constant 0 : index
    %c0_135 = arith.constant 0 : index
    %332 = vector.load %arg19[%c6_133, %c0_134, %c0_135] : memref<8x8x128xf32, #tpu.memory_space<vmem>>, vector<1x8x128xf32>
    %333 = vector.shape_cast %332 : vector<1x8x128xf32> to vector<8x128xf32>
    %cst_136 = arith.constant dense<0.000000e+00> : vector<8x128xf32>
    %334 = tpu.matmul %328, %189, %cst_136 {dimension_numbers = #tpu.dot_dimension_numbers<[1], [0], [0], [1], [0, 0, 1, 1], [], []>} : vector<8x32xf32>, vector<32x128xf32>, vector<8x128xf32> -> vector<8x128xf32>
    %335 = arith.addf %333, %334 : vector<8x128xf32>
    %336 = arith.negf %335 : vector<8x128xf32>
    %337 = math.exp %336 : vector<8x128xf32>
    %cst_137 = arith.constant 1.000000e+00 : f32
    %338 = vector.broadcast %cst_137 : f32 to vector<8x128xf32>
    %339 = arith.addf %338, %337 : vector<8x128xf32>
    %340 = arith.divf %338, %339 : vector<8x128xf32>
    %341 = math.tanh %335 : vector<8x128xf32>
    %342 = vector.extract_strided_slice %340 {offsets = [0, 0], sizes = [8, 32], strides = [1, 1]} : vector<8x128xf32> to vector<8x32xf32>
    %343 = vector.extract_strided_slice %340 {offsets = [0, 32], sizes = [8, 32], strides = [1, 1]} : vector<8x128xf32> to vector<8x32xf32>
    %344 = vector.extract_strided_slice %341 {offsets = [0, 64], sizes = [8, 32], strides = [1, 1]} : vector<8x128xf32> to vector<8x32xf32>
    %345 = vector.extract_strided_slice %340 {offsets = [0, 96], sizes = [8, 32], strides = [1, 1]} : vector<8x128xf32> to vector<8x32xf32>
    %346 = arith.mulf %343, %326 : vector<8x32xf32>
    %347 = arith.mulf %342, %344 : vector<8x32xf32>
    %348 = arith.addf %346, %347 : vector<8x32xf32>
    %349 = math.tanh %348 : vector<8x32xf32>
    %350 = arith.mulf %345, %349 : vector<8x32xf32>
    %c6_138 = arith.constant 6 : index
    %c0_139 = arith.constant 0 : index
    %c0_140 = arith.constant 0 : index
    %351 = vector.load %arg18[%c6_138, %c0_139, %c0_140] : memref<8x8x32xf32, #tpu.memory_space<vmem>>, vector<1x8x32xf32>
    %352 = vector.shape_cast %351 : vector<1x8x32xf32> to vector<8x32xf32>
    %353 = vector.shape_cast %350 : vector<8x32xf32> to vector<1x8x32xf32>
    tpu.vector_store %arg18[%c6_138, %c0_139, %c0_140], %353 {strides = array<i32>} : memref<8x8x32xf32, #tpu.memory_space<vmem>>, vector<1x8x32xf32>,
    %c7_141 = arith.constant 7 : index
    %c0_142 = arith.constant 0 : index
    %c0_143 = arith.constant 0 : index
    %354 = vector.load %arg19[%c7_141, %c0_142, %c0_143] : memref<8x8x128xf32, #tpu.memory_space<vmem>>, vector<1x8x128xf32>
    %355 = vector.shape_cast %354 : vector<1x8x128xf32> to vector<8x128xf32>
    %cst_144 = arith.constant dense<0.000000e+00> : vector<8x128xf32>
    %356 = tpu.matmul %350, %189, %cst_144 {dimension_numbers = #tpu.dot_dimension_numbers<[1], [0], [0], [1], [0, 0, 1, 1], [], []>} : vector<8x32xf32>, vector<32x128xf32>, vector<8x128xf32> -> vector<8x128xf32>
    %357 = arith.addf %355, %356 : vector<8x128xf32>
    %358 = arith.negf %357 : vector<8x128xf32>
    %359 = math.exp %358 : vector<8x128xf32>
    %cst_145 = arith.constant 1.000000e+00 : f32
    %360 = vector.broadcast %cst_145 : f32 to vector<8x128xf32>
    %361 = arith.addf %360, %359 : vector<8x128xf32>
    %362 = arith.divf %360, %361 : vector<8x128xf32>
    %363 = math.tanh %357 : vector<8x128xf32>
    %364 = vector.extract_strided_slice %362 {offsets = [0, 0], sizes = [8, 32], strides = [1, 1]} : vector<8x128xf32> to vector<8x32xf32>
    %365 = vector.extract_strided_slice %362 {offsets = [0, 32], sizes = [8, 32], strides = [1, 1]} : vector<8x128xf32> to vector<8x32xf32>
    %366 = vector.extract_strided_slice %363 {offsets = [0, 64], sizes = [8, 32], strides = [1, 1]} : vector<8x128xf32> to vector<8x32xf32>
    %367 = vector.extract_strided_slice %362 {offsets = [0, 96], sizes = [8, 32], strides = [1, 1]} : vector<8x128xf32> to vector<8x32xf32>
    %368 = arith.mulf %365, %348 : vector<8x32xf32>
    %369 = arith.mulf %364, %366 : vector<8x32xf32>
    %370 = arith.addf %368, %369 : vector<8x32xf32>
    %371 = math.tanh %370 : vector<8x32xf32>
    %372 = arith.mulf %367, %371 : vector<8x32xf32>
    %c7_146 = arith.constant 7 : index
    %c0_147 = arith.constant 0 : index
    %c0_148 = arith.constant 0 : index
    %373 = vector.load %arg18[%c7_146, %c0_147, %c0_148] : memref<8x8x32xf32, #tpu.memory_space<vmem>>, vector<1x8x32xf32>
    %374 = vector.shape_cast %373 : vector<1x8x32xf32> to vector<8x32xf32>
    %375 = vector.shape_cast %372 : vector<8x32xf32> to vector<1x8x32xf32>
    tpu.vector_store %arg18[%c7_146, %c0_147, %c0_148], %375 {strides = array<i32>} : memref<8x8x32xf32, #tpu.memory_space<vmem>>, vector<1x8x32xf32>,
    %c0_149 = arith.constant 0 : index
    %c0_150 = arith.constant 0 : index
    %c0_151 = arith.constant 0 : index
    %376 = vector.load %arg18[%c0_149, %c0_150, %c0_151] : memref<8x8x32xf32, #tpu.memory_space<vmem>>, vector<8x8x32xf32>
    %377 = vector.shape_cast %376 : vector<8x8x32xf32> to vector<64x32xf32>
    %c0_152 = arith.constant 0 : index
    %c0_153 = arith.constant 0 : index
    %378 = vector.load %arg8[%c0_152, %c0_153] : memref<32x32xf32, #tpu.memory_space<vmem>>, vector<32x32xf32>
    %cst_154 = arith.constant dense<0.000000e+00> : vector<64x32xf32>
    %379 = tpu.matmul %377, %378, %cst_154 {dimension_numbers = #tpu.dot_dimension_numbers<[1], [0], [0], [1], [0, 0, 1, 1], [], []>} : vector<64x32xf32>, vector<32x32xf32>, vector<64x32xf32> -> vector<64x32xf32>
    %c0_155 = arith.constant 0 : index
    %c0_156 = arith.constant 0 : index
    %380 = vector.load %arg9[%c0_155, %c0_156] : memref<1x32xf32, #tpu.memory_space<vmem>>, vector<1x32xf32>
    %381 = vector.broadcast %380 : vector<1x32xf32> to vector<64x32xf32>
    %382 = arith.addf %379, %381 : vector<64x32xf32>
    %383 = math.tanh %382 : vector<64x32xf32>
    %c0_157 = arith.constant 0 : index
    %c0_158 = arith.constant 0 : index
    %384 = vector.load %arg10[%c0_157, %c0_158] : memref<32x1xf32, #tpu.memory_space<vmem>>, vector<32x1xf32>
    %cst_159 = arith.constant dense<0.000000e+00> : vector<64x1xf32>
    %385 = tpu.matmul %383, %384, %cst_159 {dimension_numbers = #tpu.dot_dimension_numbers<[1], [0], [0], [1], [0, 0, 1, 1], [], []>} : vector<64x32xf32>, vector<32x1xf32>, vector<64x1xf32> -> vector<64x1xf32>
    %c0_160 = arith.constant 0 : index
    %c0_161 = arith.constant 0 : index
    %386 = vector.load %arg11[%c0_160, %c0_161] : memref<1x1xf32, #tpu.memory_space<vmem>>, vector<1x1xf32>
    %387 = vector.broadcast %386 : vector<1x1xf32> to vector<64x1xf32>
    %388 = arith.addf %385, %387 : vector<64x1xf32>
    %389 = vector.shape_cast %388 : vector<64x1xf32> to vector<8x8x1xf32>
    %cst_162 = arith.constant dense<0xFF800000> : vector<8x1xf32>
    %390 = vector.multi_reduction <maximumf>, %389, %cst_162 [0] : vector<8x8x1xf32> to vector<8x1xf32>
    %391 = vector.shape_cast %390 : vector<8x1xf32> to vector<1x8x1xf32>
    %392 = vector.broadcast %391 : vector<1x8x1xf32> to vector<8x8x1xf32>
    %393 = arith.subf %389, %392 : vector<8x8x1xf32>
    %394 = math.exp %393 : vector<8x8x1xf32>
    %cst_163 = arith.constant dense<0.000000e+00> : vector<8x1xf32>
    %395 = vector.multi_reduction <add>, %394, %cst_163 [0] : vector<8x8x1xf32> to vector<8x1xf32>
    %396 = vector.shape_cast %395 : vector<8x1xf32> to vector<1x8x1xf32>
    %397 = vector.broadcast %396 : vector<1x8x1xf32> to vector<8x8x1xf32>
    %398 = arith.divf %394, %397 : vector<8x8x1xf32>
    %399 = vector.broadcast %398 : vector<8x8x1xf32> to vector<8x8x32xf32>
    %400 = arith.mulf %399, %376 : vector<8x8x32xf32>
    %cst_164 = arith.constant dense<0.000000e+00> : vector<8x32xf32>
    %401 = vector.multi_reduction <add>, %400, %cst_164 [0] : vector<8x8x32xf32> to vector<8x32xf32>
    %c0_165 = arith.constant 0 : index
    %c0_166 = arith.constant 0 : index
    %402 = vector.load %arg12[%c0_165, %c0_166] : memref<32x16xf32, #tpu.memory_space<vmem>>, vector<32x16xf32>
    %cst_167 = arith.constant dense<0.000000e+00> : vector<8x16xf32>
    %403 = tpu.matmul %401, %402, %cst_167 {dimension_numbers = #tpu.dot_dimension_numbers<[1], [0], [0], [1], [0, 0, 1, 1], [], []>} : vector<8x32xf32>, vector<32x16xf32>, vector<8x16xf32> -> vector<8x16xf32>
    %c0_168 = arith.constant 0 : index
    %c0_169 = arith.constant 0 : index
    %404 = vector.load %arg13[%c0_168, %c0_169] : memref<1x16xf32, #tpu.memory_space<vmem>>, vector<1x16xf32>
    %405 = vector.broadcast %404 : vector<1x16xf32> to vector<8x16xf32>
    %406 = arith.addf %403, %405 : vector<8x16xf32>
    %cst_170 = arith.constant 0.000000e+00 : f32
    %407 = vector.broadcast %cst_170 : f32 to vector<8x16xf32>
    %408 = arith.maximumf %406, %407 : vector<8x16xf32>
    %c0_171 = arith.constant 0 : index
    %c0_172 = arith.constant 0 : index
    %409 = vector.load %arg14[%c0_171, %c0_172] : memref<16x1xf32, #tpu.memory_space<vmem>>, vector<16x1xf32>
    %cst_173 = arith.constant dense<0.000000e+00> : vector<8x1xf32>
    %410 = tpu.matmul %408, %409, %cst_173 {dimension_numbers = #tpu.dot_dimension_numbers<[1], [0], [0], [1], [0, 0, 1, 1], [], []>} : vector<8x16xf32>, vector<16x1xf32>, vector<8x1xf32> -> vector<8x1xf32>
    %c0_174 = arith.constant 0 : index
    %c0_175 = arith.constant 0 : index
    %411 = vector.load %arg15[%c0_174, %c0_175] : memref<1x1xf32, #tpu.memory_space<vmem>>, vector<1x1xf32>
    %412 = vector.broadcast %411 : vector<1x1xf32> to vector<8x1xf32>
    %413 = arith.addf %410, %412 : vector<8x1xf32>
    %c0_176 = arith.constant 0 : index
    %c0_177 = arith.constant 0 : index
    %414 = vector.load %arg16[%c0_176, %c0_177] : memref<8x1xf32, #tpu.memory_space<vmem>>, vector<8x1xf32>
    tpu.vector_store %arg16[%c0_176, %c0_177], %413 {strides = array<i32>} : memref<8x1xf32, #tpu.memory_space<vmem>>, vector<8x1xf32>,
    %c0_178 = arith.constant 0 : index
    %c0_179 = arith.constant 0 : index
    %c0_180 = arith.constant 0 : index
    %415 = vector.load %arg17[%c0_178, %c0_179, %c0_180] : memref<8x8x1xf32, #tpu.memory_space<vmem>>, vector<8x8x1xf32>
    tpu.vector_store %arg17[%c0_178, %c0_179, %c0_180], %398 {strides = array<i32>} : memref<8x8x1xf32, #tpu.memory_space<vmem>>, vector<8x8x1xf32>,
    return
  }
  func.func @transform_0(%arg0: i32) -> (i32, i32, i32) {
    %c0_i32 = arith.constant 0 : i32
    %c0_i32_0 = arith.constant 0 : i32
    %c0_i32_1 = arith.constant 0 : i32
    return %c0_i32, %arg0, %c0_i32_0 : i32, i32, i32
  }
  func.func @transform_1(%arg0: i32) -> (i32, i32) {
    %c0_i32 = arith.constant 0 : i32
    %c0_i32_0 = arith.constant 0 : i32
    %c0_i32_1 = arith.constant 0 : i32
    return %c0_i32, %c0_i32_0 : i32, i32
  }
  func.func @transform_2(%arg0: i32) -> (i32, i32) {
    %c0_i32 = arith.constant 0 : i32
    %c0_i32_0 = arith.constant 0 : i32
    %c0_i32_1 = arith.constant 0 : i32
    return %c0_i32, %c0_i32_0 : i32, i32
  }
  func.func @transform_3(%arg0: i32) -> (i32, i32) {
    %c0_i32 = arith.constant 0 : i32
    %c0_i32_0 = arith.constant 0 : i32
    %c0_i32_1 = arith.constant 0 : i32
    return %c0_i32, %c0_i32_0 : i32, i32
  }
  func.func @transform_4(%arg0: i32) -> (i32, i32) {
    %c0_i32 = arith.constant 0 : i32
    %c0_i32_0 = arith.constant 0 : i32
    %c0_i32_1 = arith.constant 0 : i32
    return %c0_i32, %c0_i32_0 : i32, i32
  }
  func.func @transform_5(%arg0: i32) -> (i32, i32) {
    %c0_i32 = arith.constant 0 : i32
    %c0_i32_0 = arith.constant 0 : i32
    %c0_i32_1 = arith.constant 0 : i32
    return %c0_i32, %c0_i32_0 : i32, i32
  }
  func.func @transform_6(%arg0: i32) -> (i32, i32) {
    %c0_i32 = arith.constant 0 : i32
    %c0_i32_0 = arith.constant 0 : i32
    %c0_i32_1 = arith.constant 0 : i32
    return %c0_i32, %c0_i32_0 : i32, i32
  }
  func.func @transform_7(%arg0: i32) -> (i32, i32) {
    %c0_i32 = arith.constant 0 : i32
    %c0_i32_0 = arith.constant 0 : i32
    %c0_i32_1 = arith.constant 0 : i32
    return %c0_i32, %c0_i32_0 : i32, i32
  }
  func.func @transform_8(%arg0: i32) -> (i32, i32) {
    %c0_i32 = arith.constant 0 : i32
    %c0_i32_0 = arith.constant 0 : i32
    %c0_i32_1 = arith.constant 0 : i32
    return %c0_i32, %c0_i32_0 : i32, i32
  }
  func.func @transform_9(%arg0: i32) -> (i32, i32) {
    %c0_i32 = arith.constant 0 : i32
    %c0_i32_0 = arith.constant 0 : i32
    %c0_i32_1 = arith.constant 0 : i32
    return %c0_i32, %c0_i32_0 : i32, i32
  }
  func.func @transform_10(%arg0: i32) -> (i32, i32) {
    %c0_i32 = arith.constant 0 : i32
    %c0_i32_0 = arith.constant 0 : i32
    %c0_i32_1 = arith.constant 0 : i32
    return %c0_i32, %c0_i32_0 : i32, i32
  }
  func.func @transform_11(%arg0: i32) -> (i32, i32) {
    %c0_i32 = arith.constant 0 : i32
    %c0_i32_0 = arith.constant 0 : i32
    %c0_i32_1 = arith.constant 0 : i32
    return %c0_i32, %c0_i32_0 : i32, i32
  }
  func.func @transform_12(%arg0: i32) -> (i32, i32) {
    %c0_i32 = arith.constant 0 : i32
    %c0_i32_0 = arith.constant 0 : i32
    %c0_i32_1 = arith.constant 0 : i32
    return %c0_i32, %c0_i32_0 : i32, i32
  }
  func.func @transform_13(%arg0: i32) -> (i32, i32) {
    %c0_i32 = arith.constant 0 : i32
    %c0_i32_0 = arith.constant 0 : i32
    %c0_i32_1 = arith.constant 0 : i32
    return %c0_i32, %c0_i32_0 : i32, i32
  }
  func.func @transform_14(%arg0: i32) -> (i32, i32) {
    %c0_i32 = arith.constant 0 : i32
    %c0_i32_0 = arith.constant 0 : i32
    %c0_i32_1 = arith.constant 0 : i32
    return %c0_i32, %c0_i32_0 : i32, i32
  }
  func.func @transform_15(%arg0: i32) -> (i32, i32) {
    %c0_i32 = arith.constant 0 : i32
    %c0_i32_0 = arith.constant 0 : i32
    return %arg0, %c0_i32 : i32, i32
  }
  func.func @transform_16(%arg0: i32) -> (i32, i32, i32) {
    %c0_i32 = arith.constant 0 : i32
    %c0_i32_0 = arith.constant 0 : i32
    %c0_i32_1 = arith.constant 0 : i32
    return %c0_i32, %arg0, %c0_i32_0 : i32, i32, i32
  }
}

</mosaic_0001>

<llo_original>
// kernel: stock_price_lstm_forward.1
$region0: #{stock_price_lstm_forward.1}
  #allocation0 [shape = 'u32[]', space=smem, size = 0x4, offset = 0x4, fixed_abs, tag = 'smem constant byte address 0x4 - core index']
  #allocation1 [shape = 'u32[144,128]{1,0:T(1,128)}', space=vmem, size = 0x12000, scoped, tag = 'internal scratch']
  #allocation2 [shape = 'f32[8,8,32]{2,1,0:T(8,128)}', space=vmem, size = 0x8000, scoped, tag = 'scratch operand']
  #allocation3 [shape = 'f32[8,8,128]{2,1,0:T(8,128)}', space=vmem, size = 0x8000, scoped, tag = 'scratch operand']
  #allocation4 [shape = 'f32[1,1]{1,0:T(1,128)S(1)}', space=vmem, size = 0x200, scoped, tag = 'scoped memory for stock_price_lstm_forward.1']
  #allocation5 [shape = 'f32[1,1]{1,0:T(1,128)S(1)}', space=vmem, size = 0x200, scoped, tag = 'scoped memory for stock_price_lstm_forward.1']
  %s0 = inlined_call_operand.vmem [shape: f32[8,8,4], index: 0, kind: input, shape index: {}]
  %s1 = inlined_call_operand.vmem [shape: f32[4,128], index: 1, kind: input, shape index: {}]
  %s2 = inlined_call_operand.vmem [shape: f32[32,128], index: 2, kind: input, shape index: {}]
  %s3 = inlined_call_operand.vmem [shape: f32[1,128], index: 3, kind: input, shape index: {}]
  %s4 = inlined_call_operand.vmem [shape: f32[32,128], index: 4, kind: input, shape index: {}]
  %s5 = inlined_call_operand.vmem [shape: f32[32,128], index: 5, kind: input, shape index: {}]
  %s6 = inlined_call_operand.vmem [shape: f32[1,128], index: 6, kind: input, shape index: {}]
  %s7 = inlined_call_operand.vmem [shape: f32[32,32], index: 7, kind: input, shape index: {}]
  %s8 = inlined_call_operand.vmem [shape: f32[1,32], index: 8, kind: input, shape index: {}]
  %s9 = inlined_call_operand.vmem [shape: f32[32,1], index: 9, kind: input, shape index: {}]
  %s10 = inlined_call_operand.<no memory space> [shape: f32[1,1], index: 10, kind: input, shape index: {}]
  %s11 = inlined_call_operand.vmem [shape: f32[32,16], index: 11, kind: input, shape index: {}]
  %s12 = inlined_call_operand.vmem [shape: f32[1,16], index: 12, kind: input, shape index: {}]
  %s13 = inlined_call_operand.vmem [shape: f32[16,1], index: 13, kind: input, shape index: {}]
  %s14 = inlined_call_operand.<no memory space> [shape: f32[1,1], index: 14, kind: input, shape index: {}]
  %s15 = inlined_call_operand.vmem [shape: f32[8,1], index: 15, kind: output, shape index: {0}]
  %s16 = inlined_call_operand.vmem [shape: f32[8,8,1], index: 16, kind: output, shape index: {1}]
  %17 = xla_tuple %s15, %s16
  %s18 = sld [smem:[#allocation0]]
  $region78: #{stock_price_lstm_forward.1} parent=0
    _
  %s20 = ssub.s32 1, %s18
  %s21 = scalar_select 0, %s20, %s18
  %v22 = vstv %s10
  %23 = vst [vmem:[#allocation4] sm:$0x1] %v22
  %v24 = vstv %s14
  %25 = vst [vmem:[#allocation5] sm:$0x1] %v24
  // Predicated region
  $region2: #{stock_price_lstm_forward.1} parent=0 // pred_check
    _
  $region3: #{stock_price_lstm_forward.1} parent=0 // pred_check_branch
    %27 = sbr.rel (0) target = $region5
  $region4: #{stock_price_lstm_forward.1} parent=0 // pred_region
    _
  $region5: #{stock_price_lstm_forward.1} parent=0 // pred_fallthru
    _
  // Predicated region
  $region6: #{stock_price_lstm_forward.1} parent=0 // pred_check
    _
  $region7: #{stock_price_lstm_forward.1} parent=0 // pred_check_branch
    %29 = sbr.rel (0) target = $region9
  $region8: #{stock_price_lstm_forward.1} parent=0 // pred_region
    _
  $region9: #{stock_price_lstm_forward.1} parent=0 // pred_fallthru
    _
  // Predicated region
  $region10: #{stock_price_lstm_forward.1} parent=0 // pred_check
    _
  $region11: #{stock_price_lstm_forward.1} parent=0 // pred_check_branch
    %31 = sbr.rel (0) target = $region13
  $region12: #{stock_price_lstm_forward.1} parent=0 // pred_region
    _
  $region13: #{stock_price_lstm_forward.1} parent=0 // pred_fallthru
    _
  // Predicated region
  $region14: #{stock_price_lstm_forward.1} parent=0 // pred_check
    _
  $region15: #{stock_price_lstm_forward.1} parent=0 // pred_check_branch
    %33 = sbr.rel (0) target = $region17
  $region16: #{stock_price_lstm_forward.1} parent=0 // pred_region
    _
  $region17: #{stock_price_lstm_forward.1} parent=0 // pred_fallthru
    _
  // Predicated region
  $region18: #{stock_price_lstm_forward.1} parent=0 // pred_check
    _
  $region19: #{stock_price_lstm_forward.1} parent=0 // pred_check_branch
    %35 = sbr.rel (0) target = $region21
  $region20: #{stock_price_lstm_forward.1} parent=0 // pred_region
    _
  $region21: #{stock_price_lstm_forward.1} parent=0 // pred_fallthru
    _
  // Predicated region
  $region22: #{stock_price_lstm_forward.1} parent=0 // pred_check
    _
  $region23: #{stock_price_lstm_forward.1} parent=0 // pred_check_branch
    %37 = sbr.rel (0) target = $region25
  $region24: #{stock_price_lstm_forward.1} parent=0 // pred_region
    _
  $region25: #{stock_price_lstm_forward.1} parent=0 // pred_fallthru
    _
  // Predicated region
  $region26: #{stock_price_lstm_forward.1} parent=0 // pred_check
    _
  $region27: #{stock_price_lstm_forward.1} parent=0 // pred_check_branch
    %39 = sbr.rel (0) target = $region29
  $region28: #{stock_price_lstm_forward.1} parent=0 // pred_region
    _
  $region29: #{stock_price_lstm_forward.1} parent=0 // pred_fallthru
    _
  // Predicated region
  $region30: #{stock_price_lstm_forward.1} parent=0 // pred_check
    _
  $region31: #{stock_price_lstm_forward.1} parent=0 // pred_check_branch
    %41 = sbr.rel (0) target = $region33
  $region32: #{stock_price_lstm_forward.1} parent=0 // pred_region
    _
  $region33: #{stock_price_lstm_forward.1} parent=0 // pred_fallthru
    _
  // Predicated region
  $region34: #{stock_price_lstm_forward.1} parent=0 // pred_check
    _
  $region35: #{stock_price_lstm_forward.1} parent=0 // pred_check_branch
    %43 = sbr.rel (0) target = $region37
  $region36: #{stock_price_lstm_forward.1} parent=0 // pred_region
    _
  $region37: #{stock_price_lstm_forward.1} parent=0 // pred_fallthru
    _
  // Predicated region
  $region38: #{stock_price_lstm_forward.1} parent=0 // pred_check
    _
  $region39: #{stock_price_lstm_forward.1} parent=0 // pred_check_branch
    %45 = sbr.rel (0) target = $region41
  $region40: #{stock_price_lstm_forward.1} parent=0 // pred_region
    _
  $region41: #{stock_price_lstm_forward.1} parent=0 // pred_fallthru
    _
  // Predicated region
  $region42: #{stock_price_lstm_forward.1} parent=0 // pred_check
    _
  $region43: #{stock_price_lstm_forward.1} parent=0 // pred_check_branch
    %47 = sbr.rel (0) target = $region45
  $region44: #{stock_price_lstm_forward.1} parent=0 // pred_region
    _
  $region45: #{stock_price_lstm_forward.1} parent=0 // pred_fallthru
    _
  // Predicated region
  $region46: #{stock_price_lstm_forward.1} parent=0 // pred_check
    _
  $region47: #{stock_price_lstm_forward.1} parent=0 // pred_check_branch
    %49 = sbr.rel (0) target = $region49
  $region48: #{stock_price_lstm_forward.1} parent=0 // pred_region
    _
  $region49: #{stock_price_lstm_forward.1} parent=0 // pred_fallthru
    _
  // Predicated region
  $region50: #{stock_price_lstm_forward.1} parent=0 // pred_check
    _
  $region51: #{stock_price_lstm_forward.1} parent=0 // pred_check_branch
    %51 = sbr.rel (0) target = $region53
  $region52: #{stock_price_lstm_forward.1} parent=0 // pred_region
    _
  $region53: #{stock_price_lstm_forward.1} parent=0 // pred_fallthru
    _
  // Predicated region
  $region54: #{stock_price_lstm_forward.1} parent=0 // pred_check
    _
  $region55: #{stock_price_lstm_forward.1} parent=0 // pred_check_branch
    %53 = sbr.rel (0) target = $region57
  $region56: #{stock_price_lstm_forward.1} parent=0 // pred_region
    _
  $region57: #{stock_price_lstm_forward.1} parent=0 // pred_fallthru
    _
  // Predicated region
  $region58: #{stock_price_lstm_forward.1} parent=0 // pred_check
    _
  $region59: #{stock_price_lstm_forward.1} parent=0 // pred_check_branch
    %55 = sbr.rel (0) target = $region61
  $region60: #{stock_price_lstm_forward.1} parent=0 // pred_region
    _
  $region61: #{stock_price_lstm_forward.1} parent=0 // pred_fallthru
    _
  %v56 = vld [vmem:[%s1] sm:$0xf]
  %v57 = vld [vmem:[%s2] sm:$0xff]
  %v58 = vld [vmem:[%s2 + $0x8] sm:$0xff]
  %v59 = vld [vmem:[%s2 + $0x10] sm:$0xff]
  %v60 = vld [vmem:[%s2 + $0x18] sm:$0xff]
  %v61 = vld [vmem:[%s3] sm:$0x1]
  %v62 = vld [vmem:[%s0] sm:$0xff]
  %v63 = vld [vmem:[%s0 + $0x8] sm:$0xff]
  %v64 = vld [vmem:[%s0 + $0x10] sm:$0xff]
  %v65 = vld [vmem:[%s0 + $0x18] sm:$0xff]
  %v66 = vld [vmem:[%s0 + $0x20] sm:$0xff]
  %v67 = vld [vmem:[%s0 + $0x28] sm:$0xff]
  %v68 = vld [vmem:[%s0 + $0x30] sm:$0xff]
  %v69 = vld [vmem:[%s0 + $0x38] sm:$0xff]
  %v71 = vlaneseq
  %v72 = vshrl.u32 %v71, 7
  %v73 = vsub.s32 0, %v72
  %v74 = vrot.slane %v61, %v73
  %vm76 = vcmask 31744
  %v78 = vsel %vm76, %v62, 0
  %v81 = vsel %vm76, %v63, 0
  %v84 = vsel %vm76, %v64, 0
  %v87 = vsel %vm76, %v65, 0
  %v90 = vsel %vm76, %v66, 0
  %v93 = vsel %vm76, %v67, 0
  %v96 = vsel %vm76, %v68, 0
  %v99 = vsel %vm76, %v69, 0
  %vm101 = vcmask 1043456
  %v103 = vsel %vm101, %v56, 0
  %105 = vmatprep.subr.mxu0 0.0
  %106 = vmatpush1.msra.mxu0 0.0
  %107 = vmatprep.subr.mxu0 0.0
  %108 = vmatpush1.msra.mxu0 0.0
  %109 = vmatprep.subr.mxu0 0.0
  %110 = vmatpush1.msra.mxu0 0.0
  %111 = vmatprep.subr.mxu0 0.0
  %112 = vmatpush1.msra.mxu0 0.0
  %113 = vmatprep.subr.mxu0 0.0
  %114 = vmatpush1.msra.mxu0 0.0
  %115 = vmatprep.subr.mxu0 0.0
  %116 = vmatpush1.msra.mxu0 0.0
  %117 = vmatprep.subr.mxu0 0.0
  %118 = vmatpush1.msra.mxu0 0.0
  %119 = vmatprep.subr.mxu0 0.0
  %120 = vmatpush1.msra.mxu0 0.0
  %121 = vmatprep.subr.mxu0 0.0
  %122 = vmatpush1.msra.mxu0 0.0
  %123 = vmatprep.subr.mxu0 0.0
  %124 = vmatpush1.msra.mxu0 0.0
  %125 = vmatprep.subr.mxu0 0.0
  %126 = vmatpush1.msra.mxu0 0.0
  %127 = vmatprep.subr.mxu0 0.0
  %128 = vmatpush1.msra.mxu0 0.0
  %129 = vmatprep.subr.mxu0 0.0
  %130 = vmatpush1.msra.mxu0 0.0
  %131 = vmatprep.subr.mxu0 0.0
  %132 = vmatpush1.msra.mxu0 0.0
  %133 = vmatprep.subr.mxu0 0.0
  %134 = vmatpush1.msra.mxu0 0.0
  %135 = vmatprep.subr.mxu0 0.0
  %136 = vmatpush1.msra.mxu0 %v103
  %137 = vmatprep.subr.mxu0 0.0
  %138 = vmatpush2.msra.mxu0 0.0
  %139 = vmatprep.subr.mxu0 0.0
  %140 = vmatpush2.msra.mxu0 0.0
  %141 = vmatprep.subr.mxu0 0.0
  %142 = vmatpush2.msra.mxu0 0.0
  %143 = vmatprep.subr.mxu0 0.0
  %144 = vmatpush2.msra.mxu0 0.0
  %145 = vmatprep.subr.mxu0 0.0
  %146 = vmatpush2.msra.mxu0 0.0
  %147 = vmatprep.subr.mxu0 0.0
  %148 = vmatpush2.msra.mxu0 0.0
  %149 = vmatprep.subr.mxu0 0.0
  %150 = vmatpush2.msra.mxu0 0.0
  %151 = vmatprep.subr.mxu0 0.0
  %152 = vmatpush2.msra.mxu0 0.0
  %153 = vmatprep.subr.mxu0 0.0
  %154 = vmatpush2.msra.mxu0 0.0
  %155 = vmatprep.subr.mxu0 0.0
  %156 = vmatpush2.msra.mxu0 0.0
  %157 = vmatprep.subr.mxu0 0.0
  %158 = vmatpush2.msra.mxu0 0.0
  %159 = vmatprep.subr.mxu0 0.0
  %160 = vmatpush2.msra.mxu0 0.0
  %161 = vmatprep.subr.mxu0 0.0
  %162 = vmatpush2.msra.mxu0 0.0
  %163 = vmatprep.subr.mxu0 0.0
  %164 = vmatpush2.msra.mxu0 0.0
  %165 = vmatprep.subr.mxu0 0.0
  %166 = vmatpush2.msra.mxu0 0.0
  %167 = vmatprep.subr.mxu0 0.0
  %168 = vmatpush2.msra.mxu0 0.0
  %169 = vmatprep.mubr.f32.mxu0 0.0
  %170 = vmatmul.mubr.f32.gmra.mxu0 %v78
  %v171 = vpop.f32.mrf.mxu0
  %v172 = vadd.f32 %v74, %v171
  %v173 = vpop.f32.mrf.mxu0
  %174 = vmatprep.mubr.f32.mxu0 0.0
  %175 = vmatmul.mubr.f32.gmra.mxu0 %v81
  %v176 = vpop.f32.mrf.mxu0
  %v177 = vadd.f32 %v74, %v176
  %v178 = vpop.f32.mrf.mxu0
  %179 = vmatprep.mubr.f32.mxu0 0.0
  %180 = vmatmul.mubr.f32.gmra.mxu0 %v84
  %v181 = vpop.f32.mrf.mxu0
  %v182 = vadd.f32 %v74, %v181
  %v183 = vpop.f32.mrf.mxu0
  %184 = vmatprep.mubr.f32.mxu0 0.0
  %185 = vmatmul.mubr.f32.gmra.mxu0 %v87
  %v186 = vpop.f32.mrf.mxu0
  %v187 = vadd.f32 %v74, %v186
  %v188 = vpop.f32.mrf.mxu0
  %189 = vmatprep.mubr.f32.mxu0 0.0
  %190 = vmatmul.mubr.f32.gmra.mxu0 %v90
  %v191 = vpop.f32.mrf.mxu0
  %v192 = vadd.f32 %v74, %v191
  %v193 = vpop.f32.mrf.mxu0
  %194 = vmatprep.mubr.f32.mxu0 0.0
  %195 = vmatmul.mubr.f32.gmra.mxu0 %v93
  %v196 = vpop.f32.mrf.mxu0
  %v197 = vadd.f32 %v74, %v196
  %v198 = vpop.f32.mrf.mxu0
  %199 = vmatprep.mubr.f32.mxu0 0.0
  %200 = vmatmul.mubr.f32.gmra.mxu0 %v96
  %v201 = vpop.f32.mrf.mxu0
  %v202 = vadd.f32 %v74, %v201
  %v203 = vpop.f32.mrf.mxu0
  %204 = vmatprep.mubr.f32.mxu0 0.0
  %205 = vmatmul.mubr.f32.gmra.mxu0 %v99
  %v206 = vpop.f32.mrf.mxu0
  %v207 = vadd.f32 %v74, %v206
  %v208 = vpop.f32.mrf.mxu0
  %209 = vdwg.mxu0
  %210 = vst [vmem:[#allocation3] sm:$0xff] %v172
  %211 = vst [vmem:[#allocation3 + $0x8] sm:$0xff] %v177
  %212 = vst [vmem:[#allocation3 + $0x10] sm:$0xff] %v182
  %213 = vst [vmem:[#allocation3 + $0x18] sm:$0xff] %v187
  %214 = vst [vmem:[#allocation3 + $0x20] sm:$0xff] %v192
  %215 = vst [vmem:[#allocation3 + $0x28] sm:$0xff] %v197
  %216 = vst [vmem:[#allocation3 + $0x30] sm:$0xff] %v202
  %217 = vst [vmem:[#allocation3 + $0x38] sm:$0xff] %v207
  %v218 = vld [vmem:[#allocation3] sm:$0xff]
  %vm219 = vcmask 261120
  %v221 = vsel %vm219, 0.0, 0
  %223 = vmatprep.subr.mxu0 0.0
  %224 = vmatpush1.msra.mxu0 0.0
  %225 = vmatprep.subr.mxu0 0.0
  %226 = vmatpush1.msra.mxu0 0.0
  %227 = vmatprep.subr.mxu0 0.0
  %228 = vmatpush1.msra.mxu0 0.0
  %229 = vmatprep.subr.mxu0 0.0
  %230 = vmatpush1.msra.mxu0 0.0
  %231 = vmatprep.subr.mxu0 0.0
  %232 = vmatpush1.msra.mxu0 0.0
  %233 = vmatprep.subr.mxu0 0.0
  %234 = vmatpush1.msra.mxu0 0.0
  %235 = vmatprep.subr.mxu0 0.0
  %236 = vmatpush1.msra.mxu0 0.0
  %237 = vmatprep.subr.mxu0 0.0
  %238 = vmatpush1.msra.mxu0 0.0
  %239 = vmatprep.subr.mxu0 0.0
  %240 = vmatpush1.msra.mxu0 0.0
  %241 = vmatprep.subr.mxu0 0.0
  %242 = vmatpush1.msra.mxu0 0.0
  %243 = vmatprep.subr.mxu0 0.0
  %244 = vmatpush1.msra.mxu0 0.0
  %245 = vmatprep.subr.mxu0 0.0
  %246 = vmatpush1.msra.mxu0 0.0
  %247 = vmatprep.subr.mxu0 0.0
  %248 = vmatpush1.msra.mxu0 %v60
  %249 = vmatprep.subr.mxu0 0.0
  %250 = vmatpush1.msra.mxu0 %v59
  %251 = vmatprep.subr.mxu0 0.0
  %252 = vmatpush1.msra.mxu0 %v58
  %253 = vmatprep.subr.mxu0 0.0
  %254 = vmatpush1.msra.mxu0 %v57
  %255 = vmatprep.subr.mxu0 0.0
  %256 = vmatpush2.msra.mxu0 0.0
  %257 = vmatprep.subr.mxu0 0.0
  %258 = vmatpush2.msra.mxu0 0.0
  %259 = vmatprep.subr.mxu0 0.0
  %260 = vmatpush2.msra.mxu0 0.0
  %261 = vmatprep.subr.mxu0 0.0
  %262 = vmatpush2.msra.mxu0 0.0
  %263 = vmatprep.subr.mxu0 0.0
  %264 = vmatpush2.msra.mxu0 0.0
  %265 = vmatprep.subr.mxu0 0.0
  %266 = vmatpush2.msra.mxu0 0.0
  %267 = vmatprep.subr.mxu0 0.0
  %268 = vmatpush2.msra.mxu0 0.0
  %269 = vmatprep.subr.mxu0 0.0
  %270 = vmatpush2.msra.mxu0 0.0
  %271 = vmatprep.subr.mxu0 0.0
  %272 = vmatpush2.msra.mxu0 0.0
  %273 = vmatprep.subr.mxu0 0.0
  %274 = vmatpush2.msra.mxu0 0.0
  %275 = vmatprep.subr.mxu0 0.0
  %276 = vmatpush2.msra.mxu0 0.0
  %277 = vmatprep.subr.mxu0 0.0
  %278 = vmatpush2.msra.mxu0 0.0
  %279 = vmatprep.subr.mxu0 0.0
  %280 = vmatpush2.msra.mxu0 0.0
  %281 = vmatprep.subr.mxu0 0.0
  %282 = vmatpush2.msra.mxu0 0.0
  %283 = vmatprep.subr.mxu0 0.0
  %284 = vmatpush2.msra.mxu0 0.0
  %285 = vmatprep.subr.mxu0 0.0
  %286 = vmatpush2.msra.mxu0 0.0
  %287 = vmatprep.mubr.f32.mxu0 0.0
  %288 = vmatmul.mubr.f32.gmra.mxu0 %v221
  %v289 = vpop.f32.mrf.mxu0
  %v290 = vadd.f32 0.0, %v289
  %v291 = vpop.f32.mrf.mxu0
  %292 = vdwg.mxu0
  %v293 = vadd.f32 %v218, %v290
  %v294 = vxor.u32 %v293, 2147483648
  %v295 = vmul.f32 %v294, 1.442695
  %v296 = vpow.pop %v295
  %v297 = vadd.f32 %v296, 1.0
  %v298 = vrcp.pop %v297
  %v299 = vmul.f32 1.0, %v298
  %v300 = vtanh.pop %v293
  %v301 = vmul.f32 %v299, 0.0
  %303 = vrot.lane.b32.xlu0 %v300, 64
  %v304 = vpop.permute.xlu0 %303
  %v306 = vmul.f32 %v299, %v304
  %308 = vrot.lane.b32.xlu0 %v306, 32
  %v309 = vpop.permute.xlu0 %308
  %v311 = vadd.f32 %v301, %v309
  %v312 = vtanh.pop %v311
  %314 = vrot.lane.b32.xlu0 %v312, 64
  %v315 = vpop.permute.xlu0 %314
  %v317 = vmul.f32 %v299, %v315
  %319 = vrot.lane.b32.xlu0 %v317, 32
  %v320 = vpop.permute.xlu0 %319
  %322 = vst.msk [vmem:[#allocation2] sm:$0xff] %vm219, %v320
  %s323 = scalar_lea.vmem [#allocation3], 8
  %v324 = vld [vmem:[%s323] sm:$0xff]
  %v325 = vsel %vm219, %v320, 0
  %327 = vmatprep.subr.mxu0 0.0
  %328 = vmatpush1.msra.mxu0 0.0
  %329 = vmatprep.subr.mxu0 0.0
  %330 = vmatpush1.msra.mxu0 0.0
  %331 = vmatprep.subr.mxu0 0.0
  %332 = vmatpush1.msra.mxu0 0.0
  %333 = vmatprep.subr.mxu0 0.0
  %334 = vmatpush1.msra.mxu0 0.0
  %335 = vmatprep.subr.mxu0 0.0
  %336 = vmatpush1.msra.mxu0 0.0
  %337 = vmatprep.subr.mxu0 0.0
  %338 = vmatpush1.msra.mxu0 0.0
  %339 = vmatprep.subr.mxu0 0.0
  %340 = vmatpush1.msra.mxu0 0.0
  %341 = vmatprep.subr.mxu0 0.0
  %342 = vmatpush1.msra.mxu0 0.0
  %343 = vmatprep.subr.mxu0 0.0
  %344 = vmatpush1.msra.mxu0 0.0
  %345 = vmatprep.subr.mxu0 0.0
  %346 = vmatpush1.msra.mxu0 0.0
  %347 = vmatprep.subr.mxu0 0.0
  %348 = vmatpush1.msra.mxu0 0.0
  %349 = vmatprep.subr.mxu0 0.0
  %350 = vmatpush1.msra.mxu0 0.0
  %351 = vmatprep.subr.mxu0 0.0
  %352 = vmatpush1.msra.mxu0 %v60
  %353 = vmatprep.subr.mxu0 0.0
  %354 = vmatpush1.msra.mxu0 %v59
  %355 = vmatprep.subr.mxu0 0.0
  %356 = vmatpush1.msra.mxu0 %v58
  %357 = vmatprep.subr.mxu0 0.0
  %358 = vmatpush1.msra.mxu0 %v57
  %359 = vmatprep.subr.mxu0 0.0
  %360 = vmatpush2.msra.mxu0 0.0
  %361 = vmatprep.subr.mxu0 0.0
  %362 = vmatpush2.msra.mxu0 0.0
  %363 = vmatprep.subr.mxu0 0.0
  %364 = vmatpush2.msra.mxu0 0.0
  %365 = vmatprep.subr.mxu0 0.0
  %366 = vmatpush2.msra.mxu0 0.0
  %367 = vmatprep.subr.mxu0 0.0
  %368 = vmatpush2.msra.mxu0 0.0
  %369 = vmatprep.subr.mxu0 0.0
  %370 = vmatpush2.msra.mxu0 0.0
  %371 = vmatprep.subr.mxu0 0.0
  %372 = vmatpush2.msra.mxu0 0.0
  %373 = vmatprep.subr.mxu0 0.0
  %374 = vmatpush2.msra.mxu0 0.0
  %375 = vmatprep.subr.mxu0 0.0
  %376 = vmatpush2.msra.mxu0 0.0
  %377 = vmatprep.subr.mxu0 0.0
  %378 = vmatpush2.msra.mxu0 0.0
  %379 = vmatprep.subr.mxu0 0.0
  %380 = vmatpush2.msra.mxu0 0.0
  %381 = vmatprep.subr.mxu0 0.0
  %382 = vmatpush2.msra.mxu0 0.0
  %383 = vmatprep.subr.mxu0 0.0
  %384 = vmatpush2.msra.mxu0 0.0
  %385 = vmatprep.subr.mxu0 0.0
  %386 = vmatpush2.msra.mxu0 0.0
  %387 = vmatprep.subr.mxu0 0.0
  %388 = vmatpush2.msra.mxu0 0.0
  %389 = vmatprep.subr.mxu0 0.0
  %390 = vmatpush2.msra.mxu0 0.0
  %391 = vmatprep.mubr.f32.mxu0 0.0
  %392 = vmatmul.mubr.f32.gmra.mxu0 %v325
  %v393 = vpop.f32.mrf.mxu0
  %v394 = vadd.f32 0.0, %v393
  %v395 = vpop.f32.mrf.mxu0
  %396 = vdwg.mxu0
  %v397 = vadd.f32 %v324, %v394
  %v398 = vxor.u32 %v397, 2147483648
  %v399 = vmul.f32 %v398, 1.442695
  %v400 = vpow.pop %v399
  %v401 = vadd.f32 %v400, 1.0
  %v402 = vrcp.pop %v401
  %v403 = vmul.f32 1.0, %v402
  %v404 = vtanh.pop %v397
  %v405 = vmul.f32 %v403, %v311
  %407 = vrot.lane.b32.xlu0 %v404, 64
  %v408 = vpop.permute.xlu0 %407
  %v410 = vmul.f32 %v403, %v408
  %412 = vrot.lane.b32.xlu0 %v410, 32
  %v413 = vpop.permute.xlu0 %412
  %v415 = vadd.f32 %v405, %v413
  %v416 = vtanh.pop %v415
  %418 = vrot.lane.b32.xlu0 %v416, 64
  %v419 = vpop.permute.xlu0 %418
  %v421 = vmul.f32 %v403, %v419
  %423 = vrot.lane.b32.xlu0 %v421, 32
  %v424 = vpop.permute.xlu0 %423
  %s426 = scalar_lea.vmem [#allocation2], 8
  %427 = vst.msk [vmem:[%s426] sm:$0xff] %vm219, %v424
  %s428 = scalar_lea.vmem [#allocation3], 16
  %v429 = vld [vmem:[%s428] sm:$0xff]
  %v430 = vsel %vm219, %v424, 0
  %432 = vmatprep.subr.mxu0 0.0
  %433 = vmatpush1.msra.mxu0 0.0
  %434 = vmatprep.subr.mxu0 0.0
  %435 = vmatpush1.msra.mxu0 0.0
  %436 = vmatprep.subr.mxu0 0.0
  %437 = vmatpush1.msra.mxu0 0.0
  %438 = vmatprep.subr.mxu0 0.0
  %439 = vmatpush1.msra.mxu0 0.0
  %440 = vmatprep.subr.mxu0 0.0
  %441 = vmatpush1.msra.mxu0 0.0
  %442 = vmatprep.subr.mxu0 0.0
  %443 = vmatpush1.msra.mxu0 0.0
  %444 = vmatprep.subr.mxu0 0.0
  %445 = vmatpush1.msra.mxu0 0.0
  %446 = vmatprep.subr.mxu0 0.0
  %447 = vmatpush1.msra.mxu0 0.0
  %448 = vmatprep.subr.mxu0 0.0
  %449 = vmatpush1.msra.mxu0 0.0
  %450 = vmatprep.subr.mxu0 0.0
  %451 = vmatpush1.msra.mxu0 0.0
  %452 = vmatprep.subr.mxu0 0.0
  %453 = vmatpush1.msra.mxu0 0.0
  %454 = vmatprep.subr.mxu0 0.0
  %455 = vmatpush1.msra.mxu0 0.0
  %456 = vmatprep.subr.mxu0 0.0
  %457 = vmatpush1.msra.mxu0 %v60
  %458 = vmatprep.subr.mxu0 0.0
  %459 = vmatpush1.msra.mxu0 %v59
  %460 = vmatprep.subr.mxu0 0.0
  %461 = vmatpush1.msra.mxu0 %v58
  %462 = vmatprep.subr.mxu0 0.0
  %463 = vmatpush1.msra.mxu0 %v57
  %464 = vmatprep.subr.mxu0 0.0
  %465 = vmatpush2.msra.mxu0 0.0
  %466 = vmatprep.subr.mxu0 0.0
  %467 = vmatpush2.msra.mxu0 0.0
  %468 = vmatprep.subr.mxu0 0.0
  %469 = vmatpush2.msra.mxu0 0.0
  %470 = vmatprep.subr.mxu0 0.0
  %471 = vmatpush2.msra.mxu0 0.0
  %472 = vmatprep.subr.mxu0 0.0
  %473 = vmatpush2.msra.mxu0 0.0
  %474 = vmatprep.subr.mxu0 0.0
  %475 = vmatpush2.msra.mxu0 0.0
  %476 = vmatprep.subr.mxu0 0.0
  %477 = vmatpush2.msra.mxu0 0.0
  %478 = vmatprep.subr.mxu0 0.0
  %479 = vmatpush2.msra.mxu0 0.0
  %480 = vmatprep.subr.mxu0 0.0
  %481 = vmatpush2.msra.mxu0 0.0
  %482 = vmatprep.subr.mxu0 0.0
  %483 = vmatpush2.msra.mxu0 0.0
  %484 = vmatprep.subr.mxu0 0.0
  %485 = vmatpush2.msra.mxu0 0.0
  %486 = vmatprep.subr.mxu0 0.0
  %487 = vmatpush2.msra.mxu0 0.0
  %488 = vmatprep.subr.mxu0 0.0
  %489 = vmatpush2.msra.mxu0 0.0
  %490 = vmatprep.subr.mxu0 0.0
  %491 = vmatpush2.msra.mxu0 0.0
  %492 = vmatprep.subr.mxu0 0.0
  %493 = vmatpush2.msra.mxu0 0.0
  %494 = vmatprep.subr.mxu0 0.0
  %495 = vmatpush2.msra.mxu0 0.0
  %496 = vmatprep.mubr.f32.mxu0 0.0
  %497 = vmatmul.mubr.f32.gmra.mxu0 %v430
  %v498 = vpop.f32.mrf.mxu0
  %v499 = vadd.f32 0.0, %v498
  %v500 = vpop.f32.mrf.mxu0
  %501 = vdwg.mxu0
  %v502 = vadd.f32 %v429, %v499
  %v503 = vxor.u32 %v502, 2147483648
  %v504 = vmul.f32 %v503, 1.442695
  %v505 = vpow.pop %v504
  %v506 = vadd.f32 %v505, 1.0
  %v507 = vrcp.pop %v506
  %v508 = vmul.f32 1.0, %v507
  %v509 = vtanh.pop %v502
  %v510 = vmul.f32 %v508, %v415
  %512 = vrot.lane.b32.xlu0 %v509, 64
  %v513 = vpop.permute.xlu0 %512
  %v515 = vmul.f32 %v508, %v513
  %517 = vrot.lane.b32.xlu0 %v515, 32
  %v518 = vpop.permute.xlu0 %517
  %v520 = vadd.f32 %v510, %v518
  %v521 = vtanh.pop %v520
  %523 = vrot.lane.b32.xlu0 %v521, 64
  %v524 = vpop.permute.xlu0 %523
  %v526 = vmul.f32 %v508, %v524
  %528 = vrot.lane.b32.xlu0 %v526, 32
  %v529 = vpop.permute.xlu0 %528
  %s531 = scalar_lea.vmem [#allocation2], 16
  %532 = vst.msk [vmem:[%s531] sm:$0xff] %vm219, %v529
  %s533 = scalar_lea.vmem [#allocation3], 24
  %v534 = vld [vmem:[%s533] sm:$0xff]
  %v535 = vsel %vm219, %v529, 0
  %537 = vmatprep.subr.mxu0 0.0
  %538 = vmatpush1.msra.mxu0 0.0
  %539 = vmatprep.subr.mxu0 0.0
  %540 = vmatpush1.msra.mxu0 0.0
  %541 = vmatprep.subr.mxu0 0.0
  %542 = vmatpush1.msra.mxu0 0.0
  %543 = vmatprep.subr.mxu0 0.0
  %544 = vmatpush1.msra.mxu0 0.0
  %545 = vmatprep.subr.mxu0 0.0
  %546 = vmatpush1.msra.mxu0 0.0
  %547 = vmatprep.subr.mxu0 0.0
  %548 = vmatpush1.msra.mxu0 0.0
  %549 = vmatprep.subr.mxu0 0.0
  %550 = vmatpush1.msra.mxu0 0.0
  %551 = vmatprep.subr.mxu0 0.0
  %552 = vmatpush1.msra.mxu0 0.0
  %553 = vmatprep.subr.mxu0 0.0
  %554 = vmatpush1.msra.mxu0 0.0
  %555 = vmatprep.subr.mxu0 0.0
  %556 = vmatpush1.msra.mxu0 0.0
  %557 = vmatprep.subr.mxu0 0.0
  %558 = vmatpush1.msra.mxu0 0.0
  %559 = vmatprep.subr.mxu0 0.0
  %560 = vmatpush1.msra.mxu0 0.0
  %561 = vmatprep.subr.mxu0 0.0
  %562 = vmatpush1.msra.mxu0 %v60
  %563 = vmatprep.subr.mxu0 0.0
  %564 = vmatpush1.msra.mxu0 %v59
  %565 = vmatprep.subr.mxu0 0.0
  %566 = vmatpush1.msra.mxu0 %v58
  %567 = vmatprep.subr.mxu0 0.0
  %568 = vmatpush1.msra.mxu0 %v57
  %569 = vmatprep.subr.mxu0 0.0
  %570 = vmatpush2.msra.mxu0 0.0
  %571 = vmatprep.subr.mxu0 0.0
  %572 = vmatpush2.msra.mxu0 0.0
  %573 = vmatprep.subr.mxu0 0.0
  %574 = vmatpush2.msra.mxu0 0.0
  %575 = vmatprep.subr.mxu0 0.0
  %576 = vmatpush2.msra.mxu0 0.0
  %577 = vmatprep.subr.mxu0 0.0
  %578 = vmatpush2.msra.mxu0 0.0
  %579 = vmatprep.subr.mxu0 0.0
  %580 = vmatpush2.msra.mxu0 0.0
  %581 = vmatprep.subr.mxu0 0.0
  %582 = vmatpush2.msra.mxu0 0.0
  %583 = vmatprep.subr.mxu0 0.0
  %584 = vmatpush2.msra.mxu0 0.0
  %585 = vmatprep.subr.mxu0 0.0
  %586 = vmatpush2.msra.mxu0 0.0
  %587 = vmatprep.subr.mxu0 0.0
  %588 = vmatpush2.msra.mxu0 0.0
  %589 = vmatprep.subr.mxu0 0.0
  %590 = vmatpush2.msra.mxu0 0.0
  %591 = vmatprep.subr.mxu0 0.0
  %592 = vmatpush2.msra.mxu0 0.0
  %593 = vmatprep.subr.mxu0 0.0
  %594 = vmatpush2.msra.mxu0 0.0
  %595 = vmatprep.subr.mxu0 0.0
  %596 = vmatpush2.msra.mxu0 0.0
  %597 = vmatprep.subr.mxu0 0.0
  %598 = vmatpush2.msra.mxu0 0.0
  %599 = vmatprep.subr.mxu0 0.0
  %600 = vmatpush2.msra.mxu0 0.0
  %601 = vmatprep.mubr.f32.mxu0 0.0
  %602 = vmatmul.mubr.f32.gmra.mxu0 %v535
  %v603 = vpop.f32.mrf.mxu0
  %v604 = vadd.f32 0.0, %v603
  %v605 = vpop.f32.mrf.mxu0
  %606 = vdwg.mxu0
  %v607 = vadd.f32 %v534, %v604
  %v608 = vxor.u32 %v607, 2147483648
  %v609 = vmul.f32 %v608, 1.442695
  %v610 = vpow.pop %v609
  %v611 = vadd.f32 %v610, 1.0
  %v612 = vrcp.pop %v611
  %v613 = vmul.f32 1.0, %v612
  %v614 = vtanh.pop %v607
  %v615 = vmul.f32 %v613, %v520
  %617 = vrot.lane.b32.xlu0 %v614, 64
  %v618 = vpop.permute.xlu0 %617
  %v620 = vmul.f32 %v613, %v618
  %622 = vrot.lane.b32.xlu0 %v620, 32
  %v623 = vpop.permute.xlu0 %622
  %v625 = vadd.f32 %v615, %v623
  %v626 = vtanh.pop %v625
  %628 = vrot.lane.b32.xlu0 %v626, 64
  %v629 = vpop.permute.xlu0 %628
  %v631 = vmul.f32 %v613, %v629
  %633 = vrot.lane.b32.xlu0 %v631, 32
  %v634 = vpop.permute.xlu0 %633
  %s636 = scalar_lea.vmem [#allocation2], 24
  %637 = vst.msk [vmem:[%s636] sm:$0xff] %vm219, %v634
  %s638 = scalar_lea.vmem [#allocation3], 32
  %v639 = vld [vmem:[%s638] sm:$0xff]
  %v640 = vsel %vm219, %v634, 0
  %642 = vmatprep.subr.mxu0 0.0
  %643 = vmatpush1.msra.mxu0 0.0
  %644 = vmatprep.subr.mxu0 0.0
  %645 = vmatpush1.msra.mxu0 0.0
  %646 = vmatprep.subr.mxu0 0.0
  %647 = vmatpush1.msra.mxu0 0.0
  %648 = vmatprep.subr.mxu0 0.0
  %649 = vmatpush1.msra.mxu0 0.0
  %650 = vmatprep.subr.mxu0 0.0
  %651 = vmatpush1.msra.mxu0 0.0
  %652 = vmatprep.subr.mxu0 0.0
  %653 = vmatpush1.msra.mxu0 0.0
  %654 = vmatprep.subr.mxu0 0.0
  %655 = vmatpush1.msra.mxu0 0.0
  %656 = vmatprep.subr.mxu0 0.0
  %657 = vmatpush1.msra.mxu0 0.0
  %658 = vmatprep.subr.mxu0 0.0
  %659 = vmatpush1.msra.mxu0 0.0
  %660 = vmatprep.subr.mxu0 0.0
  %661 = vmatpush1.msra.mxu0 0.0
  %662 = vmatprep.subr.mxu0 0.0
  %663 = vmatpush1.msra.mxu0 0.0
  %664 = vmatprep.subr.mxu0 0.0
  %665 = vmatpush1.msra.mxu0 0.0
  %666 = vmatprep.subr.mxu0 0.0
  %667 = vmatpush1.msra.mxu0 %v60
  %668 = vmatprep.subr.mxu0 0.0
  %669 = vmatpush1.msra.mxu0 %v59
  %670 = vmatprep.subr.mxu0 0.0
  %671 = vmatpush1.msra.mxu0 %v58
  %672 = vmatprep.subr.mxu0 0.0
  %673 = vmatpush1.msra.mxu0 %v57
  %674 = vmatprep.subr.mxu0 0.0
  %675 = vmatpush2.msra.mxu0 0.0
  %676 = vmatprep.subr.mxu0 0.0
  %677 = vmatpush2.msra.mxu0 0.0
  %678 = vmatprep.subr.mxu0 0.0
  %679 = vmatpush2.msra.mxu0 0.0
  %680 = vmatprep.subr.mxu0 0.0
  %681 = vmatpush2.msra.mxu0 0.0
  %682 = vmatprep.subr.mxu0 0.0
  %683 = vmatpush2.msra.mxu0 0.0
  %684 = vmatprep.subr.mxu0 0.0
  %685 = vmatpush2.msra.mxu0 0.0
  %686 = vmatprep.subr.mxu0 0.0
  %687 = vmatpush2.msra.mxu0 0.0
  %688 = vmatprep.subr.mxu0 0.0
  %689 = vmatpush2.msra.mxu0 0.0
  %690 = vmatprep.subr.mxu0 0.0
  %691 = vmatpush2.msra.mxu0 0.0
  %692 = vmatprep.subr.mxu0 0.0
  %693 = vmatpush2.msra.mxu0 0.0
  %694 = vmatprep.subr.mxu0 0.0
  %695 = vmatpush2.msra.mxu0 0.0
  %696 = vmatprep.subr.mxu0 0.0
  %697 = vmatpush2.msra.mxu0 0.0
  %698 = vmatprep.subr.mxu0 0.0
  %699 = vmatpush2.msra.mxu0 0.0
  %700 = vmatprep.subr.mxu0 0.0
  %701 = vmatpush2.msra.mxu0 0.0
  %702 = vmatprep.subr.mxu0 0.0
  %703 = vmatpush2.msra.mxu0 0.0
  %704 = vmatprep.subr.mxu0 0.0
  %705 = vmatpush2.msra.mxu0 0.0
  %706 = vmatprep.mubr.f32.mxu0 0.0
  %707 = vmatmul.mubr.f32.gmra.mxu0 %v640
  %v708 = vpop.f32.mrf.mxu0
  %v709 = vadd.f32 0.0, %v708
  %v710 = vpop.f32.mrf.mxu0
  %711 = vdwg.mxu0
  %v712 = vadd.f32 %v639, %v709
  %v713 = vxor.u32 %v712, 2147483648
  %v714 = vmul.f32 %v713, 1.442695
  %v715 = vpow.pop %v714
  %v716 = vadd.f32 %v715, 1.0
  %v717 = vrcp.pop %v716
  %v718 = vmul.f32 1.0, %v717
  %v719 = vtanh.pop %v712
  %v720 = vmul.f32 %v718, %v625
  %722 = vrot.lane.b32.xlu0 %v719, 64
  %v723 = vpop.permute.xlu0 %722
  %v725 = vmul.f32 %v718, %v723
  %727 = vrot.lane.b32.xlu0 %v725, 32
  %v728 = vpop.permute.xlu0 %727
  %v730 = vadd.f32 %v720, %v728
  %v731 = vtanh.pop %v730
  %733 = vrot.lane.b32.xlu0 %v731, 64
  %v734 = vpop.permute.xlu0 %733
  %v736 = vmul.f32 %v718, %v734
  %738 = vrot.lane.b32.xlu0 %v736, 32
  %v739 = vpop.permute.xlu0 %738
  %s741 = scalar_lea.vmem [#allocation2], 32
  %742 = vst.msk [vmem:[%s741] sm:$0xff] %vm219, %v739
  %s743 = scalar_lea.vmem [#allocation3], 40
  %v744 = vld [vmem:[%s743] sm:$0xff]
  %v745 = vsel %vm219, %v739, 0
  %747 = vmatprep.subr.mxu0 0.0
  %748 = vmatpush1.msra.mxu0 0.0
  %749 = vmatprep.subr.mxu0 0.0
  %750 = vmatpush1.msra.mxu0 0.0
  %751 = vmatprep.subr.mxu0 0.0
  %752 = vmatpush1.msra.mxu0 0.0
  %753 = vmatprep.subr.mxu0 0.0
  %754 = vmatpush1.msra.mxu0 0.0
  %755 = vmatprep.subr.mxu0 0.0
  %756 = vmatpush1.msra.mxu0 0.0
  %757 = vmatprep.subr.mxu0 0.0
  %758 = vmatpush1.msra.mxu0 0.0
  %759 = vmatprep.subr.mxu0 0.0
  %760 = vmatpush1.msra.mxu0 0.0
  %761 = vmatprep.subr.mxu0 0.0
  %762 = vmatpush1.msra.mxu0 0.0
  %763 = vmatprep.subr.mxu0 0.0
  %764 = vmatpush1.msra.mxu0 0.0
  %765 = vmatprep.subr.mxu0 0.0
  %766 = vmatpush1.msra.mxu0 0.0
  %767 = vmatprep.subr.mxu0 0.0
  %768 = vmatpush1.msra.mxu0 0.0
  %769 = vmatprep.subr.mxu0 0.0
  %770 = vmatpush1.msra.mxu0 0.0
  %771 = vmatprep.subr.mxu0 0.0
  %772 = vmatpush1.msra.mxu0 %v60
  %773 = vmatprep.subr.mxu0 0.0
  %774 = vmatpush1.msra.mxu0 %v59
  %775 = vmatprep.subr.mxu0 0.0
  %776 = vmatpush1.msra.mxu0 %v58
  %777 = vmatprep.subr.mxu0 0.0
  %778 = vmatpush1.msra.mxu0 %v57
  %779 = vmatprep.subr.mxu0 0.0
  %780 = vmatpush2.msra.mxu0 0.0
  %781 = vmatprep.subr.mxu0 0.0
  %782 = vmatpush2.msra.mxu0 0.0
  %783 = vmatprep.subr.mxu0 0.0
  %784 = vmatpush2.msra.mxu0 0.0
  %785 = vmatprep.subr.mxu0 0.0
  %786 = vmatpush2.msra.mxu0 0.0
  %787 = vmatprep.subr.mxu0 0.0
  %788 = vmatpush2.msra.mxu0 0.0
  %789 = vmatprep.subr.mxu0 0.0
  %790 = vmatpush2.msra.mxu0 0.0
  %791 = vmatprep.subr.mxu0 0.0
  %792 = vmatpush2.msra.mxu0 0.0
  %793 = vmatprep.subr.mxu0 0.0
  %794 = vmatpush2.msra.mxu0 0.0
  %795 = vmatprep.subr.mxu0 0.0
  %796 = vmatpush2.msra.mxu0 0.0
  %797 = vmatprep.subr.mxu0 0.0
  %798 = vmatpush2.msra.mxu0 0.0
  %799 = vmatprep.subr.mxu0 0.0
  %800 = vmatpush2.msra.mxu0 0.0
  %801 = vmatprep.subr.mxu0 0.0
  %802 = vmatpush2.msra.mxu0 0.0
  %803 = vmatprep.subr.mxu0 0.0
  %804 = vmatpush2.msra.mxu0 0.0
  %805 = vmatprep.subr.mxu0 0.0
  %806 = vmatpush2.msra.mxu0 0.0
  %807 = vmatprep.subr.mxu0 0.0
  %808 = vmatpush2.msra.mxu0 0.0
  %809 = vmatprep.subr.mxu0 0.0
  %810 = vmatpush2.msra.mxu0 0.0
  %811 = vmatprep.mubr.f32.mxu0 0.0
  %812 = vmatmul.mubr.f32.gmra.mxu0 %v745
  %v813 = vpop.f32.mrf.mxu0
  %v814 = vadd.f32 0.0, %v813
  %v815 = vpop.f32.mrf.mxu0
  %816 = vdwg.mxu0
  %v817 = vadd.f32 %v744, %v814
  %v818 = vxor.u32 %v817, 2147483648
  %v819 = vmul.f32 %v818, 1.442695
  %v820 = vpow.pop %v819
  %v821 = vadd.f32 %v820, 1.0
  %v822 = vrcp.pop %v821
  %v823 = vmul.f32 1.0, %v822
  %v824 = vtanh.pop %v817
  %v825 = vmul.f32 %v823, %v730
  %827 = vrot.lane.b32.xlu0 %v824, 64
  %v828 = vpop.permute.xlu0 %827
  %v830 = vmul.f32 %v823, %v828
  %832 = vrot.lane.b32.xlu0 %v830, 32
  %v833 = vpop.permute.xlu0 %832
  %v835 = vadd.f32 %v825, %v833
  %v836 = vtanh.pop %v835
  %838 = vrot.lane.b32.xlu0 %v836, 64
  %v839 = vpop.permute.xlu0 %838
  %v841 = vmul.f32 %v823, %v839
  %843 = vrot.lane.b32.xlu0 %v841, 32
  %v844 = vpop.permute.xlu0 %843
  %s846 = scalar_lea.vmem [#allocation2], 40
  %847 = vst.msk [vmem:[%s846] sm:$0xff] %vm219, %v844
  %s848 = scalar_lea.vmem [#allocation3], 48
  %v849 = vld [vmem:[%s848] sm:$0xff]
  %v850 = vsel %vm219, %v844, 0
  %852 = vmatprep.subr.mxu0 0.0
  %853 = vmatpush1.msra.mxu0 0.0
  %854 = vmatprep.subr.mxu0 0.0
  %855 = vmatpush1.msra.mxu0 0.0
  %856 = vmatprep.subr.mxu0 0.0
  %857 = vmatpush1.msra.mxu0 0.0
  %858 = vmatprep.subr.mxu0 0.0
  %859 = vmatpush1.msra.mxu0 0.0
  %860 = vmatprep.subr.mxu0 0.0
  %861 = vmatpush1.msra.mxu0 0.0
  %862 = vmatprep.subr.mxu0 0.0
  %863 = vmatpush1.msra.mxu0 0.0
  %864 = vmatprep.subr.mxu0 0.0
  %865 = vmatpush1.msra.mxu0 0.0
  %866 = vmatprep.subr.mxu0 0.0
  %867 = vmatpush1.msra.mxu0 0.0
  %868 = vmatprep.subr.mxu0 0.0
  %869 = vmatpush1.msra.mxu0 0.0
  %870 = vmatprep.subr.mxu0 0.0
  %871 = vmatpush1.msra.mxu0 0.0
  %872 = vmatprep.subr.mxu0 0.0
  %873 = vmatpush1.msra.mxu0 0.0
  %874 = vmatprep.subr.mxu0 0.0
  %875 = vmatpush1.msra.mxu0 0.0
  %876 = vmatprep.subr.mxu0 0.0
  %877 = vmatpush1.msra.mxu0 %v60
  %878 = vmatprep.subr.mxu0 0.0
  %879 = vmatpush1.msra.mxu0 %v59
  %880 = vmatprep.subr.mxu0 0.0
  %881 = vmatpush1.msra.mxu0 %v58
  %882 = vmatprep.subr.mxu0 0.0
  %883 = vmatpush1.msra.mxu0 %v57
  %884 = vmatprep.subr.mxu0 0.0
  %885 = vmatpush2.msra.mxu0 0.0
  %886 = vmatprep.subr.mxu0 0.0
  %887 = vmatpush2.msra.mxu0 0.0
  %888 = vmatprep.subr.mxu0 0.0
  %889 = vmatpush2.msra.mxu0 0.0
  %890 = vmatprep.subr.mxu0 0.0
  %891 = vmatpush2.msra.mxu0 0.0
  %892 = vmatprep.subr.mxu0 0.0
  %893 = vmatpush2.msra.mxu0 0.0
  %894 = vmatprep.subr.mxu0 0.0
  %895 = vmatpush2.msra.mxu0 0.0
  %896 = vmatprep.subr.mxu0 0.0
  %897 = vmatpush2.msra.mxu0 0.0
  %898 = vmatprep.subr.mxu0 0.0
  %899 = vmatpush2.msra.mxu0 0.0
  %900 = vmatprep.subr.mxu0 0.0
  %901 = vmatpush2.msra.mxu0 0.0
  %902 = vmatprep.subr.mxu0 0.0
  %903 = vmatpush2.msra.mxu0 0.0
  %904 = vmatprep.subr.mxu0 0.0
  %905 = vmatpush2.msra.mxu0 0.0
  %906 = vmatprep.subr.mxu0 0.0
  %907 = vmatpush2.msra.mxu0 0.0
  %908 = vmatprep.subr.mxu0 0.0
  %909 = vmatpush2.msra.mxu0 0.0
  %910 = vmatprep.subr.mxu0 0.0
  %911 = vmatpush2.msra.mxu0 0.0
  %912 = vmatprep.subr.mxu0 0.0
  %913 = vmatpush2.msra.mxu0 0.0
  %914 = vmatprep.subr.mxu0 0.0
  %915 = vmatpush2.msra.mxu0 0.0
  %916 = vmatprep.mubr.f32.mxu0 0.0
  %917 = vmatmul.mubr.f32.gmra.mxu0 %v850
  %v918 = vpop.f32.mrf.mxu0
  %v919 = vadd.f32 0.0, %v918
  %v920 = vpop.f32.mrf.mxu0
  %921 = vdwg.mxu0
  %v922 = vadd.f32 %v849, %v919
  %v923 = vxor.u32 %v922, 2147483648
  %v924 = vmul.f32 %v923, 1.442695
  %v925 = vpow.pop %v924
  %v926 = vadd.f32 %v925, 1.0
  %v927 = vrcp.pop %v926
  %v928 = vmul.f32 1.0, %v927
  %v929 = vtanh.pop %v922
  %v930 = vmul.f32 %v928, %v835
  %932 = vrot.lane.b32.xlu0 %v929, 64
  %v933 = vpop.permute.xlu0 %932
  %v935 = vmul.f32 %v928, %v933
  %937 = vrot.lane.b32.xlu0 %v935, 32
  %v938 = vpop.permute.xlu0 %937
  %v940 = vadd.f32 %v930, %v938
  %v941 = vtanh.pop %v940
  %943 = vrot.lane.b32.xlu0 %v941, 64
  %v944 = vpop.permute.xlu0 %943
  %v946 = vmul.f32 %v928, %v944
  %948 = vrot.lane.b32.xlu0 %v946, 32
  %v949 = vpop.permute.xlu0 %948
  %s951 = scalar_lea.vmem [#allocation2], 48
  %952 = vst.msk [vmem:[%s951] sm:$0xff] %vm219, %v949
  %s953 = scalar_lea.vmem [#allocation3], 56
  %v954 = vld [vmem:[%s953] sm:$0xff]
  %v955 = vsel %vm219, %v949, 0
  %957 = vmatprep.subr.mxu0 0.0
  %958 = vmatpush1.msra.mxu0 0.0
  %959 = vmatprep.subr.mxu0 0.0
  %960 = vmatpush1.msra.mxu0 0.0
  %961 = vmatprep.subr.mxu0 0.0
  %962 = vmatpush1.msra.mxu0 0.0
  %963 = vmatprep.subr.mxu0 0.0
  %964 = vmatpush1.msra.mxu0 0.0
  %965 = vmatprep.subr.mxu0 0.0
  %966 = vmatpush1.msra.mxu0 0.0
  %967 = vmatprep.subr.mxu0 0.0
  %968 = vmatpush1.msra.mxu0 0.0
  %969 = vmatprep.subr.mxu0 0.0
  %970 = vmatpush1.msra.mxu0 0.0
  %971 = vmatprep.subr.mxu0 0.0
  %972 = vmatpush1.msra.mxu0 0.0
  %973 = vmatprep.subr.mxu0 0.0
  %974 = vmatpush1.msra.mxu0 0.0
  %975 = vmatprep.subr.mxu0 0.0
  %976 = vmatpush1.msra.mxu0 0.0
  %977 = vmatprep.subr.mxu0 0.0
  %978 = vmatpush1.msra.mxu0 0.0
  %979 = vmatprep.subr.mxu0 0.0
  %980 = vmatpush1.msra.mxu0 0.0
  %981 = vmatprep.subr.mxu0 0.0
  %982 = vmatpush1.msra.mxu0 %v60
  %983 = vmatprep.subr.mxu0 0.0
  %984 = vmatpush1.msra.mxu0 %v59
  %985 = vmatprep.subr.mxu0 0.0
  %986 = vmatpush1.msra.mxu0 %v58
  %987 = vmatprep.subr.mxu0 0.0
  %988 = vmatpush1.msra.mxu0 %v57
  %989 = vmatprep.subr.mxu0 0.0
  %990 = vmatpush2.msra.mxu0 0.0
  %991 = vmatprep.subr.mxu0 0.0
  %992 = vmatpush2.msra.mxu0 0.0
  %993 = vmatprep.subr.mxu0 0.0
  %994 = vmatpush2.msra.mxu0 0.0
  %995 = vmatprep.subr.mxu0 0.0
  %996 = vmatpush2.msra.mxu0 0.0
  %997 = vmatprep.subr.mxu0 0.0
  %998 = vmatpush2.msra.mxu0 0.0
  %999 = vmatprep.subr.mxu0 0.0
  %1000 = vmatpush2.msra.mxu0 0.0
  %1001 = vmatprep.subr.mxu0 0.0
  %1002 = vmatpush2.msra.mxu0 0.0
  %1003 = vmatprep.subr.mxu0 0.0
  %1004 = vmatpush2.msra.mxu0 0.0
  %1005 = vmatprep.subr.mxu0 0.0
  %1006 = vmatpush2.msra.mxu0 0.0
  %1007 = vmatprep.subr.mxu0 0.0
  %1008 = vmatpush2.msra.mxu0 0.0
  %1009 = vmatprep.subr.mxu0 0.0
  %1010 = vmatpush2.msra.mxu0 0.0
  %1011 = vmatprep.subr.mxu0 0.0
  %1012 = vmatpush2.msra.mxu0 0.0
  %1013 = vmatprep.subr.mxu0 0.0
  %1014 = vmatpush2.msra.mxu0 0.0
  %1015 = vmatprep.subr.mxu0 0.0
  %1016 = vmatpush2.msra.mxu0 0.0
  %1017 = vmatprep.subr.mxu0 0.0
  %1018 = vmatpush2.msra.mxu0 0.0
  %1019 = vmatprep.subr.mxu0 0.0
  %1020 = vmatpush2.msra.mxu0 0.0
  %1021 = vmatprep.mubr.f32.mxu0 0.0
  %1022 = vmatmul.mubr.f32.gmra.mxu0 %v955
  %v1023 = vpop.f32.mrf.mxu0
  %v1024 = vadd.f32 0.0, %v1023
  %v1025 = vpop.f32.mrf.mxu0
  %1026 = vdwg.mxu0
  %v1027 = vadd.f32 %v954, %v1024
  %v1028 = vxor.u32 %v1027, 2147483648
  %v1029 = vmul.f32 %v1028, 1.442695
  %v1030 = vpow.pop %v1029
  %v1031 = vadd.f32 %v1030, 1.0
  %v1032 = vrcp.pop %v1031
  %v1033 = vmul.f32 1.0, %v1032
  %v1034 = vtanh.pop %v1027
  %v1035 = vmul.f32 %v1033, %v940
  %1037 = vrot.lane.b32.xlu0 %v1034, 64
  %v1038 = vpop.permute.xlu0 %1037
  %v1040 = vmul.f32 %v1033, %v1038
  %1042 = vrot.lane.b32.xlu0 %v1040, 32
  %v1043 = vpop.permute.xlu0 %1042
  %v1045 = vadd.f32 %v1035, %v1043
  %v1046 = vtanh.pop %v1045
  %1048 = vrot.lane.b32.xlu0 %v1046, 64
  %v1049 = vpop.permute.xlu0 %1048
  %v1051 = vmul.f32 %v1033, %v1049
  %1053 = vrot.lane.b32.xlu0 %v1051, 32
  %v1054 = vpop.permute.xlu0 %1053
  %s1056 = scalar_lea.vmem [#allocation2], 56
  %1057 = vst.msk [vmem:[%s1056] sm:$0xff] %vm219, %v1054
  %v1058 = vld [vmem:[%s4] sm:$0xff]
  %v1059 = vld [vmem:[%s4 + $0x8] sm:$0xff]
  %v1060 = vld [vmem:[%s4 + $0x10] sm:$0xff]
  %v1061 = vld [vmem:[%s4 + $0x18] sm:$0xff]
  %v1062 = vld [vmem:[%s5] sm:$0xff]
  %v1063 = vld [vmem:[%s5 + $0x8] sm:$0xff]
  %v1064 = vld [vmem:[%s5 + $0x10] sm:$0xff]
  %v1065 = vld [vmem:[%s5 + $0x18] sm:$0xff]
  %v1066 = vld [vmem:[%s6] sm:$0x1]
  %v1067 = vld [vmem:[#allocation2] sm:$0xff]
  %v1068 = vld [vmem:[#allocation2 + $0x8] sm:$0xff]
  %v1069 = vld [vmem:[#allocation2 + $0x10] sm:$0xff]
  %v1070 = vld [vmem:[#allocation2 + $0x18] sm:$0xff]
  %v1071 = vld [vmem:[#allocation2 + $0x20] sm:$0xff]
  %v1072 = vld [vmem:[#allocation2 + $0x28] sm:$0xff]
  %v1073 = vld [vmem:[#allocation2 + $0x30] sm:$0xff]
  %v1074 = vld [vmem:[#allocation2 + $0x38] sm:$0xff]
  %v1076 = vlaneseq
  %v1077 = vshrl.u32 %v1076, 7
  %v1078 = vsub.s32 0, %v1077
  %v1079 = vrot.slane %v1066, %v1078
  %v1082 = vsel %vm219, %v1067, 0
  %v1085 = vsel %vm219, %v1068, 0
  %v1088 = vsel %vm219, %v1069, 0
  %v1091 = vsel %vm219, %v1070, 0
  %v1094 = vsel %vm219, %v1071, 0
  %v1097 = vsel %vm219, %v1072, 0
  %v1100 = vsel %vm219, %v1073, 0
  %v1103 = vsel %vm219, %v1074, 0
  %1105 = vmatprep.subr.mxu0 0.0
  %1106 = vmatpush1.msra.mxu0 0.0
  %1107 = vmatprep.subr.mxu0 0.0
  %1108 = vmatpush1.msra.mxu0 0.0
  %1109 = vmatprep.subr.mxu0 0.0
  %1110 = vmatpush1.msra.mxu0 0.0
  %1111 = vmatprep.subr.mxu0 0.0
  %1112 = vmatpush1.msra.mxu0 0.0
  %1113 = vmatprep.subr.mxu0 0.0
  %1114 = vmatpush1.msra.mxu0 0.0
  %1115 = vmatprep.subr.mxu0 0.0
  %1116 = vmatpush1.msra.mxu0 0.0
  %1117 = vmatprep.subr.mxu0 0.0
  %1118 = vmatpush1.msra.mxu0 0.0
  %1119 = vmatprep.subr.mxu0 0.0
  %1120 = vmatpush1.msra.mxu0 0.0
  %1121 = vmatprep.subr.mxu0 0.0
  %1122 = vmatpush1.msra.mxu0 0.0
  %1123 = vmatprep.subr.mxu0 0.0
  %1124 = vmatpush1.msra.mxu0 0.0
  %1125 = vmatprep.subr.mxu0 0.0
  %1126 = vmatpush1.msra.mxu0 0.0
  %1127 = vmatprep.subr.mxu0 0.0
  %1128 = vmatpush1.msra.mxu0 0.0
  %1129 = vmatprep.subr.mxu0 0.0
  %1130 = vmatpush1.msra.mxu0 %v1061
  %1131 = vmatprep.subr.mxu0 0.0
  %1132 = vmatpush1.msra.mxu0 %v1060
  %1133 = vmatprep.subr.mxu0 0.0
  %1134 = vmatpush1.msra.mxu0 %v1059
  %1135 = vmatprep.subr.mxu0 0.0
  %1136 = vmatpush1.msra.mxu0 %v1058
  %1137 = vmatprep.subr.mxu0 0.0
  %1138 = vmatpush2.msra.mxu0 0.0
  %1139 = vmatprep.subr.mxu0 0.0
  %1140 = vmatpush2.msra.mxu0 0.0
  %1141 = vmatprep.subr.mxu0 0.0
  %1142 = vmatpush2.msra.mxu0 0.0
  %1143 = vmatprep.subr.mxu0 0.0
  %1144 = vmatpush2.msra.mxu0 0.0
  %1145 = vmatprep.subr.mxu0 0.0
  %1146 = vmatpush2.msra.mxu0 0.0
  %1147 = vmatprep.subr.mxu0 0.0
  %1148 = vmatpush2.msra.mxu0 0.0
  %1149 = vmatprep.subr.mxu0 0.0
  %1150 = vmatpush2.msra.mxu0 0.0
  %1151 = vmatprep.subr.mxu0 0.0
  %1152 = vmatpush2.msra.mxu0 0.0
  %1153 = vmatprep.subr.mxu0 0.0
  %1154 = vmatpush2.msra.mxu0 0.0
  %1155 = vmatprep.subr.mxu0 0.0
  %1156 = vmatpush2.msra.mxu0 0.0
  %1157 = vmatprep.subr.mxu0 0.0
  %1158 = vmatpush2.msra.mxu0 0.0
  %1159 = vmatprep.subr.mxu0 0.0
  %1160 = vmatpush2.msra.mxu0 0.0
  %1161 = vmatprep.subr.mxu0 0.0
  %1162 = vmatpush2.msra.mxu0 0.0
  %1163 = vmatprep.subr.mxu0 0.0
  %1164 = vmatpush2.msra.mxu0 0.0
  %1165 = vmatprep.subr.mxu0 0.0
  %1166 = vmatpush2.msra.mxu0 0.0
  %1167 = vmatprep.subr.mxu0 0.0
  %1168 = vmatpush2.msra.mxu0 0.0
  %1169 = vmatprep.mubr.f32.mxu0 0.0
  %1170 = vmatmul.mubr.f32.gmra.mxu0 %v1082
  %v1171 = vpop.f32.mrf.mxu0
  %v1172 = vadd.f32 %v1079, %v1171
  %v1173 = vpop.f32.mrf.mxu0
  %1174 = vmatprep.mubr.f32.mxu0 0.0
  %1175 = vmatmul.mubr.f32.gmra.mxu0 %v1085
  %v1176 = vpop.f32.mrf.mxu0
  %v1177 = vadd.f32 %v1079, %v1176
  %v1178 = vpop.f32.mrf.mxu0
  %1179 = vmatprep.mubr.f32.mxu0 0.0
  %1180 = vmatmul.mubr.f32.gmra.mxu0 %v1088
  %v1181 = vpop.f32.mrf.mxu0
  %v1182 = vadd.f32 %v1079, %v1181
  %v1183 = vpop.f32.mrf.mxu0
  %1184 = vmatprep.mubr.f32.mxu0 0.0
  %1185 = vmatmul.mubr.f32.gmra.mxu0 %v1091
  %v1186 = vpop.f32.mrf.mxu0
  %v1187 = vadd.f32 %v1079, %v1186
  %v1188 = vpop.f32.mrf.mxu0
  %1189 = vmatprep.mubr.f32.mxu0 0.0
  %1190 = vmatmul.mubr.f32.gmra.mxu0 %v1094
  %v1191 = vpop.f32.mrf.mxu0
  %v1192 = vadd.f32 %v1079, %v1191
  %v1193 = vpop.f32.mrf.mxu0
  %1194 = vmatprep.mubr.f32.mxu0 0.0
  %1195 = vmatmul.mubr.f32.gmra.mxu0 %v1097
  %v1196 = vpop.f32.mrf.mxu0
  %v1197 = vadd.f32 %v1079, %v1196
  %v1198 = vpop.f32.mrf.mxu0
  %1199 = vmatprep.mubr.f32.mxu0 0.0
  %1200 = vmatmul.mubr.f32.gmra.mxu0 %v1100
  %v1201 = vpop.f32.mrf.mxu0
  %v1202 = vadd.f32 %v1079, %v1201
  %v1203 = vpop.f32.mrf.mxu0
  %1204 = vmatprep.mubr.f32.mxu0 0.0
  %1205 = vmatmul.mubr.f32.gmra.mxu0 %v1103
  %v1206 = vpop.f32.mrf.mxu0
  %v1207 = vadd.f32 %v1079, %v1206
  %v1208 = vpop.f32.mrf.mxu0
  %1209 = vdwg.mxu0
  %1210 = vst [vmem:[#allocation3] sm:$0xff] %v1172
  %1211 = vst [vmem:[#allocation3 + $0x8] sm:$0xff] %v1177
  %1212 = vst [vmem:[#allocation3 + $0x10] sm:$0xff] %v1182
  %1213 = vst [vmem:[#allocation3 + $0x18] sm:$0xff] %v1187
  %1214 = vst [vmem:[#allocation3 + $0x20] sm:$0xff] %v1192
  %1215 = vst [vmem:[#allocation3 + $0x28] sm:$0xff] %v1197
  %1216 = vst [vmem:[#allocation3 + $0x30] sm:$0xff] %v1202
  %1217 = vst [vmem:[#allocation3 + $0x38] sm:$0xff] %v1207
  %v1218 = vld [vmem:[#allocation3] sm:$0xff]
  %1219 = vmatprep.subr.mxu0 0.0
  %1220 = vmatpush1.msra.mxu0 0.0
  %1221 = vmatprep.subr.mxu0 0.0
  %1222 = vmatpush1.msra.mxu0 0.0
  %1223 = vmatprep.subr.mxu0 0.0
  %1224 = vmatpush1.msra.mxu0 0.0
  %1225 = vmatprep.subr.mxu0 0.0
  %1226 = vmatpush1.msra.mxu0 0.0
  %1227 = vmatprep.subr.mxu0 0.0
  %1228 = vmatpush1.msra.mxu0 0.0
  %1229 = vmatprep.subr.mxu0 0.0
  %1230 = vmatpush1.msra.mxu0 0.0
  %1231 = vmatprep.subr.mxu0 0.0
  %1232 = vmatpush1.msra.mxu0 0.0
  %1233 = vmatprep.subr.mxu0 0.0
  %1234 = vmatpush1.msra.mxu0 0.0
  %1235 = vmatprep.subr.mxu0 0.0
  %1236 = vmatpush1.msra.mxu0 0.0
  %1237 = vmatprep.subr.mxu0 0.0
  %1238 = vmatpush1.msra.mxu0 0.0
  %1239 = vmatprep.subr.mxu0 0.0
  %1240 = vmatpush1.msra.mxu0 0.0
  %1241 = vmatprep.subr.mxu0 0.0
  %1242 = vmatpush1.msra.mxu0 0.0
  %1243 = vmatprep.subr.mxu0 0.0
  %1244 = vmatpush1.msra.mxu0 %v1065
  %1245 = vmatprep.subr.mxu0 0.0
  %1246 = vmatpush1.msra.mxu0 %v1064
  %1247 = vmatprep.subr.mxu0 0.0
  %1248 = vmatpush1.msra.mxu0 %v1063
  %1249 = vmatprep.subr.mxu0 0.0
  %1250 = vmatpush1.msra.mxu0 %v1062
  %1251 = vmatprep.subr.mxu0 0.0
  %1252 = vmatpush2.msra.mxu0 0.0
  %1253 = vmatprep.subr.mxu0 0.0
  %1254 = vmatpush2.msra.mxu0 0.0
  %1255 = vmatprep.subr.mxu0 0.0
  %1256 = vmatpush2.msra.mxu0 0.0
  %1257 = vmatprep.subr.mxu0 0.0
  %1258 = vmatpush2.msra.mxu0 0.0
  %1259 = vmatprep.subr.mxu0 0.0
  %1260 = vmatpush2.msra.mxu0 0.0
  %1261 = vmatprep.subr.mxu0 0.0
  %1262 = vmatpush2.msra.mxu0 0.0
  %1263 = vmatprep.subr.mxu0 0.0
  %1264 = vmatpush2.msra.mxu0 0.0
  %1265 = vmatprep.subr.mxu0 0.0
  %1266 = vmatpush2.msra.mxu0 0.0
  %1267 = vmatprep.subr.mxu0 0.0
  %1268 = vmatpush2.msra.mxu0 0.0
  %1269 = vmatprep.subr.mxu0 0.0
  %1270 = vmatpush2.msra.mxu0 0.0
  %1271 = vmatprep.subr.mxu0 0.0
  %1272 = vmatpush2.msra.mxu0 0.0
  %1273 = vmatprep.subr.mxu0 0.0
  %1274 = vmatpush2.msra.mxu0 0.0
  %1275 = vmatprep.subr.mxu0 0.0
  %1276 = vmatpush2.msra.mxu0 0.0
  %1277 = vmatprep.subr.mxu0 0.0
  %1278 = vmatpush2.msra.mxu0 0.0
  %1279 = vmatprep.subr.mxu0 0.0
  %1280 = vmatpush2.msra.mxu0 0.0
  %1281 = vmatprep.subr.mxu0 0.0
  %1282 = vmatpush2.msra.mxu0 0.0
  %1283 = vmatprep.mubr.f32.mxu0 0.0
  %1284 = vmatmul.mubr.f32.gmra.mxu0 %v221
  %v1285 = vpop.f32.mrf.mxu0
  %v1286 = vadd.f32 0.0, %v1285
  %v1287 = vpop.f32.mrf.mxu0
  %1288 = vdwg.mxu0
  %v1289 = vadd.f32 %v1218, %v1286
  %v1290 = vxor.u32 %v1289, 2147483648
  %v1291 = vmul.f32 %v1290, 1.442695
  %v1292 = vpow.pop %v1291
  %v1293 = vadd.f32 %v1292, 1.0
  %v1294 = vrcp.pop %v1293
  %v1295 = vmul.f32 1.0, %v1294
  %v1296 = vtanh.pop %v1289
  %v1297 = vmul.f32 %v1295, 0.0
  %1299 = vrot.lane.b32.xlu0 %v1296, 64
  %v1300 = vpop.permute.xlu0 %1299
  %v1302 = vmul.f32 %v1295, %v1300
  %1304 = vrot.lane.b32.xlu0 %v1302, 32
  %v1305 = vpop.permute.xlu0 %1304
  %v1307 = vadd.f32 %v1297, %v1305
  %v1308 = vtanh.pop %v1307
  %1310 = vrot.lane.b32.xlu0 %v1308, 64
  %v1311 = vpop.permute.xlu0 %1310
  %v1313 = vmul.f32 %v1295, %v1311
  %1315 = vrot.lane.b32.xlu0 %v1313, 32
  %v1316 = vpop.permute.xlu0 %1315
  %1318 = vst.msk [vmem:[#allocation2] sm:$0xff] %vm219, %v1316
  %v1319 = vld [vmem:[%s323] sm:$0xff]
  %v1320 = vsel %vm219, %v1316, 0
  %1322 = vmatprep.subr.mxu0 0.0
  %1323 = vmatpush1.msra.mxu0 0.0
  %1324 = vmatprep.subr.mxu0 0.0
  %1325 = vmatpush1.msra.mxu0 0.0
  %1326 = vmatprep.subr.mxu0 0.0
  %1327 = vmatpush1.msra.mxu0 0.0
  %1328 = vmatprep.subr.mxu0 0.0
  %1329 = vmatpush1.msra.mxu0 0.0
  %1330 = vmatprep.subr.mxu0 0.0
  %1331 = vmatpush1.msra.mxu0 0.0
  %1332 = vmatprep.subr.mxu0 0.0
  %1333 = vmatpush1.msra.mxu0 0.0
  %1334 = vmatprep.subr.mxu0 0.0
  %1335 = vmatpush1.msra.mxu0 0.0
  %1336 = vmatprep.subr.mxu0 0.0
  %1337 = vmatpush1.msra.mxu0 0.0
  %1338 = vmatprep.subr.mxu0 0.0
  %1339 = vmatpush1.msra.mxu0 0.0
  %1340 = vmatprep.subr.mxu0 0.0
  %1341 = vmatpush1.msra.mxu0 0.0
  %1342 = vmatprep.subr.mxu0 0.0
  %1343 = vmatpush1.msra.mxu0 0.0
  %1344 = vmatprep.subr.mxu0 0.0
  %1345 = vmatpush1.msra.mxu0 0.0
  %1346 = vmatprep.subr.mxu0 0.0
  %1347 = vmatpush1.msra.mxu0 %v1065
  %1348 = vmatprep.subr.mxu0 0.0
  %1349 = vmatpush1.msra.mxu0 %v1064
  %1350 = vmatprep.subr.mxu0 0.0
  %1351 = vmatpush1.msra.mxu0 %v1063
  %1352 = vmatprep.subr.mxu0 0.0
  %1353 = vmatpush1.msra.mxu0 %v1062
  %1354 = vmatprep.subr.mxu0 0.0
  %1355 = vmatpush2.msra.mxu0 0.0
  %1356 = vmatprep.subr.mxu0 0.0
  %1357 = vmatpush2.msra.mxu0 0.0
  %1358 = vmatprep.subr.mxu0 0.0
  %1359 = vmatpush2.msra.mxu0 0.0
  %1360 = vmatprep.subr.mxu0 0.0
  %1361 = vmatpush2.msra.mxu0 0.0
  %1362 = vmatprep.subr.mxu0 0.0
  %1363 = vmatpush2.msra.mxu0 0.0
  %1364 = vmatprep.subr.mxu0 0.0
  %1365 = vmatpush2.msra.mxu0 0.0
  %1366 = vmatprep.subr.mxu0 0.0
  %1367 = vmatpush2.msra.mxu0 0.0
  %1368 = vmatprep.subr.mxu0 0.0
  %1369 = vmatpush2.msra.mxu0 0.0
  %1370 = vmatprep.subr.mxu0 0.0
  %1371 = vmatpush2.msra.mxu0 0.0
  %1372 = vmatprep.subr.mxu0 0.0
  %1373 = vmatpush2.msra.mxu0 0.0
  %1374 = vmatprep.subr.mxu0 0.0
  %1375 = vmatpush2.msra.mxu0 0.0
  %1376 = vmatprep.subr.mxu0 0.0
  %1377 = vmatpush2.msra.mxu0 0.0
  %1378 = vmatprep.subr.mxu0 0.0
  %1379 = vmatpush2.msra.mxu0 0.0
  %1380 = vmatprep.subr.mxu0 0.0
  %1381 = vmatpush2.msra.mxu0 0.0
  %1382 = vmatprep.subr.mxu0 0.0
  %1383 = vmatpush2.msra.mxu0 0.0
  %1384 = vmatprep.subr.mxu0 0.0
  %1385 = vmatpush2.msra.mxu0 0.0
  %1386 = vmatprep.mubr.f32.mxu0 0.0
  %1387 = vmatmul.mubr.f32.gmra.mxu0 %v1320
  %v1388 = vpop.f32.mrf.mxu0
  %v1389 = vadd.f32 0.0, %v1388
  %v1390 = vpop.f32.mrf.mxu0
  %1391 = vdwg.mxu0
  %v1392 = vadd.f32 %v1319, %v1389
  %v1393 = vxor.u32 %v1392, 2147483648
  %v1394 = vmul.f32 %v1393, 1.442695
  %v1395 = vpow.pop %v1394
  %v1396 = vadd.f32 %v1395, 1.0
  %v1397 = vrcp.pop %v1396
  %v1398 = vmul.f32 1.0, %v1397
  %v1399 = vtanh.pop %v1392
  %v1400 = vmul.f32 %v1398, %v1307
  %1402 = vrot.lane.b32.xlu0 %v1399, 64
  %v1403 = vpop.permute.xlu0 %1402
  %v1405 = vmul.f32 %v1398, %v1403
  %1407 = vrot.lane.b32.xlu0 %v1405, 32
  %v1408 = vpop.permute.xlu0 %1407
  %v1410 = vadd.f32 %v1400, %v1408
  %v1411 = vtanh.pop %v1410
  %1413 = vrot.lane.b32.xlu0 %v1411, 64
  %v1414 = vpop.permute.xlu0 %1413
  %v1416 = vmul.f32 %v1398, %v1414
  %1418 = vrot.lane.b32.xlu0 %v1416, 32
  %v1419 = vpop.permute.xlu0 %1418
  %1421 = vst.msk [vmem:[%s426] sm:$0xff] %vm219, %v1419
  %v1422 = vld [vmem:[%s428] sm:$0xff]
  %v1423 = vsel %vm219, %v1419, 0
  %1425 = vmatprep.subr.mxu0 0.0
  %1426 = vmatpush1.msra.mxu0 0.0
  %1427 = vmatprep.subr.mxu0 0.0
  %1428 = vmatpush1.msra.mxu0 0.0
  %1429 = vmatprep.subr.mxu0 0.0
  %1430 = vmatpush1.msra.mxu0 0.0
  %1431 = vmatprep.subr.mxu0 0.0
  %1432 = vmatpush1.msra.mxu0 0.0
  %1433 = vmatprep.subr.mxu0 0.0
  %1434 = vmatpush1.msra.mxu0 0.0
  %1435 = vmatprep.subr.mxu0 0.0
  %1436 = vmatpush1.msra.mxu0 0.0
  %1437 = vmatprep.subr.mxu0 0.0
  %1438 = vmatpush1.msra.mxu0 0.0
  %1439 = vmatprep.subr.mxu0 0.0
  %1440 = vmatpush1.msra.mxu0 0.0
  %1441 = vmatprep.subr.mxu0 0.0
  %1442 = vmatpush1.msra.mxu0 0.0
  %1443 = vmatprep.subr.mxu0 0.0
  %1444 = vmatpush1.msra.mxu0 0.0
  %1445 = vmatprep.subr.mxu0 0.0
  %1446 = vmatpush1.msra.mxu0 0.0
  %1447 = vmatprep.subr.mxu0 0.0
  %1448 = vmatpush1.msra.mxu0 0.0
  %1449 = vmatprep.subr.mxu0 0.0
  %1450 = vmatpush1.msra.mxu0 %v1065
  %1451 = vmatprep.subr.mxu0 0.0
  %1452 = vmatpush1.msra.mxu0 %v1064
  %1453 = vmatprep.subr.mxu0 0.0
  %1454 = vmatpush1.msra.mxu0 %v1063
  %1455 = vmatprep.subr.mxu0 0.0
  %1456 = vmatpush1.msra.mxu0 %v1062
  %1457 = vmatprep.subr.mxu0 0.0
  %1458 = vmatpush2.msra.mxu0 0.0
  %1459 = vmatprep.subr.mxu0 0.0
  %1460 = vmatpush2.msra.mxu0 0.0
  %1461 = vmatprep.subr.mxu0 0.0
  %1462 = vmatpush2.msra.mxu0 0.0
  %1463 = vmatprep.subr.mxu0 0.0
  %1464 = vmatpush2.msra.mxu0 0.0
  %1465 = vmatprep.subr.mxu0 0.0
  %1466 = vmatpush2.msra.mxu0 0.0
  %1467 = vmatprep.subr.mxu0 0.0
  %1468 = vmatpush2.msra.mxu0 0.0
  %1469 = vmatprep.subr.mxu0 0.0
  %1470 = vmatpush2.msra.mxu0 0.0
  %1471 = vmatprep.subr.mxu0 0.0
  %1472 = vmatpush2.msra.mxu0 0.0
  %1473 = vmatprep.subr.mxu0 0.0
  %1474 = vmatpush2.msra.mxu0 0.0
  %1475 = vmatprep.subr.mxu0 0.0
  %1476 = vmatpush2.msra.mxu0 0.0
  %1477 = vmatprep.subr.mxu0 0.0
  %1478 = vmatpush2.msra.mxu0 0.0
  %1479 = vmatprep.subr.mxu0 0.0
  %1480 = vmatpush2.msra.mxu0 0.0
  %1481 = vmatprep.subr.mxu0 0.0
  %1482 = vmatpush2.msra.mxu0 0.0
  %1483 = vmatprep.subr.mxu0 0.0
  %1484 = vmatpush2.msra.mxu0 0.0
  %1485 = vmatprep.subr.mxu0 0.0
  %1486 = vmatpush2.msra.mxu0 0.0
  %1487 = vmatprep.subr.mxu0 0.0
  %1488 = vmatpush2.msra.mxu0 0.0
  %1489 = vmatprep.mubr.f32.mxu0 0.0
  %1490 = vmatmul.mubr.f32.gmra.mxu0 %v1423
  %v1491 = vpop.f32.mrf.mxu0
  %v1492 = vadd.f32 0.0, %v1491
  %v1493 = vpop.f32.mrf.mxu0
  %1494 = vdwg.mxu0
  %v1495 = vadd.f32 %v1422, %v1492
  %v1496 = vxor.u32 %v1495, 2147483648
  %v1497 = vmul.f32 %v1496, 1.442695
  %v1498 = vpow.pop %v1497
  %v1499 = vadd.f32 %v1498, 1.0
  %v1500 = vrcp.pop %v1499
  %v1501 = vmul.f32 1.0, %v1500
  %v1502 = vtanh.pop %v1495
  %v1503 = vmul.f32 %v1501, %v1410
  %1505 = vrot.lane.b32.xlu0 %v1502, 64
  %v1506 = vpop.permute.xlu0 %1505
  %v1508 = vmul.f32 %v1501, %v1506
  %1510 = vrot.lane.b32.xlu0 %v1508, 32
  %v1511 = vpop.permute.xlu0 %1510
  %v1513 = vadd.f32 %v1503, %v1511
  %v1514 = vtanh.pop %v1513
  %1516 = vrot.lane.b32.xlu0 %v1514, 64
  %v1517 = vpop.permute.xlu0 %1516
  %v1519 = vmul.f32 %v1501, %v1517
  %1521 = vrot.lane.b32.xlu0 %v1519, 32
  %v1522 = vpop.permute.xlu0 %1521
  %1524 = vst.msk [vmem:[%s531] sm:$0xff] %vm219, %v1522
  %v1525 = vld [vmem:[%s533] sm:$0xff]
  %v1526 = vsel %vm219, %v1522, 0
  %1528 = vmatprep.subr.mxu0 0.0
  %1529 = vmatpush1.msra.mxu0 0.0
  %1530 = vmatprep.subr.mxu0 0.0
  %1531 = vmatpush1.msra.mxu0 0.0
  %1532 = vmatprep.subr.mxu0 0.0
  %1533 = vmatpush1.msra.mxu0 0.0
  %1534 = vmatprep.subr.mxu0 0.0
  %1535 = vmatpush1.msra.mxu0 0.0
  %1536 = vmatprep.subr.mxu0 0.0
  %1537 = vmatpush1.msra.mxu0 0.0
  %1538 = vmatprep.subr.mxu0 0.0
  %1539 = vmatpush1.msra.mxu0 0.0
  %1540 = vmatprep.subr.mxu0 0.0
  %1541 = vmatpush1.msra.mxu0 0.0
  %1542 = vmatprep.subr.mxu0 0.0
  %1543 = vmatpush1.msra.mxu0 0.0
  %1544 = vmatprep.subr.mxu0 0.0
  %1545 = vmatpush1.msra.mxu0 0.0
  %1546 = vmatprep.subr.mxu0 0.0
  %1547 = vmatpush1.msra.mxu0 0.0
  %1548 = vmatprep.subr.mxu0 0.0
  %1549 = vmatpush1.msra.mxu0 0.0
  %1550 = vmatprep.subr.mxu0 0.0
  %1551 = vmatpush1.msra.mxu0 0.0
  %1552 = vmatprep.subr.mxu0 0.0
  %1553 = vmatpush1.msra.mxu0 %v1065
  %1554 = vmatprep.subr.mxu0 0.0
  %1555 = vmatpush1.msra.mxu0 %v1064
  %1556 = vmatprep.subr.mxu0 0.0
  %1557 = vmatpush1.msra.mxu0 %v1063
  %1558 = vmatprep.subr.mxu0 0.0
  %1559 = vmatpush1.msra.mxu0 %v1062
  %1560 = vmatprep.subr.mxu0 0.0
  %1561 = vmatpush2.msra.mxu0 0.0
  %1562 = vmatprep.subr.mxu0 0.0
  %1563 = vmatpush2.msra.mxu0 0.0
  %1564 = vmatprep.subr.mxu0 0.0
  %1565 = vmatpush2.msra.mxu0 0.0
  %1566 = vmatprep.subr.mxu0 0.0
  %1567 = vmatpush2.msra.mxu0 0.0
  %1568 = vmatprep.subr.mxu0 0.0
  %1569 = vmatpush2.msra.mxu0 0.0
  %1570 = vmatprep.subr.mxu0 0.0
  %1571 = vmatpush2.msra.mxu0 0.0
  %1572 = vmatprep.subr.mxu0 0.0
  %1573 = vmatpush2.msra.mxu0 0.0
  %1574 = vmatprep.subr.mxu0 0.0
  %1575 = vmatpush2.msra.mxu0 0.0
  %1576 = vmatprep.subr.mxu0 0.0
  %1577 = vmatpush2.msra.mxu0 0.0
  %1578 = vmatprep.subr.mxu0 0.0
  %1579 = vmatpush2.msra.mxu0 0.0
  %1580 = vmatprep.subr.mxu0 0.0
  %1581 = vmatpush2.msra.mxu0 0.0
  %1582 = vmatprep.subr.mxu0 0.0
  %1583 = vmatpush2.msra.mxu0 0.0
  %1584 = vmatprep.subr.mxu0 0.0
  %1585 = vmatpush2.msra.mxu0 0.0
  %1586 = vmatprep.subr.mxu0 0.0
  %1587 = vmatpush2.msra.mxu0 0.0
  %1588 = vmatprep.subr.mxu0 0.0
  %1589 = vmatpush2.msra.mxu0 0.0
  %1590 = vmatprep.subr.mxu0 0.0
  %1591 = vmatpush2.msra.mxu0 0.0
  %1592 = vmatprep.mubr.f32.mxu0 0.0
  %1593 = vmatmul.mubr.f32.gmra.mxu0 %v1526
  %v1594 = vpop.f32.mrf.mxu0
  %v1595 = vadd.f32 0.0, %v1594
  %v1596 = vpop.f32.mrf.mxu0
  %1597 = vdwg.mxu0
  %v1598 = vadd.f32 %v1525, %v1595
  %v1599 = vxor.u32 %v1598, 2147483648
  %v1600 = vmul.f32 %v1599, 1.442695
  %v1601 = vpow.pop %v1600
  %v1602 = vadd.f32 %v1601, 1.0
  %v1603 = vrcp.pop %v1602
  %v1604 = vmul.f32 1.0, %v1603
  %v1605 = vtanh.pop %v1598
  %v1606 = vmul.f32 %v1604, %v1513
  %1608 = vrot.lane.b32.xlu0 %v1605, 64
  %v1609 = vpop.permute.xlu0 %1608
  %v1611 = vmul.f32 %v1604, %v1609
  %1613 = vrot.lane.b32.xlu0 %v1611, 32
  %v1614 = vpop.permute.xlu0 %1613
  %v1616 = vadd.f32 %v1606, %v1614
  %v1617 = vtanh.pop %v1616
  %1619 = vrot.lane.b32.xlu0 %v1617, 64
  %v1620 = vpop.permute.xlu0 %1619
  %v1622 = vmul.f32 %v1604, %v1620
  %1624 = vrot.lane.b32.xlu0 %v1622, 32
  %v1625 = vpop.permute.xlu0 %1624
  %1627 = vst.msk [vmem:[%s636] sm:$0xff] %vm219, %v1625
  %v1628 = vld [vmem:[%s638] sm:$0xff]
  %v1629 = vsel %vm219, %v1625, 0
  %1631 = vmatprep.subr.mxu0 0.0
  %1632 = vmatpush1.msra.mxu0 0.0
  %1633 = vmatprep.subr.mxu0 0.0
  %1634 = vmatpush1.msra.mxu0 0.0
  %1635 = vmatprep.subr.mxu0 0.0
  %1636 = vmatpush1.msra.mxu0 0.0
  %1637 = vmatprep.subr.mxu0 0.0
  %1638 = vmatpush1.msra.mxu0 0.0
  %1639 = vmatprep.subr.mxu0 0.0
  %1640 = vmatpush1.msra.mxu0 0.0
  %1641 = vmatprep.subr.mxu0 0.0
  %1642 = vmatpush1.msra.mxu0 0.0
  %1643 = vmatprep.subr.mxu0 0.0
  %1644 = vmatpush1.msra.mxu0 0.0
  %1645 = vmatprep.subr.mxu0 0.0
  %1646 = vmatpush1.msra.mxu0 0.0
  %1647 = vmatprep.subr.mxu0 0.0
  %1648 = vmatpush1.msra.mxu0 0.0
  %1649 = vmatprep.subr.mxu0 0.0
  %1650 = vmatpush1.msra.mxu0 0.0
  %1651 = vmatprep.subr.mxu0 0.0
  %1652 = vmatpush1.msra.mxu0 0.0
  %1653 = vmatprep.subr.mxu0 0.0
  %1654 = vmatpush1.msra.mxu0 0.0
  %1655 = vmatprep.subr.mxu0 0.0
  %1656 = vmatpush1.msra.mxu0 %v1065
  %1657 = vmatprep.subr.mxu0 0.0
  %1658 = vmatpush1.msra.mxu0 %v1064
  %1659 = vmatprep.subr.mxu0 0.0
  %1660 = vmatpush1.msra.mxu0 %v1063
  %1661 = vmatprep.subr.mxu0 0.0
  %1662 = vmatpush1.msra.mxu0 %v1062
  %1663 = vmatprep.subr.mxu0 0.0
  %1664 = vmatpush2.msra.mxu0 0.0
  %1665 = vmatprep.subr.mxu0 0.0
  %1666 = vmatpush2.msra.mxu0 0.0
  %1667 = vmatprep.subr.mxu0 0.0
  %1668 = vmatpush2.msra.mxu0 0.0
  %1669 = vmatprep.subr.mxu0 0.0
  %1670 = vmatpush2.msra.mxu0 0.0
  %1671 = vmatprep.subr.mxu0 0.0
  %1672 = vmatpush2.msra.mxu0 0.0
  %1673 = vmatprep.subr.mxu0 0.0
  %1674 = vmatpush2.msra.mxu0 0.0
  %1675 = vmatprep.subr.mxu0 0.0
  %1676 = vmatpush2.msra.mxu0 0.0
  %1677 = vmatprep.subr.mxu0 0.0
  %1678 = vmatpush2.msra.mxu0 0.0
  %1679 = vmatprep.subr.mxu0 0.0
  %1680 = vmatpush2.msra.mxu0 0.0
  %1681 = vmatprep.subr.mxu0 0.0
  %1682 = vmatpush2.msra.mxu0 0.0
  %1683 = vmatprep.subr.mxu0 0.0
  %1684 = vmatpush2.msra.mxu0 0.0
  %1685 = vmatprep.subr.mxu0 0.0
  %1686 = vmatpush2.msra.mxu0 0.0
  %1687 = vmatprep.subr.mxu0 0.0
  %1688 = vmatpush2.msra.mxu0 0.0
  %1689 = vmatprep.subr.mxu0 0.0
  %1690 = vmatpush2.msra.mxu0 0.0
  %1691 = vmatprep.subr.mxu0 0.0
  %1692 = vmatpush2.msra.mxu0 0.0
  %1693 = vmatprep.subr.mxu0 0.0
  %1694 = vmatpush2.msra.mxu0 0.0
  %1695 = vmatprep.mubr.f32.mxu0 0.0
  %1696 = vmatmul.mubr.f32.gmra.mxu0 %v1629
  %v1697 = vpop.f32.mrf.mxu0
  %v1698 = vadd.f32 0.0, %v1697
  %v1699 = vpop.f32.mrf.mxu0
  %1700 = vdwg.mxu0
  %v1701 = vadd.f32 %v1628, %v1698
  %v1702 = vxor.u32 %v1701, 2147483648
  %v1703 = vmul.f32 %v1702, 1.442695
  %v1704 = vpow.pop %v1703
  %v1705 = vadd.f32 %v1704, 1.0
  %v1706 = vrcp.pop %v1705
  %v1707 = vmul.f32 1.0, %v1706
  %v1708 = vtanh.pop %v1701
  %v1709 = vmul.f32 %v1707, %v1616
  %1711 = vrot.lane.b32.xlu0 %v1708, 64
  %v1712 = vpop.permute.xlu0 %1711
  %v1714 = vmul.f32 %v1707, %v1712
  %1716 = vrot.lane.b32.xlu0 %v1714, 32
  %v1717 = vpop.permute.xlu0 %1716
  %v1719 = vadd.f32 %v1709, %v1717
  %v1720 = vtanh.pop %v1719
  %1722 = vrot.lane.b32.xlu0 %v1720, 64
  %v1723 = vpop.permute.xlu0 %1722
  %v1725 = vmul.f32 %v1707, %v1723
  %1727 = vrot.lane.b32.xlu0 %v1725, 32
  %v1728 = vpop.permute.xlu0 %1727
  %1730 = vst.msk [vmem:[%s741] sm:$0xff] %vm219, %v1728
  %v1731 = vld [vmem:[%s743] sm:$0xff]
  %v1732 = vsel %vm219, %v1728, 0
  %1734 = vmatprep.subr.mxu0 0.0
  %1735 = vmatpush1.msra.mxu0 0.0
  %1736 = vmatprep.subr.mxu0 0.0
  %1737 = vmatpush1.msra.mxu0 0.0
  %1738 = vmatprep.subr.mxu0 0.0
  %1739 = vmatpush1.msra.mxu0 0.0
  %1740 = vmatprep.subr.mxu0 0.0
  %1741 = vmatpush1.msra.mxu0 0.0
  %1742 = vmatprep.subr.mxu0 0.0
  %1743 = vmatpush1.msra.mxu0 0.0
  %1744 = vmatprep.subr.mxu0 0.0
  %1745 = vmatpush1.msra.mxu0 0.0
  %1746 = vmatprep.subr.mxu0 0.0
  %1747 = vmatpush1.msra.mxu0 0.0
  %1748 = vmatprep.subr.mxu0 0.0
  %1749 = vmatpush1.msra.mxu0 0.0
  %1750 = vmatprep.subr.mxu0 0.0
  %1751 = vmatpush1.msra.mxu0 0.0
  %1752 = vmatprep.subr.mxu0 0.0
  %1753 = vmatpush1.msra.mxu0 0.0
  %1754 = vmatprep.subr.mxu0 0.0
  %1755 = vmatpush1.msra.mxu0 0.0
  %1756 = vmatprep.subr.mxu0 0.0
  %1757 = vmatpush1.msra.mxu0 0.0
  %1758 = vmatprep.subr.mxu0 0.0
  %1759 = vmatpush1.msra.mxu0 %v1065
  %1760 = vmatprep.subr.mxu0 0.0
  %1761 = vmatpush1.msra.mxu0 %v1064
  %1762 = vmatprep.subr.mxu0 0.0
  %1763 = vmatpush1.msra.mxu0 %v1063
  %1764 = vmatprep.subr.mxu0 0.0
  %1765 = vmatpush1.msra.mxu0 %v1062
  %1766 = vmatprep.subr.mxu0 0.0
  %1767 = vmatpush2.msra.mxu0 0.0
  %1768 = vmatprep.subr.mxu0 0.0
  %1769 = vmatpush2.msra.mxu0 0.0
  %1770 = vmatprep.subr.mxu0 0.0
  %1771 = vmatpush2.msra.mxu0 0.0
  %1772 = vmatprep.subr.mxu0 0.0
  %1773 = vmatpush2.msra.mxu0 0.0
  %1774 = vmatprep.subr.mxu0 0.0
  %1775 = vmatpush2.msra.mxu0 0.0
  %1776 = vmatprep.subr.mxu0 0.0
  %1777 = vmatpush2.msra.mxu0 0.0
  %1778 = vmatprep.subr.mxu0 0.0
  %1779 = vmatpush2.msra.mxu0 0.0
  %1780 = vmatprep.subr.mxu0 0.0
  %1781 = vmatpush2.msra.mxu0 0.0
  %1782 = vmatprep.subr.mxu0 0.0
  %1783 = vmatpush2.msra.mxu0 0.0
  %1784 = vmatprep.subr.mxu0 0.0
  %1785 = vmatpush2.msra.mxu0 0.0
  %1786 = vmatprep.subr.mxu0 0.0
  %1787 = vmatpush2.msra.mxu0 0.0
  %1788 = vmatprep.subr.mxu0 0.0
  %1789 = vmatpush2.msra.mxu0 0.0
  %1790 = vmatprep.subr.mxu0 0.0
  %1791 = vmatpush2.msra.mxu0 0.0
  %1792 = vmatprep.subr.mxu0 0.0
  %1793 = vmatpush2.msra.mxu0 0.0
  %1794 = vmatprep.subr.mxu0 0.0
  %1795 = vmatpush2.msra.mxu0 0.0
  %1796 = vmatprep.subr.mxu0 0.0
  %1797 = vmatpush2.msra.mxu0 0.0
  %1798 = vmatprep.mubr.f32.mxu0 0.0
  %1799 = vmatmul.mubr.f32.gmra.mxu0 %v1732
  %v1800 = vpop.f32.mrf.mxu0
  %v1801 = vadd.f32 0.0, %v1800
  %v1802 = vpop.f32.mrf.mxu0
  %1803 = vdwg.mxu0
  %v1804 = vadd.f32 %v1731, %v1801
  %v1805 = vxor.u32 %v1804, 2147483648
  %v1806 = vmul.f32 %v1805, 1.442695
  %v1807 = vpow.pop %v1806
  %v1808 = vadd.f32 %v1807, 1.0
  %v1809 = vrcp.pop %v1808
  %v1810 = vmul.f32 1.0, %v1809
  %v1811 = vtanh.pop %v1804
  %v1812 = vmul.f32 %v1810, %v1719
  %1814 = vrot.lane.b32.xlu0 %v1811, 64
  %v1815 = vpop.permute.xlu0 %1814
  %v1817 = vmul.f32 %v1810, %v1815
  %1819 = vrot.lane.b32.xlu0 %v1817, 32
  %v1820 = vpop.permute.xlu0 %1819
  %v1822 = vadd.f32 %v1812, %v1820
  %v1823 = vtanh.pop %v1822
  %1825 = vrot.lane.b32.xlu0 %v1823, 64
  %v1826 = vpop.permute.xlu0 %1825
  %v1828 = vmul.f32 %v1810, %v1826
  %1830 = vrot.lane.b32.xlu0 %v1828, 32
  %v1831 = vpop.permute.xlu0 %1830
  %1833 = vst.msk [vmem:[%s846] sm:$0xff] %vm219, %v1831
  %v1834 = vld [vmem:[%s848] sm:$0xff]
  %v1835 = vsel %vm219, %v1831, 0
  %1837 = vmatprep.subr.mxu0 0.0
  %1838 = vmatpush1.msra.mxu0 0.0
  %1839 = vmatprep.subr.mxu0 0.0
  %1840 = vmatpush1.msra.mxu0 0.0
  %1841 = vmatprep.subr.mxu0 0.0
  %1842 = vmatpush1.msra.mxu0 0.0
  %1843 = vmatprep.subr.mxu0 0.0
  %1844 = vmatpush1.msra.mxu0 0.0
  %1845 = vmatprep.subr.mxu0 0.0
  %1846 = vmatpush1.msra.mxu0 0.0
  %1847 = vmatprep.subr.mxu0 0.0
  %1848 = vmatpush1.msra.mxu0 0.0
  %1849 = vmatprep.subr.mxu0 0.0
  %1850 = vmatpush1.msra.mxu0 0.0
  %1851 = vmatprep.subr.mxu0 0.0
  %1852 = vmatpush1.msra.mxu0 0.0
  %1853 = vmatprep.subr.mxu0 0.0
  %1854 = vmatpush1.msra.mxu0 0.0
  %1855 = vmatprep.subr.mxu0 0.0
  %1856 = vmatpush1.msra.mxu0 0.0
  %1857 = vmatprep.subr.mxu0 0.0
  %1858 = vmatpush1.msra.mxu0 0.0
  %1859 = vmatprep.subr.mxu0 0.0
  %1860 = vmatpush1.msra.mxu0 0.0
  %1861 = vmatprep.subr.mxu0 0.0
  %1862 = vmatpush1.msra.mxu0 %v1065
  %1863 = vmatprep.subr.mxu0 0.0
  %1864 = vmatpush1.msra.mxu0 %v1064
  %1865 = vmatprep.subr.mxu0 0.0
  %1866 = vmatpush1.msra.mxu0 %v1063
  %1867 = vmatprep.subr.mxu0 0.0
  %1868 = vmatpush1.msra.mxu0 %v1062
  %1869 = vmatprep.subr.mxu0 0.0
  %1870 = vmatpush2.msra.mxu0 0.0
  %1871 = vmatprep.subr.mxu0 0.0
  %1872 = vmatpush2.msra.mxu0 0.0
  %1873 = vmatprep.subr.mxu0 0.0
  %1874 = vmatpush2.msra.mxu0 0.0
  %1875 = vmatprep.subr.mxu0 0.0
  %1876 = vmatpush2.msra.mxu0 0.0
  %1877 = vmatprep.subr.mxu0 0.0
  %1878 = vmatpush2.msra.mxu0 0.0
  %1879 = vmatprep.subr.mxu0 0.0
  %1880 = vmatpush2.msra.mxu0 0.0
  %1881 = vmatprep.subr.mxu0 0.0
  %1882 = vmatpush2.msra.mxu0 0.0
  %1883 = vmatprep.subr.mxu0 0.0
  %1884 = vmatpush2.msra.mxu0 0.0
  %1885 = vmatprep.subr.mxu0 0.0
  %1886 = vmatpush2.msra.mxu0 0.0
  %1887 = vmatprep.subr.mxu0 0.0
  %1888 = vmatpush2.msra.mxu0 0.0
  %1889 = vmatprep.subr.mxu0 0.0
  %1890 = vmatpush2.msra.mxu0 0.0
  %1891 = vmatprep.subr.mxu0 0.0
  %1892 = vmatpush2.msra.mxu0 0.0
  %1893 = vmatprep.subr.mxu0 0.0
  %1894 = vmatpush2.msra.mxu0 0.0
  %1895 = vmatprep.subr.mxu0 0.0
  %1896 = vmatpush2.msra.mxu0 0.0
  %1897 = vmatprep.subr.mxu0 0.0
  %1898 = vmatpush2.msra.mxu0 0.0
  %1899 = vmatprep.subr.mxu0 0.0
  %1900 = vmatpush2.msra.mxu0 0.0
  %1901 = vmatprep.mubr.f32.mxu0 0.0
  %1902 = vmatmul.mubr.f32.gmra.mxu0 %v1835
  %v1903 = vpop.f32.mrf.mxu0
  %v1904 = vadd.f32 0.0, %v1903
  %v1905 = vpop.f32.mrf.mxu0
  %1906 = vdwg.mxu0
  %v1907 = vadd.f32 %v1834, %v1904
  %v1908 = vxor.u32 %v1907, 2147483648
  %v1909 = vmul.f32 %v1908, 1.442695
  %v1910 = vpow.pop %v1909
  %v1911 = vadd.f32 %v1910, 1.0
  %v1912 = vrcp.pop %v1911
  %v1913 = vmul.f32 1.0, %v1912
  %v1914 = vtanh.pop %v1907
  %v1915 = vmul.f32 %v1913, %v1822
  %1917 = vrot.lane.b32.xlu0 %v1914, 64
  %v1918 = vpop.permute.xlu0 %1917
  %v1920 = vmul.f32 %v1913, %v1918
  %1922 = vrot.lane.b32.xlu0 %v1920, 32
  %v1923 = vpop.permute.xlu0 %1922
  %v1925 = vadd.f32 %v1915, %v1923
  %v1926 = vtanh.pop %v1925
  %1928 = vrot.lane.b32.xlu0 %v1926, 64
  %v1929 = vpop.permute.xlu0 %1928
  %v1931 = vmul.f32 %v1913, %v1929
  %1933 = vrot.lane.b32.xlu0 %v1931, 32
  %v1934 = vpop.permute.xlu0 %1933
  %1936 = vst.msk [vmem:[%s951] sm:$0xff] %vm219, %v1934
  %v1937 = vld [vmem:[%s953] sm:$0xff]
  %v1938 = vsel %vm219, %v1934, 0
  %1940 = vmatprep.subr.mxu0 0.0
  %1941 = vmatpush1.msra.mxu0 0.0
  %1942 = vmatprep.subr.mxu0 0.0
  %1943 = vmatpush1.msra.mxu0 0.0
  %1944 = vmatprep.subr.mxu0 0.0
  %1945 = vmatpush1.msra.mxu0 0.0
  %1946 = vmatprep.subr.mxu0 0.0
  %1947 = vmatpush1.msra.mxu0 0.0
  %1948 = vmatprep.subr.mxu0 0.0
  %1949 = vmatpush1.msra.mxu0 0.0
  %1950 = vmatprep.subr.mxu0 0.0
  %1951 = vmatpush1.msra.mxu0 0.0
  %1952 = vmatprep.subr.mxu0 0.0
  %1953 = vmatpush1.msra.mxu0 0.0
  %1954 = vmatprep.subr.mxu0 0.0
  %1955 = vmatpush1.msra.mxu0 0.0
  %1956 = vmatprep.subr.mxu0 0.0
  %1957 = vmatpush1.msra.mxu0 0.0
  %1958 = vmatprep.subr.mxu0 0.0
  %1959 = vmatpush1.msra.mxu0 0.0
  %1960 = vmatprep.subr.mxu0 0.0
  %1961 = vmatpush1.msra.mxu0 0.0
  %1962 = vmatprep.subr.mxu0 0.0
  %1963 = vmatpush1.msra.mxu0 0.0
  %1964 = vmatprep.subr.mxu0 0.0
  %1965 = vmatpush1.msra.mxu0 %v1065
  %1966 = vmatprep.subr.mxu0 0.0
  %1967 = vmatpush1.msra.mxu0 %v1064
  %1968 = vmatprep.subr.mxu0 0.0
  %1969 = vmatpush1.msra.mxu0 %v1063
  %1970 = vmatprep.subr.mxu0 0.0
  %1971 = vmatpush1.msra.mxu0 %v1062
  %1972 = vmatprep.subr.mxu0 0.0
  %1973 = vmatpush2.msra.mxu0 0.0
  %1974 = vmatprep.subr.mxu0 0.0
  %1975 = vmatpush2.msra.mxu0 0.0
  %1976 = vmatprep.subr.mxu0 0.0
  %1977 = vmatpush2.msra.mxu0 0.0
  %1978 = vmatprep.subr.mxu0 0.0
  %1979 = vmatpush2.msra.mxu0 0.0
  %1980 = vmatprep.subr.mxu0 0.0
  %1981 = vmatpush2.msra.mxu0 0.0
  %1982 = vmatprep.subr.mxu0 0.0
  %1983 = vmatpush2.msra.mxu0 0.0
  %1984 = vmatprep.subr.mxu0 0.0
  %1985 = vmatpush2.msra.mxu0 0.0
  %1986 = vmatprep.subr.mxu0 0.0
  %1987 = vmatpush2.msra.mxu0 0.0
  %1988 = vmatprep.subr.mxu0 0.0
  %1989 = vmatpush2.msra.mxu0 0.0
  %1990 = vmatprep.subr.mxu0 0.0
  %1991 = vmatpush2.msra.mxu0 0.0
  %1992 = vmatprep.subr.mxu0 0.0
  %1993 = vmatpush2.msra.mxu0 0.0
  %1994 = vmatprep.subr.mxu0 0.0
  %1995 = vmatpush2.msra.mxu0 0.0
  %1996 = vmatprep.subr.mxu0 0.0
  %1997 = vmatpush2.msra.mxu0 0.0
  %1998 = vmatprep.subr.mxu0 0.0
  %1999 = vmatpush2.msra.mxu0 0.0
  %2000 = vmatprep.subr.mxu0 0.0
  %2001 = vmatpush2.msra.mxu0 0.0
  %2002 = vmatprep.subr.mxu0 0.0
  %2003 = vmatpush2.msra.mxu0 0.0
  %2004 = vmatprep.mubr.f32.mxu0 0.0
  %2005 = vmatmul.mubr.f32.gmra.mxu0 %v1938
  %v2006 = vpop.f32.mrf.mxu0
  %v2007 = vadd.f32 0.0, %v2006
  %v2008 = vpop.f32.mrf.mxu0
  %2009 = vdwg.mxu0
  %v2010 = vadd.f32 %v1937, %v2007
  %v2011 = vxor.u32 %v2010, 2147483648
  %v2012 = vmul.f32 %v2011, 1.442695
  %v2013 = vpow.pop %v2012
  %v2014 = vadd.f32 %v2013, 1.0
  %v2015 = vrcp.pop %v2014
  %v2016 = vmul.f32 1.0, %v2015
  %v2017 = vtanh.pop %v2010
  %v2018 = vmul.f32 %v2016, %v1925
  %2020 = vrot.lane.b32.xlu0 %v2017, 64
  %v2021 = vpop.permute.xlu0 %2020
  %v2023 = vmul.f32 %v2016, %v2021
  %2025 = vrot.lane.b32.xlu0 %v2023, 32
  %v2026 = vpop.permute.xlu0 %2025
  %v2028 = vadd.f32 %v2018, %v2026
  %v2029 = vtanh.pop %v2028
  %2031 = vrot.lane.b32.xlu0 %v2029, 64
  %v2032 = vpop.permute.xlu0 %2031
  %v2034 = vmul.f32 %v2016, %v2032
  %2036 = vrot.lane.b32.xlu0 %v2034, 32
  %v2037 = vpop.permute.xlu0 %2036
  %2039 = vst.msk [vmem:[%s1056] sm:$0xff] %vm219, %v2037
  %v2040 = vld [vmem:[#allocation2] sm:$0xff]
  %v2041 = vld [vmem:[#allocation2 + $0x8] sm:$0xff]
  %v2042 = vld [vmem:[#allocation2 + $0x10] sm:$0xff]
  %v2043 = vld [vmem:[#allocation2 + $0x18] sm:$0xff]
  %v2044 = vld [vmem:[#allocation2 + $0x20] sm:$0xff]
  %v2045 = vld [vmem:[#allocation2 + $0x28] sm:$0xff]
  %v2046 = vld [vmem:[#allocation2 + $0x30] sm:$0xff]
  %v2047 = vld [vmem:[#allocation2 + $0x38] sm:$0xff]
  %v2048 = vld [vmem:[%s7] sm:$0xff]
  %v2049 = vld [vmem:[%s7 + $0x8] sm:$0xff]
  %v2050 = vld [vmem:[%s7 + $0x10] sm:$0xff]
  %v2051 = vld [vmem:[%s7 + $0x18] sm:$0xff]
  %v2052 = vld [vmem:[%s8] sm:$0x1]
  %v2054 = vlaneseq
  %v2055 = vshrl.u32 %v2054, 7
  %v2056 = vsub.s32 0, %v2055
  %v2057 = vrot.slane %v2052, %v2056
  %v2060 = vsel %vm219, %v2040, 0
  %v2063 = vsel %vm219, %v2041, 0
  %v2066 = vsel %vm219, %v2042, 0
  %v2069 = vsel %vm219, %v2043, 0
  %v2072 = vsel %vm219, %v2044, 0
  %v2075 = vsel %vm219, %v2045, 0
  %v2078 = vsel %vm219, %v2046, 0
  %v2081 = vsel %vm219, %v2047, 0
  %2083 = vmatprep.subr.mxu0 0.0
  %2084 = vmatpush1.msra.mxu0 0.0
  %2085 = vmatprep.subr.mxu0 0.0
  %2086 = vmatpush1.msra.mxu0 0.0
  %2087 = vmatprep.subr.mxu0 0.0
  %2088 = vmatpush1.msra.mxu0 0.0
  %2089 = vmatprep.subr.mxu0 0.0
  %2090 = vmatpush1.msra.mxu0 0.0
  %2091 = vmatprep.subr.mxu0 0.0
  %2092 = vmatpush1.msra.mxu0 0.0
  %2093 = vmatprep.subr.mxu0 0.0
  %2094 = vmatpush1.msra.mxu0 0.0
  %2095 = vmatprep.subr.mxu0 0.0
  %2096 = vmatpush1.msra.mxu0 0.0
  %2097 = vmatprep.subr.mxu0 0.0
  %2098 = vmatpush1.msra.mxu0 0.0
  %2099 = vmatprep.subr.mxu0 0.0
  %2100 = vmatpush1.msra.mxu0 0.0
  %2101 = vmatprep.subr.mxu0 0.0
  %2102 = vmatpush1.msra.mxu0 0.0
  %2103 = vmatprep.subr.mxu0 0.0
  %2104 = vmatpush1.msra.mxu0 0.0
  %2105 = vmatprep.subr.mxu0 0.0
  %2106 = vmatpush1.msra.mxu0 0.0
  %2107 = vmatprep.subr.mxu0 0.0
  %2108 = vmatpush1.msra.mxu0 %v2051
  %2109 = vmatprep.subr.mxu0 0.0
  %2110 = vmatpush1.msra.mxu0 %v2050
  %2111 = vmatprep.subr.mxu0 0.0
  %2112 = vmatpush1.msra.mxu0 %v2049
  %2113 = vmatprep.subr.mxu0 0.0
  %2114 = vmatpush1.msra.mxu0 %v2048
  %2115 = vmatprep.subr.mxu0 0.0
  %2116 = vmatpush2.msra.mxu0 0.0
  %2117 = vmatprep.subr.mxu0 0.0
  %2118 = vmatpush2.msra.mxu0 0.0
  %2119 = vmatprep.subr.mxu0 0.0
  %2120 = vmatpush2.msra.mxu0 0.0
  %2121 = vmatprep.subr.mxu0 0.0
  %2122 = vmatpush2.msra.mxu0 0.0
  %2123 = vmatprep.subr.mxu0 0.0
  %2124 = vmatpush2.msra.mxu0 0.0
  %2125 = vmatprep.subr.mxu0 0.0
  %2126 = vmatpush2.msra.mxu0 0.0
  %2127 = vmatprep.subr.mxu0 0.0
  %2128 = vmatpush2.msra.mxu0 0.0
  %2129 = vmatprep.subr.mxu0 0.0
  %2130 = vmatpush2.msra.mxu0 0.0
  %2131 = vmatprep.subr.mxu0 0.0
  %2132 = vmatpush2.msra.mxu0 0.0
  %2133 = vmatprep.subr.mxu0 0.0
  %2134 = vmatpush2.msra.mxu0 0.0
  %2135 = vmatprep.subr.mxu0 0.0
  %2136 = vmatpush2.msra.mxu0 0.0
  %2137 = vmatprep.subr.mxu0 0.0
  %2138 = vmatpush2.msra.mxu0 0.0
  %2139 = vmatprep.subr.mxu0 0.0
  %2140 = vmatpush2.msra.mxu0 0.0
  %2141 = vmatprep.subr.mxu0 0.0
  %2142 = vmatpush2.msra.mxu0 0.0
  %2143 = vmatprep.subr.mxu0 0.0
  %2144 = vmatpush2.msra.mxu0 0.0
  %2145 = vmatprep.subr.mxu0 0.0
  %2146 = vmatpush2.msra.mxu0 0.0
  %2147 = vmatprep.mubr.f32.mxu0 0.0
  %2148 = vmatmul.mubr.f32.gmra.mxu0 %v2060
  %v2149 = vpop.f32.mrf.mxu0
  %v2150 = vadd.f32 %v2057, %v2149
  %v2151 = vpop.f32.mrf.mxu0
  %2152 = vmatprep.mubr.f32.mxu0 0.0
  %2153 = vmatmul.mubr.f32.gmra.mxu0 %v2063
  %v2154 = vpop.f32.mrf.mxu0
  %v2155 = vadd.f32 %v2057, %v2154
  %v2156 = vpop.f32.mrf.mxu0
  %2157 = vmatprep.mubr.f32.mxu0 0.0
  %2158 = vmatmul.mubr.f32.gmra.mxu0 %v2066
  %v2159 = vpop.f32.mrf.mxu0
  %v2160 = vadd.f32 %v2057, %v2159
  %v2161 = vpop.f32.mrf.mxu0
  %2162 = vmatprep.mubr.f32.mxu0 0.0
  %2163 = vmatmul.mubr.f32.gmra.mxu0 %v2069
  %v2164 = vpop.f32.mrf.mxu0
  %v2165 = vadd.f32 %v2057, %v2164
  %v2166 = vpop.f32.mrf.mxu0
  %2167 = vmatprep.mubr.f32.mxu0 0.0
  %2168 = vmatmul.mubr.f32.gmra.mxu0 %v2072
  %v2169 = vpop.f32.mrf.mxu0
  %v2170 = vadd.f32 %v2057, %v2169
  %v2171 = vpop.f32.mrf.mxu0
  %2172 = vmatprep.mubr.f32.mxu0 0.0
  %2173 = vmatmul.mubr.f32.gmra.mxu0 %v2075
  %v2174 = vpop.f32.mrf.mxu0
  %v2175 = vadd.f32 %v2057, %v2174
  %v2176 = vpop.f32.mrf.mxu0
  %2177 = vmatprep.mubr.f32.mxu0 0.0
  %2178 = vmatmul.mubr.f32.gmra.mxu0 %v2078
  %v2179 = vpop.f32.mrf.mxu0
  %v2180 = vadd.f32 %v2057, %v2179
  %v2181 = vpop.f32.mrf.mxu0
  %2182 = vmatprep.mubr.f32.mxu0 0.0
  %2183 = vmatmul.mubr.f32.gmra.mxu0 %v2081
  %v2184 = vpop.f32.mrf.mxu0
  %v2185 = vadd.f32 %v2057, %v2184
  %v2186 = vpop.f32.mrf.mxu0
  %2187 = vdwg.mxu0
  %v2188 = vtanh.pop %v2150
  %v2189 = vtanh.pop %v2155
  %v2190 = vtanh.pop %v2160
  %v2191 = vtanh.pop %v2165
  %v2192 = vtanh.pop %v2170
  %v2193 = vtanh.pop %v2175
  %v2194 = vtanh.pop %v2180
  %v2195 = vtanh.pop %v2185
  %v2196 = vld [vmem:[%s9] sm:$0xff]
  %v2197 = vld [vmem:[%s9 + $0x8] sm:$0xff]
  %v2198 = vld [vmem:[%s9 + $0x10] sm:$0xff]
  %v2199 = vld [vmem:[%s9 + $0x18] sm:$0xff]
  %v2200 = vld [vmem:[#allocation4] sm:$0x1]
  %v2202 = vlaneseq
  %v2203 = vshrl.u32 %v2202, 7
  %v2204 = vsub.s32 0, %v2203
  %v2205 = vrot.slane %v2200, %v2204
  %v2208 = vsel %vm219, %v2188, 0
  %v2211 = vsel %vm219, %v2189, 0
  %v2214 = vsel %vm219, %v2190, 0
  %v2217 = vsel %vm219, %v2191, 0
  %v2220 = vsel %vm219, %v2192, 0
  %v2223 = vsel %vm219, %v2193, 0
  %v2226 = vsel %vm219, %v2194, 0
  %v2229 = vsel %vm219, %v2195, 0
  %2231 = vmatprep.subr.mxu0 0.0
  %2232 = vmatpush1.msra.mxu0 0.0
  %2233 = vmatprep.subr.mxu0 0.0
  %2234 = vmatpush1.msra.mxu0 0.0
  %2235 = vmatprep.subr.mxu0 0.0
  %2236 = vmatpush1.msra.mxu0 0.0
  %2237 = vmatprep.subr.mxu0 0.0
  %2238 = vmatpush1.msra.mxu0 0.0
  %2239 = vmatprep.subr.mxu0 0.0
  %2240 = vmatpush1.msra.mxu0 0.0
  %2241 = vmatprep.subr.mxu0 0.0
  %2242 = vmatpush1.msra.mxu0 0.0
  %2243 = vmatprep.subr.mxu0 0.0
  %2244 = vmatpush1.msra.mxu0 0.0
  %2245 = vmatprep.subr.mxu0 0.0
  %2246 = vmatpush1.msra.mxu0 0.0
  %2247 = vmatprep.subr.mxu0 0.0
  %2248 = vmatpush1.msra.mxu0 0.0
  %2249 = vmatprep.subr.mxu0 0.0
  %2250 = vmatpush1.msra.mxu0 0.0
  %2251 = vmatprep.subr.mxu0 0.0
  %2252 = vmatpush1.msra.mxu0 0.0
  %2253 = vmatprep.subr.mxu0 0.0
  %2254 = vmatpush1.msra.mxu0 0.0
  %2255 = vmatprep.subr.mxu0 0.0
  %2256 = vmatpush1.msra.mxu0 %v2199
  %2257 = vmatprep.subr.mxu0 0.0
  %2258 = vmatpush1.msra.mxu0 %v2198
  %2259 = vmatprep.subr.mxu0 0.0
  %2260 = vmatpush1.msra.mxu0 %v2197
  %2261 = vmatprep.subr.mxu0 0.0
  %2262 = vmatpush1.msra.mxu0 %v2196
  %2263 = vmatprep.subr.mxu0 0.0
  %2264 = vmatpush2.msra.mxu0 0.0
  %2265 = vmatprep.subr.mxu0 0.0
  %2266 = vmatpush2.msra.mxu0 0.0
  %2267 = vmatprep.subr.mxu0 0.0
  %2268 = vmatpush2.msra.mxu0 0.0
  %2269 = vmatprep.subr.mxu0 0.0
  %2270 = vmatpush2.msra.mxu0 0.0
  %2271 = vmatprep.subr.mxu0 0.0
  %2272 = vmatpush2.msra.mxu0 0.0
  %2273 = vmatprep.subr.mxu0 0.0
  %2274 = vmatpush2.msra.mxu0 0.0
  %2275 = vmatprep.subr.mxu0 0.0
  %2276 = vmatpush2.msra.mxu0 0.0
  %2277 = vmatprep.subr.mxu0 0.0
  %2278 = vmatpush2.msra.mxu0 0.0
  %2279 = vmatprep.subr.mxu0 0.0
  %2280 = vmatpush2.msra.mxu0 0.0
  %2281 = vmatprep.subr.mxu0 0.0
  %2282 = vmatpush2.msra.mxu0 0.0
  %2283 = vmatprep.subr.mxu0 0.0
  %2284 = vmatpush2.msra.mxu0 0.0
  %2285 = vmatprep.subr.mxu0 0.0
  %2286 = vmatpush2.msra.mxu0 0.0
  %2287 = vmatprep.subr.mxu0 0.0
  %2288 = vmatpush2.msra.mxu0 0.0
  %2289 = vmatprep.subr.mxu0 0.0
  %2290 = vmatpush2.msra.mxu0 0.0
  %2291 = vmatprep.subr.mxu0 0.0
  %2292 = vmatpush2.msra.mxu0 0.0
  %2293 = vmatprep.subr.mxu0 0.0
  %2294 = vmatpush2.msra.mxu0 0.0
  %2295 = vmatprep.mubr.f32.mxu0 0.0
  %2296 = vmatmul.mubr.f32.gmra.mxu0 %v2208
  %v2297 = vpop.f32.mrf.mxu0
  %v2298 = vadd.f32 %v2205, %v2297
  %v2299 = vpop.f32.mrf.mxu0
  %2300 = vmatprep.mubr.f32.mxu0 0.0
  %2301 = vmatmul.mubr.f32.gmra.mxu0 %v2211
  %v2302 = vpop.f32.mrf.mxu0
  %v2303 = vadd.f32 %v2205, %v2302
  %v2304 = vpop.f32.mrf.mxu0
  %2305 = vmatprep.mubr.f32.mxu0 0.0
  %2306 = vmatmul.mubr.f32.gmra.mxu0 %v2214
  %v2307 = vpop.f32.mrf.mxu0
  %v2308 = vadd.f32 %v2205, %v2307
  %v2309 = vpop.f32.mrf.mxu0
  %2310 = vmatprep.mubr.f32.mxu0 0.0
  %2311 = vmatmul.mubr.f32.gmra.mxu0 %v2217
  %v2312 = vpop.f32.mrf.mxu0
  %v2313 = vadd.f32 %v2205, %v2312
  %v2314 = vpop.f32.mrf.mxu0
  %2315 = vmatprep.mubr.f32.mxu0 0.0
  %2316 = vmatmul.mubr.f32.gmra.mxu0 %v2220
  %v2317 = vpop.f32.mrf.mxu0
  %v2318 = vadd.f32 %v2205, %v2317
  %v2319 = vpop.f32.mrf.mxu0
  %2320 = vmatprep.mubr.f32.mxu0 0.0
  %2321 = vmatmul.mubr.f32.gmra.mxu0 %v2223
  %v2322 = vpop.f32.mrf.mxu0
  %v2323 = vadd.f32 %v2205, %v2322
  %v2324 = vpop.f32.mrf.mxu0
  %2325 = vmatprep.mubr.f32.mxu0 0.0
  %2326 = vmatmul.mubr.f32.gmra.mxu0 %v2226
  %v2327 = vpop.f32.mrf.mxu0
  %v2328 = vadd.f32 %v2205, %v2327
  %v2329 = vpop.f32.mrf.mxu0
  %2330 = vmatprep.mubr.f32.mxu0 0.0
  %2331 = vmatmul.mubr.f32.gmra.mxu0 %v2229
  %v2332 = vpop.f32.mrf.mxu0
  %v2333 = vadd.f32 %v2205, %v2332
  %v2334 = vpop.f32.mrf.mxu0
  %2335 = vdwg.mxu0
  %vm2336 = vcmask 7168
  %v2337 = vsel %vm2336, %v2298, -inf
  %v2338 = vsel %vm2336, %v2303, -inf
  %v2339 = vsel %vm2336, %v2308, -inf
  %v2340 = vsel %vm2336, %v2313, -inf
  %v2341 = vsel %vm2336, %v2318, -inf
  %v2342 = vmax.f32 %v2337, %v2341
  %v2343 = vsel %vm2336, %v2323, -inf
  %v2344 = vmax.f32 %v2338, %v2343
  %v2345 = vsel %vm2336, %v2328, -inf
  %v2346 = vmax.f32 %v2339, %v2345
  %v2347 = vsel %vm2336, %v2333, -inf
  %v2348 = vmax.f32 %v2340, %v2347
  %v2349 = vmax.f32 %v2342, %v2344
  %v2350 = vmax.f32 %v2346, %v2348
  %v2351 = vmax.f32 %v2349, %v2350
  %v2352 = vsub.f32 %v2298, %v2351
  %v2353 = vsub.f32 %v2303, %v2351
  %v2354 = vsub.f32 %v2308, %v2351
  %v2355 = vsub.f32 %v2313, %v2351
  %v2356 = vsub.f32 %v2318, %v2351
  %v2357 = vsub.f32 %v2323, %v2351
  %v2358 = vsub.f32 %v2328, %v2351
  %v2359 = vsub.f32 %v2333, %v2351
  %v2360 = vmul.f32 %v2352, 1.442695
  %v2361 = vpow.pop %v2360
  %v2362 = vmul.f32 %v2353, 1.442695
  %v2363 = vpow.pop %v2362
  %v2364 = vmul.f32 %v2354, 1.442695
  %v2365 = vpow.pop %v2364
  %v2366 = vmul.f32 %v2355, 1.442695
  %v2367 = vpow.pop %v2366
  %v2368 = vmul.f32 %v2356, 1.442695
  %v2369 = vpow.pop %v2368
  %v2370 = vmul.f32 %v2357, 1.442695
  %v2371 = vpow.pop %v2370
  %v2372 = vmul.f32 %v2358, 1.442695
  %v2373 = vpow.pop %v2372
  %v2374 = vmul.f32 %v2359, 1.442695
  %v2375 = vpow.pop %v2374
  %v2376 = vsel %vm2336, %v2361, 0.0
  %v2377 = vsel %vm2336, %v2363, 0.0
  %v2378 = vadd.f32 %v2376, %v2377
  %v2379 = vsel %vm2336, %v2365, 0.0
  %v2380 = vadd.f32 %v2378, %v2379
  %v2381 = vsel %vm2336, %v2367, 0.0
  %v2382 = vadd.f32 %v2380, %v2381
  %v2383 = vsel %vm2336, %v2369, 0.0
  %v2384 = vadd.f32 %v2382, %v2383
  %v2385 = vsel %vm2336, %v2371, 0.0
  %v2386 = vadd.f32 %v2384, %v2385
  %v2387 = vsel %vm2336, %v2373, 0.0
  %v2388 = vadd.f32 %v2386, %v2387
  %v2389 = vsel %vm2336, %v2375, 0.0
  %v2390 = vadd.f32 %v2388, %v2389
  %v2391 = vrcp.pop %v2390
  %v2392 = vmul.f32 %v2361, %v2391
  %v2393 = vmul.f32 %v2363, %v2391
  %v2394 = vmul.f32 %v2365, %v2391
  %v2395 = vmul.f32 %v2367, %v2391
  %v2396 = vmul.f32 %v2369, %v2391
  %v2397 = vmul.f32 %v2371, %v2391
  %v2398 = vmul.f32 %v2373, %v2391
  %v2399 = vmul.f32 %v2375, %v2391
  %2401 = vset.pattern.permute.xlu0 0
  %2402 = vperm.xlu0 %2401, %v2392
  %v2403 = vpop.permute.xlu0 %2402
  %2406 = vset.pattern.permute.xlu0 0
  %2407 = vperm.xlu0 %2406, %v2393
  %v2408 = vpop.permute.xlu0 %2407
  %2411 = vset.pattern.permute.xlu0 0
  %2412 = vperm.xlu0 %2411, %v2394
  %v2413 = vpop.permute.xlu0 %2412
  %2416 = vset.pattern.permute.xlu0 0
  %2417 = vperm.xlu0 %2416, %v2395
  %v2418 = vpop.permute.xlu0 %2417
  %2421 = vset.pattern.permute.xlu0 0
  %2422 = vperm.xlu0 %2421, %v2396
  %v2423 = vpop.permute.xlu0 %2422
  %2426 = vset.pattern.permute.xlu0 0
  %2427 = vperm.xlu0 %2426, %v2397
  %v2428 = vpop.permute.xlu0 %2427
  %2431 = vset.pattern.permute.xlu0 0
  %2432 = vperm.xlu0 %2431, %v2398
  %v2433 = vpop.permute.xlu0 %2432
  %2436 = vset.pattern.permute.xlu0 0
  %2437 = vperm.xlu0 %2436, %v2399
  %v2438 = vpop.permute.xlu0 %2437
  %v2440 = vmul.f32 %v2403, %v2040
  %v2441 = vmul.f32 %v2408, %v2041
  %v2442 = vmul.f32 %v2413, %v2042
  %v2443 = vmul.f32 %v2418, %v2043
  %v2444 = vmul.f32 %v2423, %v2044
  %v2445 = vmul.f32 %v2428, %v2045
  %v2446 = vmul.f32 %v2433, %v2046
  %v2447 = vmul.f32 %v2438, %v2047
  %v2448 = vsel %vm219, %v2440, 0.0
  %v2449 = vsel %vm219, %v2441, 0.0
  %v2450 = vadd.f32 %v2448, %v2449
  %v2451 = vsel %vm219, %v2442, 0.0
  %v2452 = vadd.f32 %v2450, %v2451
  %v2453 = vsel %vm219, %v2443, 0.0
  %v2454 = vadd.f32 %v2452, %v2453
  %v2455 = vsel %vm219, %v2444, 0.0
  %v2456 = vadd.f32 %v2454, %v2455
  %v2457 = vsel %vm219, %v2445, 0.0
  %v2458 = vadd.f32 %v2456, %v2457
  %v2459 = vsel %vm219, %v2446, 0.0
  %v2460 = vadd.f32 %v2458, %v2459
  %v2461 = vsel %vm219, %v2447, 0.0
  %v2462 = vadd.f32 %v2460, %v2461
  %v2463 = vld [vmem:[%s11] sm:$0xff]
  %v2464 = vld [vmem:[%s11 + $0x8] sm:$0xff]
  %v2465 = vld [vmem:[%s11 + $0x10] sm:$0xff]
  %v2466 = vld [vmem:[%s11 + $0x18] sm:$0xff]
  %v2467 = vld [vmem:[%s12] sm:$0x1]
  %v2469 = vlaneseq
  %v2470 = vshrl.u32 %v2469, 7
  %v2471 = vsub.s32 0, %v2470
  %v2472 = vrot.slane %v2467, %v2471
  %v2475 = vsel %vm219, %v2462, 0
  %2477 = vmatprep.subr.mxu0 0.0
  %2478 = vmatpush1.msra.mxu0 0.0
  %2479 = vmatprep.subr.mxu0 0.0
  %2480 = vmatpush1.msra.mxu0 0.0
  %2481 = vmatprep.subr.mxu0 0.0
  %2482 = vmatpush1.msra.mxu0 0.0
  %2483 = vmatprep.subr.mxu0 0.0
  %2484 = vmatpush1.msra.mxu0 0.0
  %2485 = vmatprep.subr.mxu0 0.0
  %2486 = vmatpush1.msra.mxu0 0.0
  %2487 = vmatprep.subr.mxu0 0.0
  %2488 = vmatpush1.msra.mxu0 0.0
  %2489 = vmatprep.subr.mxu0 0.0
  %2490 = vmatpush1.msra.mxu0 0.0
  %2491 = vmatprep.subr.mxu0 0.0
  %2492 = vmatpush1.msra.mxu0 0.0
  %2493 = vmatprep.subr.mxu0 0.0
  %2494 = vmatpush1.msra.mxu0 0.0
  %2495 = vmatprep.subr.mxu0 0.0
  %2496 = vmatpush1.msra.mxu0 0.0
  %2497 = vmatprep.subr.mxu0 0.0
  %2498 = vmatpush1.msra.mxu0 0.0
  %2499 = vmatprep.subr.mxu0 0.0
  %2500 = vmatpush1.msra.mxu0 0.0
  %2501 = vmatprep.subr.mxu0 0.0
  %2502 = vmatpush1.msra.mxu0 %v2466
  %2503 = vmatprep.subr.mxu0 0.0
  %2504 = vmatpush1.msra.mxu0 %v2465
  %2505 = vmatprep.subr.mxu0 0.0
  %2506 = vmatpush1.msra.mxu0 %v2464
  %2507 = vmatprep.subr.mxu0 0.0
  %2508 = vmatpush1.msra.mxu0 %v2463
  %2509 = vmatprep.subr.mxu0 0.0
  %2510 = vmatpush2.msra.mxu0 0.0
  %2511 = vmatprep.subr.mxu0 0.0
  %2512 = vmatpush2.msra.mxu0 0.0
  %2513 = vmatprep.subr.mxu0 0.0
  %2514 = vmatpush2.msra.mxu0 0.0
  %2515 = vmatprep.subr.mxu0 0.0
  %2516 = vmatpush2.msra.mxu0 0.0
  %2517 = vmatprep.subr.mxu0 0.0
  %2518 = vmatpush2.msra.mxu0 0.0
  %2519 = vmatprep.subr.mxu0 0.0
  %2520 = vmatpush2.msra.mxu0 0.0
  %2521 = vmatprep.subr.mxu0 0.0
  %2522 = vmatpush2.msra.mxu0 0.0
  %2523 = vmatprep.subr.mxu0 0.0
  %2524 = vmatpush2.msra.mxu0 0.0
  %2525 = vmatprep.subr.mxu0 0.0
  %2526 = vmatpush2.msra.mxu0 0.0
  %2527 = vmatprep.subr.mxu0 0.0
  %2528 = vmatpush2.msra.mxu0 0.0
  %2529 = vmatprep.subr.mxu0 0.0
  %2530 = vmatpush2.msra.mxu0 0.0
  %2531 = vmatprep.subr.mxu0 0.0
  %2532 = vmatpush2.msra.mxu0 0.0
  %2533 = vmatprep.subr.mxu0 0.0
  %2534 = vmatpush2.msra.mxu0 0.0
  %2535 = vmatprep.subr.mxu0 0.0
  %2536 = vmatpush2.msra.mxu0 0.0
  %2537 = vmatprep.subr.mxu0 0.0
  %2538 = vmatpush2.msra.mxu0 0.0
  %2539 = vmatprep.subr.mxu0 0.0
  %2540 = vmatpush2.msra.mxu0 0.0
  %2541 = vmatprep.mubr.f32.mxu0 0.0
  %2542 = vmatmul.mubr.f32.gmra.mxu0 %v2475
  %v2543 = vpop.f32.mrf.mxu0
  %v2544 = vadd.f32 %v2472, %v2543
  %v2545 = vpop.f32.mrf.mxu0
  %2546 = vdwg.mxu0
  %v2547 = vmax.f32 %v2544, 0.0
  %v2548 = vld [vmem:[%s13] sm:$0xff]
  %v2549 = vld [vmem:[%s13 + $0x8] sm:$0xff]
  %v2550 = vld [vmem:[#allocation5] sm:$0x1]
  %v2552 = vlaneseq
  %v2553 = vshrl.u32 %v2552, 7
  %v2554 = vsub.s32 0, %v2553
  %v2555 = vrot.slane %v2550, %v2554
  %vm2557 = vcmask 130048
  %v2559 = vsel %vm2557, %v2547, 0
  %2561 = vmatprep.subr.mxu0 0.0
  %2562 = vmatpush1.msra.mxu0 0.0
  %2563 = vmatprep.subr.mxu0 0.0
  %2564 = vmatpush1.msra.mxu0 0.0
  %2565 = vmatprep.subr.mxu0 0.0
  %2566 = vmatpush1.msra.mxu0 0.0
  %2567 = vmatprep.subr.mxu0 0.0
  %2568 = vmatpush1.msra.mxu0 0.0
  %2569 = vmatprep.subr.mxu0 0.0
  %2570 = vmatpush1.msra.mxu0 0.0
  %2571 = vmatprep.subr.mxu0 0.0
  %2572 = vmatpush1.msra.mxu0 0.0
  %2573 = vmatprep.subr.mxu0 0.0
  %2574 = vmatpush1.msra.mxu0 0.0
  %2575 = vmatprep.subr.mxu0 0.0
  %2576 = vmatpush1.msra.mxu0 0.0
  %2577 = vmatprep.subr.mxu0 0.0
  %2578 = vmatpush1.msra.mxu0 0.0
  %2579 = vmatprep.subr.mxu0 0.0
  %2580 = vmatpush1.msra.mxu0 0.0
  %2581 = vmatprep.subr.mxu0 0.0
  %2582 = vmatpush1.msra.mxu0 0.0
  %2583 = vmatprep.subr.mxu0 0.0
  %2584 = vmatpush1.msra.mxu0 0.0
  %2585 = vmatprep.subr.mxu0 0.0
  %2586 = vmatpush1.msra.mxu0 0.0
  %2587 = vmatprep.subr.mxu0 0.0
  %2588 = vmatpush1.msra.mxu0 0.0
  %2589 = vmatprep.subr.mxu0 0.0
  %2590 = vmatpush1.msra.mxu0 %v2549
  %2591 = vmatprep.subr.mxu0 0.0
  %2592 = vmatpush1.msra.mxu0 %v2548
  %2593 = vmatprep.subr.mxu0 0.0
  %2594 = vmatpush2.msra.mxu0 0.0
  %2595 = vmatprep.subr.mxu0 0.0
  %2596 = vmatpush2.msra.mxu0 0.0
  %2597 = vmatprep.subr.mxu0 0.0
  %2598 = vmatpush2.msra.mxu0 0.0
  %2599 = vmatprep.subr.mxu0 0.0
  %2600 = vmatpush2.msra.mxu0 0.0
  %2601 = vmatprep.subr.mxu0 0.0
  %2602 = vmatpush2.msra.mxu0 0.0
  %2603 = vmatprep.subr.mxu0 0.0
  %2604 = vmatpush2.msra.mxu0 0.0
  %2605 = vmatprep.subr.mxu0 0.0
  %2606 = vmatpush2.msra.mxu0 0.0
  %2607 = vmatprep.subr.mxu0 0.0
  %2608 = vmatpush2.msra.mxu0 0.0
  %2609 = vmatprep.subr.mxu0 0.0
  %2610 = vmatpush2.msra.mxu0 0.0
  %2611 = vmatprep.subr.mxu0 0.0
  %2612 = vmatpush2.msra.mxu0 0.0
  %2613 = vmatprep.subr.mxu0 0.0
  %2614 = vmatpush2.msra.mxu0 0.0
  %2615 = vmatprep.subr.mxu0 0.0
  %2616 = vmatpush2.msra.mxu0 0.0
  %2617 = vmatprep.subr.mxu0 0.0
  %2618 = vmatpush2.msra.mxu0 0.0
  %2619 = vmatprep.subr.mxu0 0.0
  %2620 = vmatpush2.msra.mxu0 0.0
  %2621 = vmatprep.subr.mxu0 0.0
  %2622 = vmatpush2.msra.mxu0 0.0
  %2623 = vmatprep.subr.mxu0 0.0
  %2624 = vmatpush2.msra.mxu0 0.0
  %2625 = vmatprep.mubr.f32.mxu0 0.0
  %2626 = vmatmul.mubr.f32.gmra.mxu0 %v2559
  %v2627 = vpop.f32.mrf.mxu0
  %v2628 = vadd.f32 %v2555, %v2627
  %v2629 = vpop.f32.mrf.mxu0
  %2630 = vdwg.mxu0
  %2631 = vst.msk [vmem:[%s15] sm:$0xff] %vm2336, %v2628
  %2632 = vst.msk [vmem:[%s16] sm:$0xff] %vm2336, %v2392
  %2633 = vst.msk [vmem:[%s16 + $0x8] sm:$0xff] %vm2336, %v2393
  %2634 = vst.msk [vmem:[%s16 + $0x10] sm:$0xff] %vm2336, %v2394
  %2635 = vst.msk [vmem:[%s16 + $0x18] sm:$0xff] %vm2336, %v2395
  %2636 = vst.msk [vmem:[%s16 + $0x20] sm:$0xff] %vm2336, %v2396
  %2637 = vst.msk [vmem:[%s16 + $0x28] sm:$0xff] %vm2336, %v2397
  %2638 = vst.msk [vmem:[%s16 + $0x30] sm:$0xff] %vm2336, %v2398
  %2639 = vst.msk [vmem:[%s16 + $0x38] sm:$0xff] %vm2336, %v2399
  // Predicated region
  $region62: #{stock_price_lstm_forward.1} parent=0 // pred_check
    _
  $region63: #{stock_price_lstm_forward.1} parent=0 // pred_check_branch
    %2641 = sbr.rel (0) target = $region65
  $region64: #{stock_price_lstm_forward.1} parent=0 // pred_region
    _
  $region65: #{stock_price_lstm_forward.1} parent=0 // pred_fallthru
    _
  // Predicated region
  $region66: #{stock_price_lstm_forward.1} parent=0 // pred_check
    _
  $region67: #{stock_price_lstm_forward.1} parent=0 // pred_check_branch
    %2643 = sbr.rel (0) target = $region69
  $region68: #{stock_price_lstm_forward.1} parent=0 // pred_region
    _
  $region69: #{stock_price_lstm_forward.1} parent=0 // pred_fallthru
    _
  // Predicated region
  $region70: #{stock_price_lstm_forward.1} parent=0 // pred_check
    _
  $region71: #{stock_price_lstm_forward.1} parent=0 // pred_check_branch
    %2645 = sbr.rel (0) target = $region73
  $region72: #{stock_price_lstm_forward.1} parent=0 // pred_region
    _
  $region73: #{stock_price_lstm_forward.1} parent=0 // pred_fallthru
    _
  // Predicated region
  $region74: #{stock_price_lstm_forward.1} parent=0 // pred_check
    _
  $region75: #{stock_price_lstm_forward.1} parent=0 // pred_check_branch
    %2647 = sbr.rel (0) target = $region77
  $region76: #{stock_price_lstm_forward.1} parent=0 // pred_region
    _
  $region77: #{stock_price_lstm_forward.1} parent=0 // pred_fallthru
    _

</llo_original>
